<compile_context>
chip_gen: v6e
topology: v6e:2x2x1
jax: 0.10.0
libtpu: 0.0.40
codegen_flags: <defaults>
</compile_context>

<pallas_src>
import functools
import math

import jax
import jax.numpy as jnp
from jax import lax
from jax.experimental import pallas as pl
from jax.experimental.pallas import tpu as pltpu


_SQRT_HALF = 0.7071067811865476


def _round_up(v, m):
    return (v + m - 1) // m * m


def _gelu_f32(v):
    # exact (erf-based) GELU, matching torch.nn.GELU() default
    return 0.5 * v * (1.0 + lax.erf(v * _SQRT_HALF))


@functools.lru_cache(maxsize=None)
def _default_vmem_limit_bytes():
    """Generation-aware scoped-VMEM limit (v5e/v6e: 64 MiB; v7x: <= 48 MiB)."""
    cap = None
    try:
        cap = getattr(pltpu.get_tpu_info(), "vmem_capacity_bytes", None)
    except Exception:
        cap = None
    if cap is None:
        return 48 * 1024 * 1024          # unknown generation: safe everywhere
    if cap >= 128 * 1024 * 1024:
        return 64 * 1024 * 1024          # v5e / v6e: plenty of physical VMEM
    # v7x-class (64 MiB physical): leave headroom for compiler scratch.
    return min(48 * 1024 * 1024, max(cap - 16 * 1024 * 1024, 16 * 1024 * 1024))


def _fused_subsample4_kernel(xt_ref, w1_ref, w2_ref, w3_ref, b_ref,
                             o_ref, q1_scr, p2_scr, *, tt3, cin, cout):
    """One (batch, time-tile) step of the fused 3x(causal conv1d k=3 + GELU).

    xt_ref : (tt3 + 8, 4*cin)   quad-packed input tile (last 8 rows = halo)
    w1_ref : (3*cin,  cout)     layer-1 weight, taps stacked along rows
    w2_ref : (3*cout, cout)     layer-2 weight (stride 2)
    w3_ref : (3*cout, cout)     layer-3 weight (stride 2)
    b_ref  : (3, cout)          biases, f32
    o_ref  : (tt3, cout)        final output tile
    q1_scr : (tt3 + 2, 4*cout)  quad-packed layer-1 activations (VMEM scratch)
    p2_scr : (tt3 + 1, 2*cout)  pair-packed layer-2 activations (VMEM scratch)
    """
    t = pl.program_id(1)
    r1 = tt3 + 2                        # quad rows of y1 this tile produces
    r2 = tt3 + 1                        # pair rows of y2 this tile produces

    f32 = jnp.float32
    b1 = b_ref[0:1, :]
    b2 = b_ref[1:2, :]
    b3 = b_ref[2:3, :]

    def mm(a, b):
        return jnp.dot(a, b, preferred_element_type=f32)

    # ---- layer 1: x -> y1 (stride 1), written quad-packed -----------------
    # quad slot s of local row r holds y1[4*(t*tt3 + r) - 6 + s]; every tap is
    # a contiguous lane slice of quad-packed input rows r / r+1.
    s0 = mm(xt_ref[0:r1, 0:3 * cin], w1_ref[...]) + b1
    q1_scr[:, 0:cout] = _gelu_f32(s0).astype(q1_scr.dtype)
    s1 = mm(xt_ref[0:r1, cin:4 * cin], w1_ref[...]) + b1
    q1_scr[:, cout:2 * cout] = _gelu_f32(s1).astype(q1_scr.dtype)
    s2 = (mm(xt_ref[0:r1, 2 * cin:4 * cin], w1_ref[0:2 * cin, :])
          + mm(xt_ref[1:r1 + 1, 0:cin], w1_ref[2 * cin:3 * cin, :])
          + b1)
    q1_scr[:, 2 * cout:3 * cout] = _gelu_f32(s2).astype(q1_scr.dtype)
    s3 = (mm(xt_ref[0:r1, 3 * cin:4 * cin], w1_ref[0:cin, :])
          + mm(xt_ref[1:r1 + 1, 0:2 * cin], w1_ref[cin:3 * cin, :])
          + b1)
    q1_scr[:, 3 * cout:4 * cout] = _gelu_f32(s3).astype(q1_scr.dtype)

    @pl.when(t == 0)
    def _zero_y1_left_pad():
        # y1 at global time < 0 is layer-2's ConstantPad1d((2,0)) -> exact 0
        q1_scr[0:1, :] = jnp.zeros((1, 4 * cout), q1_scr.dtype)
        q1_scr[1:2, 0:2 * cout] = jnp.zeros((1, 2 * cout), q1_scr.dtype)

    # ---- layer 2: y1 -> y2 (stride 2), written pair-packed ----------------
    # even y2 of pair row r uses y1 quad slots 0..2 of row r; odd y2 uses
    # slots 2,3 of row r plus slot 0 of row r+1 -> contiguous lane slices.
    e2 = mm(q1_scr[0:r2, 0:3 * cout], w2_ref[...]) + b2
    p2_scr[:, 0:cout] = _gelu_f32(e2).astype(p2_scr.dtype)
    o2 = (mm(q1_scr[0:r2, 2 * cout:4 * cout], w2_ref[0:2 * cout, :])
          + mm(q1_scr[1:r2 + 1, 0:cout], w2_ref[2 * cout:3 * cout, :])
          + b2)
    p2_scr[:, cout:2 * cout] = _gelu_f32(o2).astype(p2_scr.dtype)

    @pl.when(t == 0)
    def _zero_y2_left_pad():
        # y2 at global time < 0 is layer-3's ConstantPad1d((2,0)) -> exact 0
        p2_scr[0:1, :] = jnp.zeros((1, 2 * cout), p2_scr.dtype)

    # ---- layer 3: y2 -> out (stride 2) ------------------------------------
    y3 = (mm(p2_scr[0:tt3, :], w3_ref[0:2 * cout, :])
          + mm(p2_scr[1:tt3 + 1, 0:cout], w3_ref[2 * cout:3 * cout, :])
          + b3)
    o_ref[...] = _gelu_f32(y3).astype(o_ref.dtype)


def gxl_conv1d_subsampling4(params, x, mask_pad, *,
                            compute_dtype=jnp.bfloat16, time_tile=256):
    """Forward of GxlConv1dSubsampling4.

    x: (B, T, idim); mask_pad: (B, 1, T) bool.
    Returns (x_out: (B, T3, odim) in compute_dtype, mask_out: (B, 1, T3)).
    """
    (w1, b1), (w2, b2), (w3, b3) = params   # w: (3, C_in, C_out) tap-major
    B, T, idim = x.shape
    odim = w1.shape[-1]

    # output lengths: left pad 2, kernel 3, strides 1 / 2 / 2
    t1 = T
    t2 = (t1 - 1) // 2 + 1
    t3 = (t2 - 1) // 2 + 1

    cin = _round_up(idim, 128)
    cout = _round_up(odim, 128)
    tt3 = max(8, min(_round_up(time_tile, 8), _round_up(t3, 8)))
    nt = pl.cdiv(t3, tt3)
    t3p = nt * tt3

    # Pad the RAW input once (8 leading zero rows = the three causal pads
    # folded through the x4 subsampling, trailing zeros so a full extra tile
    # of quad rows exists for the last halo window, lane padding of the
    # channel dim), quad-pack 4 time steps per row (free reshape), then
    # window it into overlapping per-tile blocks of tt3 + 8 quad rows
    # (main tile + halo).  Per-step VMEM residency is O(tt3), not O(T).
    rows_total = (nt + 1) * tt3
    lx = 4 * rows_total
    x_p = jnp.pad(x.astype(compute_dtype),
                  ((0, 0), (8, lx - 8 - T), (0, cin - idim)))
    x_q = x_p.reshape(B, rows_total, 4 * cin)
    x_main = x_q[:, :nt * tt3, :].reshape(B, nt, tt3, 4 * cin)
    x_halo = x_q[:, tt3:, :].reshape(B, nt, tt3, 4 * cin)[:, :, :8, :]
    x_tiles = jnp.concatenate([x_main, x_halo], axis=2)
    x_tiles = x_tiles.reshape(B * nt, tt3 + 8, 4 * cin)

    def prep_w(w, c_in_logical, c_in_pad):
        wp = jnp.pad(w, ((0, 0), (0, c_in_pad - c_in_logical),
                         (0, cout - odim)))
        return wp.reshape(3 * c_in_pad, cout).astype(compute_dtype)

    w1s = prep_w(w1, idim, cin)
    w2s = prep_w(w2, odim, cout)
    w3s = prep_w(w3, odim, cout)
    bias = jnp.stack([jnp.pad(b1, (0, cout - odim)),
                      jnp.pad(b2, (0, cout - odim)),
                      jnp.pad(b3, (0, cout - odim))]).astype(jnp.float32)

    kernel = functools.partial(_fused_subsample4_kernel,
                               tt3=tt3, cin=cin, cout=cout)

    def run(single_buffer_consts):
        # Constant-index operands never revolve, so one buffer is enough;
        # saves ~half the weight VMEM (matters at odim=512 on v7x).
        cpm = ({"pipeline_mode": pl.Buffered(1)}
               if single_buffer_consts else {})
        return pl.pallas_call(
            kernel,
            # compute_dtype output: halves HBM writeback + output VMEM buffers
            out_shape=jax.ShapeDtypeStruct((B, t3p, cout), compute_dtype),
            grid_spec=pltpu.PrefetchScalarGridSpec(
                num_scalar_prefetch=0,
                grid=(B, nt),
                in_specs=[
                    # per-(batch, time-tile) halo tile, O(tt3) resident
                    pl.BlockSpec((None, tt3 + 8, 4 * cin),
                                 lambda b, t: (b * nt + t, 0, 0)),
                    pl.BlockSpec((3 * cin, cout), lambda b, t: (0, 0), **cpm),
                    pl.BlockSpec((3 * cout, cout), lambda b, t: (0, 0), **cpm),
                    pl.BlockSpec((3 * cout, cout), lambda b, t: (0, 0), **cpm),
                    pl.BlockSpec((3, cout), lambda b, t: (0, 0), **cpm),
                ],
                out_specs=pl.BlockSpec((None, tt3, cout),
                                       lambda b, t: (b, t, 0)),
                scratch_shapes=[
                    pltpu.VMEM((tt3 + 2, 4 * cout), compute_dtype),
                    pltpu.VMEM((tt3 + 1, 2 * cout), compute_dtype),
                ],
            ),
            compiler_params=pltpu.CompilerParams(
                # Every (b, t) step is independent and DMAs only its own tile,
                # so either axis is safe for the megacore split (no duplicated
                # whole-sequence DMA anymore).
                dimension_semantics=("parallel", "parallel"),
                vmem_limit_bytes=_default_vmem_limit_bytes()),
        )(x_tiles, w1s, w2s, w3s, bias)

    try:
        out = run(True)
    except Exception:
        # This JAX build does not accept per-operand pipeline_mode at the
        # pallas_call level: fall back to default double buffering.
        out = run(False)

    x_out = out
    if t3p != t3 or cout != odim:
        x_out = out[:, :t3, :odim]
    # mask subsampling is pure indexing glue (stays in plain JAX)
    mask_out = mask_pad[:, :, 0::2][:, :, 0::2]
    return x_out, mask_out


def init_params(key, idim, odim):
    """Deterministic synthetic params (PyTorch Conv1d-style uniform init)."""
    ks = jax.random.split(key, 6)

    def conv_init(kw, kb, c_in, c_out):
        bound = 1.0 / math.sqrt(c_in * 3)
        # torch layout (C_out, C_in, 3) -> kernel layout (3, C_in, C_out)
        w_oik = jax.random.uniform(kw, (c_out, c_in, 3), jnp.float32,
                                   -bound, bound)
        b = jax.random.uniform(kb, (c_out,), jnp.float32, -bound, bound)
        return jnp.transpose(w_oik, (2, 1, 0)), b

    p1 = conv_init(ks[0], ks[1], idim, odim)
    p2 = conv_init(ks[2], ks[3], odim, odim)
    p3 = conv_init(ks[4], ks[5], odim, odim)
    return p1, p2, p3


def _ref_forward(params, x, mask_pad):
    """Pure-JAX reference mirroring the PyTorch module exactly (f32)."""
    def conv_gelu(x_btc, w_3io, b, stride):
        x_nct = jnp.transpose(x_btc, (0, 2, 1))
        x_nct = jnp.pad(x_nct, ((0, 0), (0, 0), (2, 0)))
        w_oik = jnp.transpose(w_3io, (2, 1, 0))
        y = lax.conv_general_dilated(
            x_nct, w_oik, (stride,), 'VALID',
            dimension_numbers=('NCH', 'OIH', 'NCH'))
        y = y + b[None, :, None]
        y = 0.5 * y * (1.0 + lax.erf(y * _SQRT_HALF))
        return jnp.transpose(y, (0, 2, 1))

    (w1, b1), (w2, b2), (w3, b3) = params
    x = conv_gelu(x, w1, b1, 1)
    x = conv_gelu(x, w2, b2, 2)
    x = conv_gelu(x, w3, b3, 2)
    return x, mask_pad[:, :, 0::2][:, :, 0::2]


if __name__ == "__main__":
    B, T, idim, odim = 2, 16, 8, 32

    key = jax.random.PRNGKey(0)
    kp, kx, kx2 = jax.random.split(key, 3)
    params = init_params(kp, idim, odim)
    x = jax.random.normal(kx, (B, T, idim), jnp.float32)
    mask_pad = jnp.ones((B, 1, T), dtype=jnp.bool_)

    # --- bf16 fast path (production setting) ------------------------------
    out, mask_out = gxl_conv1d_subsampling4(params, x, mask_pad)
    out = jax.block_until_ready(out)
    mask_out = jax.block_until_ready(mask_out)
    # shape semantics: T=16 -> 16 -> 8 -> 4 ; mask 16 -> 8 -> 4
    assert out.shape == (B, 4, odim), out.shape
    assert mask_out.shape == (B, 1, 4), mask_out.shape

    ref_out, ref_mask = _ref_forward(params, x, mask_pad)
    assert jnp.allclose(out, ref_out, atol=2e-2, rtol=2e-2), (
        float(jnp.max(jnp.abs(out - ref_out))))
    assert bool(jnp.all(mask_out == ref_mask))

    # --- f32 path: tight check of the fused indexing / padding logic ------
    out32, _ = gxl_conv1d_subsampling4(params, x, mask_pad,
                                       compute_dtype=jnp.float32)
    out32 = jax.block_until_ready(out32)
    assert jnp.allclose(out32, ref_out, atol=2e-3, rtol=2e-3), (
        float(jnp.max(jnp.abs(out32 - ref_out))))

    # --- multi-tile case: forces NT > 1 so the halo-tile path runs ---------
    T2_len = 70
    x2 = jax.random.normal(kx2, (B, T2_len, idim), jnp.float32)
    m2 = jnp.ones((B, 1, T2_len), dtype=jnp.bool_)
    out2, mask2 = gxl_conv1d_subsampling4(params, x2, m2,
                                          compute_dtype=jnp.float32,
                                          time_tile=8)
    out2 = jax.block_until_ready(out2)
    ref2, refm2 = _ref_forward(params, x2, m2)
    assert out2.shape == ref2.shape == (B, 18, odim), out2.shape
    assert jnp.allclose(out2, ref2, atol=2e-3, rtol=2e-3), (
        float(jnp.max(jnp.abs(out2 - ref2))))
    assert bool(jnp.all(mask2 == refm2))

    print("KERNEL_OK")
</pallas_src>

<mosaic_0001>
module attributes {stable_mosaic.version = 11 : i64} {
  func.func @_fused_subsample4_kernel(%arg0: i32, %arg1: i32, %arg2: memref<1x16x512xbf16, #tpu.memory_space<vmem>>, %arg3: memref<384x128xbf16, #tpu.memory_space<vmem>>, %arg4: memref<384x128xbf16, #tpu.memory_space<vmem>>, %arg5: memref<384x128xbf16, #tpu.memory_space<vmem>>, %arg6: memref<3x128xf32, #tpu.memory_space<vmem>>, %arg7: memref<1x8x128xbf16, #tpu.memory_space<vmem>>, %arg8: memref<10x512xbf16, #tpu.memory_space<vmem>>, %arg9: memref<9x256xbf16, #tpu.memory_space<vmem>>) attributes {dimension_semantics = [#tpu.dimension_semantics<parallel>, #tpu.dimension_semantics<parallel>], iteration_bounds = array<i64: 2, 1>, scalar_prefetch = 0 : i64, scratch_operands = 2 : i64, tpu.core_type = #tpu.core_type<tc>, window_params = [{transform_indices = @transform_0, window_bounds = array<i64: 1, 16, 512>}, {pipeline_mode = #tpu.pipeline_mode<synchronous>, transform_indices = @transform_1, window_bounds = array<i64: 384, 128>}, {pipeline_mode = #tpu.pipeline_mode<synchronous>, transform_indices = @transform_2, window_bounds = array<i64: 384, 128>}, {pipeline_mode = #tpu.pipeline_mode<synchronous>, transform_indices = @transform_3, window_bounds = array<i64: 384, 128>}, {pipeline_mode = #tpu.pipeline_mode<synchronous>, transform_indices = @transform_4, window_bounds = array<i64: 3, 128>}, {transform_indices = @transform_5, window_bounds = array<i64: 1, 8, 128>}]} {
    %c0 = arith.constant 0 : index
    %c0_0 = arith.constant 0 : index
    %0 = vector.load %arg6[%c0, %c0_0] : memref<3x128xf32, #tpu.memory_space<vmem>>, vector<1x128xf32>
    %c1 = arith.constant 1 : index
    %c0_1 = arith.constant 0 : index
    %1 = vector.load %arg6[%c1, %c0_1] : memref<3x128xf32, #tpu.memory_space<vmem>>, vector<1x128xf32>
    %c2 = arith.constant 2 : index
    %c0_2 = arith.constant 0 : index
    %2 = vector.load %arg6[%c2, %c0_2] : memref<3x128xf32, #tpu.memory_space<vmem>>, vector<1x128xf32>
    %c0_3 = arith.constant 0 : index
    %c0_4 = arith.constant 0 : index
    %c0_5 = arith.constant 0 : index
    %3 = vector.load %arg2[%c0_3, %c0_4, %c0_5] : memref<1x16x512xbf16, #tpu.memory_space<vmem>>, vector<1x10x384xbf16>
    %4 = vector.shape_cast %3 : vector<1x10x384xbf16> to vector<10x384xbf16>
    %c0_6 = arith.constant 0 : index
    %c0_7 = arith.constant 0 : index
    %5 = vector.load %arg3[%c0_6, %c0_7] : memref<384x128xbf16, #tpu.memory_space<vmem>>, vector<384x128xbf16>
    %cst = arith.constant dense<0.000000e+00> : vector<10x128xf32>
    %6 = tpu.matmul %4, %5, %cst {dimension_numbers = #tpu.dot_dimension_numbers<[1], [0], [0], [1], [0, 0, 1, 1], [], []>} : vector<10x384xbf16>, vector<384x128xbf16>, vector<10x128xf32> -> vector<10x128xf32>
    %7 = vector.broadcast %0 : vector<1x128xf32> to vector<10x128xf32>
    %8 = arith.addf %6, %7 : vector<10x128xf32>
    %cst_8 = arith.constant 5.000000e-01 : f32
    %9 = vector.broadcast %cst_8 : f32 to vector<10x128xf32>
    %10 = arith.mulf %9, %8 : vector<10x128xf32>
    %cst_9 = arith.constant 0.707106769 : f32
    %11 = vector.broadcast %cst_9 : f32 to vector<10x128xf32>
    %12 = arith.mulf %8, %11 : vector<10x128xf32>
    %13 = math.erf %12 : vector<10x128xf32>
    %cst_10 = arith.constant 1.000000e+00 : f32
    %14 = vector.broadcast %cst_10 : f32 to vector<10x128xf32>
    %15 = arith.addf %14, %13 : vector<10x128xf32>
    %16 = arith.mulf %10, %15 : vector<10x128xf32>
    %17 = arith.truncf %16 : vector<10x128xf32> to vector<10x128xbf16>
    %c0_11 = arith.constant 0 : index
    %c0_12 = arith.constant 0 : index
    %18 = vector.load %arg8[%c0_11, %c0_12] : memref<10x512xbf16, #tpu.memory_space<vmem>>, vector<10x128xbf16>
    tpu.vector_store %arg8[%c0_11, %c0_12], %17 {strides = array<i32>} : memref<10x512xbf16, #tpu.memory_space<vmem>>, vector<10x128xbf16>,
    %c0_13 = arith.constant 0 : index
    %c0_14 = arith.constant 0 : index
    %c128 = arith.constant 128 : index
    %19 = vector.load %arg2[%c0_13, %c0_14, %c128] : memref<1x16x512xbf16, #tpu.memory_space<vmem>>, vector<1x10x384xbf16>
    %20 = vector.shape_cast %19 : vector<1x10x384xbf16> to vector<10x384xbf16>
    %c0_15 = arith.constant 0 : index
    %c0_16 = arith.constant 0 : index
    %21 = vector.load %arg3[%c0_15, %c0_16] : memref<384x128xbf16, #tpu.memory_space<vmem>>, vector<384x128xbf16>
    %cst_17 = arith.constant dense<0.000000e+00> : vector<10x128xf32>
    %22 = tpu.matmul %20, %21, %cst_17 {dimension_numbers = #tpu.dot_dimension_numbers<[1], [0], [0], [1], [0, 0, 1, 1], [], []>} : vector<10x384xbf16>, vector<384x128xbf16>, vector<10x128xf32> -> vector<10x128xf32>
    %23 = vector.broadcast %0 : vector<1x128xf32> to vector<10x128xf32>
    %24 = arith.addf %22, %23 : vector<10x128xf32>
    %cst_18 = arith.constant 5.000000e-01 : f32
    %25 = vector.broadcast %cst_18 : f32 to vector<10x128xf32>
    %26 = arith.mulf %25, %24 : vector<10x128xf32>
    %cst_19 = arith.constant 0.707106769 : f32
    %27 = vector.broadcast %cst_19 : f32 to vector<10x128xf32>
    %28 = arith.mulf %24, %27 : vector<10x128xf32>
    %29 = math.erf %28 : vector<10x128xf32>
    %cst_20 = arith.constant 1.000000e+00 : f32
    %30 = vector.broadcast %cst_20 : f32 to vector<10x128xf32>
    %31 = arith.addf %30, %29 : vector<10x128xf32>
    %32 = arith.mulf %26, %31 : vector<10x128xf32>
    %33 = arith.truncf %32 : vector<10x128xf32> to vector<10x128xbf16>
    %c0_21 = arith.constant 0 : index
    %c128_22 = arith.constant 128 : index
    %34 = vector.load %arg8[%c0_21, %c128_22] : memref<10x512xbf16, #tpu.memory_space<vmem>>, vector<10x128xbf16>
    tpu.vector_store %arg8[%c0_21, %c128_22], %33 {strides = array<i32>} : memref<10x512xbf16, #tpu.memory_space<vmem>>, vector<10x128xbf16>,
    %c0_23 = arith.constant 0 : index
    %c0_24 = arith.constant 0 : index
    %c256 = arith.constant 256 : index
    %35 = vector.load %arg2[%c0_23, %c0_24, %c256] : memref<1x16x512xbf16, #tpu.memory_space<vmem>>, vector<1x10x256xbf16>
    %36 = vector.shape_cast %35 : vector<1x10x256xbf16> to vector<10x256xbf16>
    %c0_25 = arith.constant 0 : index
    %c0_26 = arith.constant 0 : index
    %37 = vector.load %arg3[%c0_25, %c0_26] : memref<384x128xbf16, #tpu.memory_space<vmem>>, vector<256x128xbf16>
    %cst_27 = arith.constant dense<0.000000e+00> : vector<10x128xf32>
    %38 = tpu.matmul %36, %37, %cst_27 {dimension_numbers = #tpu.dot_dimension_numbers<[1], [0], [0], [1], [0, 0, 1, 1], [], []>} : vector<10x256xbf16>, vector<256x128xbf16>, vector<10x128xf32> -> vector<10x128xf32>
    %c0_28 = arith.constant 0 : index
    %c1_29 = arith.constant 1 : index
    %c0_30 = arith.constant 0 : index
    %39 = vector.load %arg2[%c0_28, %c1_29, %c0_30] : memref<1x16x512xbf16, #tpu.memory_space<vmem>>, vector<1x10x128xbf16>
    %40 = vector.shape_cast %39 : vector<1x10x128xbf16> to vector<10x128xbf16>
    %c256_31 = arith.constant 256 : index
    %c0_32 = arith.constant 0 : index
    %41 = vector.load %arg3[%c256_31, %c0_32] : memref<384x128xbf16, #tpu.memory_space<vmem>>, vector<128x128xbf16>
    %cst_33 = arith.constant dense<0.000000e+00> : vector<10x128xf32>
    %42 = tpu.matmul %40, %41, %cst_33 {dimension_numbers = #tpu.dot_dimension_numbers<[1], [0], [0], [1], [0, 0, 1, 1], [], []>} : vector<10x128xbf16>, vector<128x128xbf16>, vector<10x128xf32> -> vector<10x128xf32>
    %43 = arith.addf %38, %42 : vector<10x128xf32>
    %44 = vector.broadcast %0 : vector<1x128xf32> to vector<10x128xf32>
    %45 = arith.addf %43, %44 : vector<10x128xf32>
    %cst_34 = arith.constant 5.000000e-01 : f32
    %46 = vector.broadcast %cst_34 : f32 to vector<10x128xf32>
    %47 = arith.mulf %46, %45 : vector<10x128xf32>
    %cst_35 = arith.constant 0.707106769 : f32
    %48 = vector.broadcast %cst_35 : f32 to vector<10x128xf32>
    %49 = arith.mulf %45, %48 : vector<10x128xf32>
    %50 = math.erf %49 : vector<10x128xf32>
    %cst_36 = arith.constant 1.000000e+00 : f32
    %51 = vector.broadcast %cst_36 : f32 to vector<10x128xf32>
    %52 = arith.addf %51, %50 : vector<10x128xf32>
    %53 = arith.mulf %47, %52 : vector<10x128xf32>
    %54 = arith.truncf %53 : vector<10x128xf32> to vector<10x128xbf16>
    %c0_37 = arith.constant 0 : index
    %c256_38 = arith.constant 256 : index
    %55 = vector.load %arg8[%c0_37, %c256_38] : memref<10x512xbf16, #tpu.memory_space<vmem>>, vector<10x128xbf16>
    tpu.vector_store %arg8[%c0_37, %c256_38], %54 {strides = array<i32>} : memref<10x512xbf16, #tpu.memory_space<vmem>>, vector<10x128xbf16>,
    %c0_39 = arith.constant 0 : index
    %c0_40 = arith.constant 0 : index
    %c384 = arith.constant 384 : index
    %56 = vector.load %arg2[%c0_39, %c0_40, %c384] : memref<1x16x512xbf16, #tpu.memory_space<vmem>>, vector<1x10x128xbf16>
    %57 = vector.shape_cast %56 : vector<1x10x128xbf16> to vector<10x128xbf16>
    %c0_41 = arith.constant 0 : index
    %c0_42 = arith.constant 0 : index
    %58 = vector.load %arg3[%c0_41, %c0_42] : memref<384x128xbf16, #tpu.memory_space<vmem>>, vector<128x128xbf16>
    %cst_43 = arith.constant dense<0.000000e+00> : vector<10x128xf32>
    %59 = tpu.matmul %57, %58, %cst_43 {dimension_numbers = #tpu.dot_dimension_numbers<[1], [0], [0], [1], [0, 0, 1, 1], [], []>} : vector<10x128xbf16>, vector<128x128xbf16>, vector<10x128xf32> -> vector<10x128xf32>
    %c0_44 = arith.constant 0 : index
    %c1_45 = arith.constant 1 : index
    %c0_46 = arith.constant 0 : index
    %60 = vector.load %arg2[%c0_44, %c1_45, %c0_46] : memref<1x16x512xbf16, #tpu.memory_space<vmem>>, vector<1x10x256xbf16>
    %61 = vector.shape_cast %60 : vector<1x10x256xbf16> to vector<10x256xbf16>
    %c128_47 = arith.constant 128 : index
    %c0_48 = arith.constant 0 : index
    %62 = vector.load %arg3[%c128_47, %c0_48] : memref<384x128xbf16, #tpu.memory_space<vmem>>, vector<256x128xbf16>
    %cst_49 = arith.constant dense<0.000000e+00> : vector<10x128xf32>
    %63 = tpu.matmul %61, %62, %cst_49 {dimension_numbers = #tpu.dot_dimension_numbers<[1], [0], [0], [1], [0, 0, 1, 1], [], []>} : vector<10x256xbf16>, vector<256x128xbf16>, vector<10x128xf32> -> vector<10x128xf32>
    %64 = arith.addf %59, %63 : vector<10x128xf32>
    %65 = vector.broadcast %0 : vector<1x128xf32> to vector<10x128xf32>
    %66 = arith.addf %64, %65 : vector<10x128xf32>
    %cst_50 = arith.constant 5.000000e-01 : f32
    %67 = vector.broadcast %cst_50 : f32 to vector<10x128xf32>
    %68 = arith.mulf %67, %66 : vector<10x128xf32>
    %cst_51 = arith.constant 0.707106769 : f32
    %69 = vector.broadcast %cst_51 : f32 to vector<10x128xf32>
    %70 = arith.mulf %66, %69 : vector<10x128xf32>
    %71 = math.erf %70 : vector<10x128xf32>
    %cst_52 = arith.constant 1.000000e+00 : f32
    %72 = vector.broadcast %cst_52 : f32 to vector<10x128xf32>
    %73 = arith.addf %72, %71 : vector<10x128xf32>
    %74 = arith.mulf %68, %73 : vector<10x128xf32>
    %75 = arith.truncf %74 : vector<10x128xf32> to vector<10x128xbf16>
    %c0_53 = arith.constant 0 : index
    %c384_54 = arith.constant 384 : index
    %76 = vector.load %arg8[%c0_53, %c384_54] : memref<10x512xbf16, #tpu.memory_space<vmem>>, vector<10x128xbf16>
    tpu.vector_store %arg8[%c0_53, %c384_54], %75 {strides = array<i32>} : memref<10x512xbf16, #tpu.memory_space<vmem>>, vector<10x128xbf16>,
    %c0_i32 = arith.constant 0 : i32
    %77 = arith.cmpi eq, %arg1, %c0_i32 : i32
    %78 = arith.extui %77 : i1 to i32
    %c0_i32_55 = arith.constant 0 : i32
    %79 = arith.cmpi ne, %78, %c0_i32_55 : i32
    scf.if %79 {
      %cst_99 = arith.constant 0.000000e+00 : bf16
      %138 = vector.broadcast %cst_99 : bf16 to vector<1x512xbf16>
      %c0_100 = arith.constant 0 : index
      %c0_101 = arith.constant 0 : index
      %139 = vector.load %arg8[%c0_100, %c0_101] : memref<10x512xbf16, #tpu.memory_space<vmem>>, vector<1x512xbf16>
      tpu.vector_store %arg8[%c0_100, %c0_101], %138 {strides = array<i32>} : memref<10x512xbf16, #tpu.memory_space<vmem>>, vector<1x512xbf16>,
      %cst_102 = arith.constant 0.000000e+00 : bf16
      %140 = vector.broadcast %cst_102 : bf16 to vector<1x256xbf16>
      %c1_103 = arith.constant 1 : index
      %c0_104 = arith.constant 0 : index
      %141 = vector.load %arg8[%c1_103, %c0_104] : memref<10x512xbf16, #tpu.memory_space<vmem>>, vector<1x256xbf16>
      tpu.vector_store %arg8[%c1_103, %c0_104], %140 {strides = array<i32>} : memref<10x512xbf16, #tpu.memory_space<vmem>>, vector<1x256xbf16>,
    } else {
    }
    %c0_56 = arith.constant 0 : index
    %c0_57 = arith.constant 0 : index
    %80 = vector.load %arg8[%c0_56, %c0_57] : memref<10x512xbf16, #tpu.memory_space<vmem>>, vector<9x384xbf16>
    %c0_58 = arith.constant 0 : index
    %c0_59 = arith.constant 0 : index
    %81 = vector.load %arg4[%c0_58, %c0_59] : memref<384x128xbf16, #tpu.memory_space<vmem>>, vector<384x128xbf16>
    %cst_60 = arith.constant dense<0.000000e+00> : vector<9x128xf32>
    %82 = tpu.matmul %80, %81, %cst_60 {dimension_numbers = #tpu.dot_dimension_numbers<[1], [0], [0], [1], [0, 0, 1, 1], [], []>} : vector<9x384xbf16>, vector<384x128xbf16>, vector<9x128xf32> -> vector<9x128xf32>
    %83 = vector.broadcast %1 : vector<1x128xf32> to vector<9x128xf32>
    %84 = arith.addf %82, %83 : vector<9x128xf32>
    %cst_61 = arith.constant 5.000000e-01 : f32
    %85 = vector.broadcast %cst_61 : f32 to vector<9x128xf32>
    %86 = arith.mulf %85, %84 : vector<9x128xf32>
    %cst_62 = arith.constant 0.707106769 : f32
    %87 = vector.broadcast %cst_62 : f32 to vector<9x128xf32>
    %88 = arith.mulf %84, %87 : vector<9x128xf32>
    %89 = math.erf %88 : vector<9x128xf32>
    %cst_63 = arith.constant 1.000000e+00 : f32
    %90 = vector.broadcast %cst_63 : f32 to vector<9x128xf32>
    %91 = arith.addf %90, %89 : vector<9x128xf32>
    %92 = arith.mulf %86, %91 : vector<9x128xf32>
    %93 = arith.truncf %92 : vector<9x128xf32> to vector<9x128xbf16>
    %c0_64 = arith.constant 0 : index
    %c0_65 = arith.constant 0 : index
    %94 = vector.load %arg9[%c0_64, %c0_65] : memref<9x256xbf16, #tpu.memory_space<vmem>>, vector<9x128xbf16>
    tpu.vector_store %arg9[%c0_64, %c0_65], %93 {strides = array<i32>} : memref<9x256xbf16, #tpu.memory_space<vmem>>, vector<9x128xbf16>,
    %c0_66 = arith.constant 0 : index
    %c256_67 = arith.constant 256 : index
    %95 = vector.load %arg8[%c0_66, %c256_67] : memref<10x512xbf16, #tpu.memory_space<vmem>>, vector<9x256xbf16>
    %c0_68 = arith.constant 0 : index
    %c0_69 = arith.constant 0 : index
    %96 = vector.load %arg4[%c0_68, %c0_69] : memref<384x128xbf16, #tpu.memory_space<vmem>>, vector<256x128xbf16>
    %cst_70 = arith.constant dense<0.000000e+00> : vector<9x128xf32>
    %97 = tpu.matmul %95, %96, %cst_70 {dimension_numbers = #tpu.dot_dimension_numbers<[1], [0], [0], [1], [0, 0, 1, 1], [], []>} : vector<9x256xbf16>, vector<256x128xbf16>, vector<9x128xf32> -> vector<9x128xf32>
    %c1_71 = arith.constant 1 : index
    %c0_72 = arith.constant 0 : index
    %98 = vector.load %arg8[%c1_71, %c0_72] : memref<10x512xbf16, #tpu.memory_space<vmem>>, vector<9x128xbf16>
    %c256_73 = arith.constant 256 : index
    %c0_74 = arith.constant 0 : index
    %99 = vector.load %arg4[%c256_73, %c0_74] : memref<384x128xbf16, #tpu.memory_space<vmem>>, vector<128x128xbf16>
    %cst_75 = arith.constant dense<0.000000e+00> : vector<9x128xf32>
    %100 = tpu.matmul %98, %99, %cst_75 {dimension_numbers = #tpu.dot_dimension_numbers<[1], [0], [0], [1], [0, 0, 1, 1], [], []>} : vector<9x128xbf16>, vector<128x128xbf16>, vector<9x128xf32> -> vector<9x128xf32>
    %101 = arith.addf %97, %100 : vector<9x128xf32>
    %102 = vector.broadcast %1 : vector<1x128xf32> to vector<9x128xf32>
    %103 = arith.addf %101, %102 : vector<9x128xf32>
    %cst_76 = arith.constant 5.000000e-01 : f32
    %104 = vector.broadcast %cst_76 : f32 to vector<9x128xf32>
    %105 = arith.mulf %104, %103 : vector<9x128xf32>
    %cst_77 = arith.constant 0.707106769 : f32
    %106 = vector.broadcast %cst_77 : f32 to vector<9x128xf32>
    %107 = arith.mulf %103, %106 : vector<9x128xf32>
    %108 = math.erf %107 : vector<9x128xf32>
    %cst_78 = arith.constant 1.000000e+00 : f32
    %109 = vector.broadcast %cst_78 : f32 to vector<9x128xf32>
    %110 = arith.addf %109, %108 : vector<9x128xf32>
    %111 = arith.mulf %105, %110 : vector<9x128xf32>
    %112 = arith.truncf %111 : vector<9x128xf32> to vector<9x128xbf16>
    %c0_79 = arith.constant 0 : index
    %c128_80 = arith.constant 128 : index
    %113 = vector.load %arg9[%c0_79, %c128_80] : memref<9x256xbf16, #tpu.memory_space<vmem>>, vector<9x128xbf16>
    tpu.vector_store %arg9[%c0_79, %c128_80], %112 {strides = array<i32>} : memref<9x256xbf16, #tpu.memory_space<vmem>>, vector<9x128xbf16>,
    %c0_i32_81 = arith.constant 0 : i32
    %114 = arith.cmpi eq, %arg1, %c0_i32_81 : i32
    %115 = arith.extui %114 : i1 to i32
    %c0_i32_82 = arith.constant 0 : i32
    %116 = arith.cmpi ne, %115, %c0_i32_82 : i32
    scf.if %116 {
      %cst_99 = arith.constant 0.000000e+00 : bf16
      %138 = vector.broadcast %cst_99 : bf16 to vector<1x256xbf16>
      %c0_100 = arith.constant 0 : index
      %c0_101 = arith.constant 0 : index
      %139 = vector.load %arg9[%c0_100, %c0_101] : memref<9x256xbf16, #tpu.memory_space<vmem>>, vector<1x256xbf16>
      tpu.vector_store %arg9[%c0_100, %c0_101], %138 {strides = array<i32>} : memref<9x256xbf16, #tpu.memory_space<vmem>>, vector<1x256xbf16>,
    } else {
    }
    %c0_83 = arith.constant 0 : index
    %c0_84 = arith.constant 0 : index
    %117 = vector.load %arg9[%c0_83, %c0_84] : memref<9x256xbf16, #tpu.memory_space<vmem>>, vector<8x256xbf16>
    %c0_85 = arith.constant 0 : index
    %c0_86 = arith.constant 0 : index
    %118 = vector.load %arg5[%c0_85, %c0_86] : memref<384x128xbf16, #tpu.memory_space<vmem>>, vector<256x128xbf16>
    %cst_87 = arith.constant dense<0.000000e+00> : vector<8x128xf32>
    %119 = tpu.matmul %117, %118, %cst_87 {dimension_numbers = #tpu.dot_dimension_numbers<[1], [0], [0], [1], [0, 0, 1, 1], [], []>} : vector<8x256xbf16>, vector<256x128xbf16>, vector<8x128xf32> -> vector<8x128xf32>
    %c1_88 = arith.constant 1 : index
    %c0_89 = arith.constant 0 : index
    %120 = vector.load %arg9[%c1_88, %c0_89] : memref<9x256xbf16, #tpu.memory_space<vmem>>, vector<8x128xbf16>
    %c256_90 = arith.constant 256 : index
    %c0_91 = arith.constant 0 : index
    %121 = vector.load %arg5[%c256_90, %c0_91] : memref<384x128xbf16, #tpu.memory_space<vmem>>, vector<128x128xbf16>
    %cst_92 = arith.constant dense<0.000000e+00> : vector<8x128xf32>
    %122 = tpu.matmul %120, %121, %cst_92 {dimension_numbers = #tpu.dot_dimension_numbers<[1], [0], [0], [1], [0, 0, 1, 1], [], []>} : vector<8x128xbf16>, vector<128x128xbf16>, vector<8x128xf32> -> vector<8x128xf32>
    %123 = arith.addf %119, %122 : vector<8x128xf32>
    %124 = vector.broadcast %2 : vector<1x128xf32> to vector<8x128xf32>
    %125 = arith.addf %123, %124 : vector<8x128xf32>
    %cst_93 = arith.constant 5.000000e-01 : f32
    %126 = vector.broadcast %cst_93 : f32 to vector<8x128xf32>
    %127 = arith.mulf %126, %125 : vector<8x128xf32>
    %cst_94 = arith.constant 0.707106769 : f32
    %128 = vector.broadcast %cst_94 : f32 to vector<8x128xf32>
    %129 = arith.mulf %125, %128 : vector<8x128xf32>
    %130 = math.erf %129 : vector<8x128xf32>
    %cst_95 = arith.constant 1.000000e+00 : f32
    %131 = vector.broadcast %cst_95 : f32 to vector<8x128xf32>
    %132 = arith.addf %131, %130 : vector<8x128xf32>
    %133 = arith.mulf %127, %132 : vector<8x128xf32>
    %134 = arith.truncf %133 : vector<8x128xf32> to vector<8x128xbf16>
    %c0_96 = arith.constant 0 : index
    %c0_97 = arith.constant 0 : index
    %c0_98 = arith.constant 0 : index
    %135 = vector.load %arg7[%c0_96, %c0_97, %c0_98] : memref<1x8x128xbf16, #tpu.memory_space<vmem>>, vector<1x8x128xbf16>
    %136 = vector.shape_cast %135 : vector<1x8x128xbf16> to vector<8x128xbf16>
    %137 = vector.shape_cast %134 : vector<8x128xbf16> to vector<1x8x128xbf16>
    tpu.vector_store %arg7[%c0_96, %c0_97, %c0_98], %137 {strides = array<i32>} : memref<1x8x128xbf16, #tpu.memory_space<vmem>>, vector<1x8x128xbf16>,
    return
  }
  func.func @transform_0(%arg0: i32, %arg1: i32) -> (i32, i32, i32) {
    %c1_i32 = arith.constant 1 : i32
    %0 = arith.muli %arg0, %c1_i32 : i32
    %1 = arith.addi %0, %arg1 : i32
    %c0_i32 = arith.constant 0 : i32
    %c0_i32_0 = arith.constant 0 : i32
    %c0_i32_1 = arith.constant 0 : i32
    return %1, %c0_i32, %c0_i32_0 : i32, i32, i32
  }
  func.func @transform_1(%arg0: i32, %arg1: i32) -> (i32, i32) {
    %c0_i32 = arith.constant 0 : i32
    %c0_i32_0 = arith.constant 0 : i32
    %c0_i32_1 = arith.constant 0 : i32
    return %c0_i32, %c0_i32_0 : i32, i32
  }
  func.func @transform_2(%arg0: i32, %arg1: i32) -> (i32, i32) {
    %c0_i32 = arith.constant 0 : i32
    %c0_i32_0 = arith.constant 0 : i32
    %c0_i32_1 = arith.constant 0 : i32
    return %c0_i32, %c0_i32_0 : i32, i32
  }
  func.func @transform_3(%arg0: i32, %arg1: i32) -> (i32, i32) {
    %c0_i32 = arith.constant 0 : i32
    %c0_i32_0 = arith.constant 0 : i32
    %c0_i32_1 = arith.constant 0 : i32
    return %c0_i32, %c0_i32_0 : i32, i32
  }
  func.func @transform_4(%arg0: i32, %arg1: i32) -> (i32, i32) {
    %c0_i32 = arith.constant 0 : i32
    %c0_i32_0 = arith.constant 0 : i32
    %c0_i32_1 = arith.constant 0 : i32
    return %c0_i32, %c0_i32_0 : i32, i32
  }
  func.func @transform_5(%arg0: i32, %arg1: i32) -> (i32, i32, i32) {
    %c0_i32 = arith.constant 0 : i32
    %c0_i32_0 = arith.constant 0 : i32
    return %arg0, %arg1, %c0_i32 : i32, i32, i32
  }
}

module attributes {stable_mosaic.version = 11 : i64} {
  func.func @_fused_subsample4_kernel(%arg0: i32, %arg1: i32, %arg2: memref<1x16x512xbf16, #tpu.memory_space<vmem>>, %arg3: memref<384x128xbf16, #tpu.memory_space<vmem>>, %arg4: memref<384x128xbf16, #tpu.memory_space<vmem>>, %arg5: memref<384x128xbf16, #tpu.memory_space<vmem>>, %arg6: memref<3x128xf32, #tpu.memory_space<vmem>>, %arg7: memref<1x8x128xbf16, #tpu.memory_space<vmem>>, %arg8: memref<10x512xbf16, #tpu.memory_space<vmem>>, %arg9: memref<9x256xbf16, #tpu.memory_space<vmem>>) attributes {dimension_semantics = [#tpu.dimension_semantics<parallel>, #tpu.dimension_semantics<parallel>], iteration_bounds = array<i64: 2, 1>, scalar_prefetch = 0 : i64, scratch_operands = 2 : i64, tpu.core_type = #tpu.core_type<tc>, window_params = [{transform_indices = @transform_0, window_bounds = array<i64: 1, 16, 512>}, {pipeline_mode = #tpu.pipeline_mode<synchronous>, transform_indices = @transform_1, window_bounds = array<i64: 384, 128>}, {pipeline_mode = #tpu.pipeline_mode<synchronous>, transform_indices = @transform_2, window_bounds = array<i64: 384, 128>}, {pipeline_mode = #tpu.pipeline_mode<synchronous>, transform_indices = @transform_3, window_bounds = array<i64: 384, 128>}, {pipeline_mode = #tpu.pipeline_mode<synchronous>, transform_indices = @transform_4, window_bounds = array<i64: 3, 128>}, {transform_indices = @transform_5, window_bounds = array<i64: 1, 8, 128>}]} {
    %c0 = arith.constant 0 : index
    %c0_0 = arith.constant 0 : index
    %0 = vector.load %arg6[%c0, %c0_0] : memref<3x128xf32, #tpu.memory_space<vmem>>, vector<1x128xf32>
    %c1 = arith.constant 1 : index
    %c0_1 = arith.constant 0 : index
    %1 = vector.load %arg6[%c1, %c0_1] : memref<3x128xf32, #tpu.memory_space<vmem>>, vector<1x128xf32>
    %c2 = arith.constant 2 : index
    %c0_2 = arith.constant 0 : index
    %2 = vector.load %arg6[%c2, %c0_2] : memref<3x128xf32, #tpu.memory_space<vmem>>, vector<1x128xf32>
    %c0_3 = arith.constant 0 : index
    %c0_4 = arith.constant 0 : index
    %c0_5 = arith.constant 0 : index
    %3 = vector.load %arg2[%c0_3, %c0_4, %c0_5] : memref<1x16x512xbf16, #tpu.memory_space<vmem>>, vector<1x10x384xbf16>
    %4 = vector.shape_cast %3 : vector<1x10x384xbf16> to vector<10x384xbf16>
    %c0_6 = arith.constant 0 : index
    %c0_7 = arith.constant 0 : index
    %5 = vector.load %arg3[%c0_6, %c0_7] : memref<384x128xbf16, #tpu.memory_space<vmem>>, vector<384x128xbf16>
    %cst = arith.constant dense<0.000000e+00> : vector<10x128xf32>
    %6 = tpu.matmul %4, %5, %cst {dimension_numbers = #tpu.dot_dimension_numbers<[1], [0], [0], [1], [0, 0, 1, 1], [], []>} : vector<10x384xbf16>, vector<384x128xbf16>, vector<10x128xf32> -> vector<10x128xf32>
    %7 = vector.broadcast %0 : vector<1x128xf32> to vector<10x128xf32>
    %8 = arith.addf %6, %7 : vector<10x128xf32>
    %cst_8 = arith.constant 5.000000e-01 : f32
    %9 = vector.broadcast %cst_8 : f32 to vector<10x128xf32>
    %10 = arith.mulf %9, %8 : vector<10x128xf32>
    %cst_9 = arith.constant 0.707106769 : f32
    %11 = vector.broadcast %cst_9 : f32 to vector<10x128xf32>
    %12 = arith.mulf %8, %11 : vector<10x128xf32>
    %13 = math.erf %12 : vector<10x128xf32>
    %cst_10 = arith.constant 1.000000e+00 : f32
    %14 = vector.broadcast %cst_10 : f32 to vector<10x128xf32>
    %15 = arith.addf %14, %13 : vector<10x128xf32>
    %16 = arith.mulf %10, %15 : vector<10x128xf32>
    %17 = arith.truncf %16 : vector<10x128xf32> to vector<10x128xbf16>
    %c0_11 = arith.constant 0 : index
    %c0_12 = arith.constant 0 : index
    %18 = vector.load %arg8[%c0_11, %c0_12] : memref<10x512xbf16, #tpu.memory_space<vmem>>, vector<10x128xbf16>
    tpu.vector_store %arg8[%c0_11, %c0_12], %17 {strides = array<i32>} : memref<10x512xbf16, #tpu.memory_space<vmem>>, vector<10x128xbf16>,
    %c0_13 = arith.constant 0 : index
    %c0_14 = arith.constant 0 : index
    %c128 = arith.constant 128 : index
    %19 = vector.load %arg2[%c0_13, %c0_14, %c128] : memref<1x16x512xbf16, #tpu.memory_space<vmem>>, vector<1x10x384xbf16>
    %20 = vector.shape_cast %19 : vector<1x10x384xbf16> to vector<10x384xbf16>
    %c0_15 = arith.constant 0 : index
    %c0_16 = arith.constant 0 : index
    %21 = vector.load %arg3[%c0_15, %c0_16] : memref<384x128xbf16, #tpu.memory_space<vmem>>, vector<384x128xbf16>
    %cst_17 = arith.constant dense<0.000000e+00> : vector<10x128xf32>
    %22 = tpu.matmul %20, %21, %cst_17 {dimension_numbers = #tpu.dot_dimension_numbers<[1], [0], [0], [1], [0, 0, 1, 1], [], []>} : vector<10x384xbf16>, vector<384x128xbf16>, vector<10x128xf32> -> vector<10x128xf32>
    %23 = vector.broadcast %0 : vector<1x128xf32> to vector<10x128xf32>
    %24 = arith.addf %22, %23 : vector<10x128xf32>
    %cst_18 = arith.constant 5.000000e-01 : f32
    %25 = vector.broadcast %cst_18 : f32 to vector<10x128xf32>
    %26 = arith.mulf %25, %24 : vector<10x128xf32>
    %cst_19 = arith.constant 0.707106769 : f32
    %27 = vector.broadcast %cst_19 : f32 to vector<10x128xf32>
    %28 = arith.mulf %24, %27 : vector<10x128xf32>
    %29 = math.erf %28 : vector<10x128xf32>
    %cst_20 = arith.constant 1.000000e+00 : f32
    %30 = vector.broadcast %cst_20 : f32 to vector<10x128xf32>
    %31 = arith.addf %30, %29 : vector<10x128xf32>
    %32 = arith.mulf %26, %31 : vector<10x128xf32>
    %33 = arith.truncf %32 : vector<10x128xf32> to vector<10x128xbf16>
    %c0_21 = arith.constant 0 : index
    %c128_22 = arith.constant 128 : index
    %34 = vector.load %arg8[%c0_21, %c128_22] : memref<10x512xbf16, #tpu.memory_space<vmem>>, vector<10x128xbf16>
    tpu.vector_store %arg8[%c0_21, %c128_22], %33 {strides = array<i32>} : memref<10x512xbf16, #tpu.memory_space<vmem>>, vector<10x128xbf16>,
    %c0_23 = arith.constant 0 : index
    %c0_24 = arith.constant 0 : index
    %c256 = arith.constant 256 : index
    %35 = vector.load %arg2[%c0_23, %c0_24, %c256] : memref<1x16x512xbf16, #tpu.memory_space<vmem>>, vector<1x10x256xbf16>
    %36 = vector.shape_cast %35 : vector<1x10x256xbf16> to vector<10x256xbf16>
    %c0_25 = arith.constant 0 : index
    %c0_26 = arith.constant 0 : index
    %37 = vector.load %arg3[%c0_25, %c0_26] : memref<384x128xbf16, #tpu.memory_space<vmem>>, vector<256x128xbf16>
    %cst_27 = arith.constant dense<0.000000e+00> : vector<10x128xf32>
    %38 = tpu.matmul %36, %37, %cst_27 {dimension_numbers = #tpu.dot_dimension_numbers<[1], [0], [0], [1], [0, 0, 1, 1], [], []>} : vector<10x256xbf16>, vector<256x128xbf16>, vector<10x128xf32> -> vector<10x128xf32>
    %c0_28 = arith.constant 0 : index
    %c1_29 = arith.constant 1 : index
    %c0_30 = arith.constant 0 : index
    %39 = vector.load %arg2[%c0_28, %c1_29, %c0_30] : memref<1x16x512xbf16, #tpu.memory_space<vmem>>, vector<1x10x128xbf16>
    %40 = vector.shape_cast %39 : vector<1x10x128xbf16> to vector<10x128xbf16>
    %c256_31 = arith.constant 256 : index
    %c0_32 = arith.constant 0 : index
    %41 = vector.load %arg3[%c256_31, %c0_32] : memref<384x128xbf16, #tpu.memory_space<vmem>>, vector<128x128xbf16>
    %cst_33 = arith.constant dense<0.000000e+00> : vector<10x128xf32>
    %42 = tpu.matmul %40, %41, %cst_33 {dimension_numbers = #tpu.dot_dimension_numbers<[1], [0], [0], [1], [0, 0, 1, 1], [], []>} : vector<10x128xbf16>, vector<128x128xbf16>, vector<10x128xf32> -> vector<10x128xf32>
    %43 = arith.addf %38, %42 : vector<10x128xf32>
    %44 = vector.broadcast %0 : vector<1x128xf32> to vector<10x128xf32>
    %45 = arith.addf %43, %44 : vector<10x128xf32>
    %cst_34 = arith.constant 5.000000e-01 : f32
    %46 = vector.broadcast %cst_34 : f32 to vector<10x128xf32>
    %47 = arith.mulf %46, %45 : vector<10x128xf32>
    %cst_35 = arith.constant 0.707106769 : f32
    %48 = vector.broadcast %cst_35 : f32 to vector<10x128xf32>
    %49 = arith.mulf %45, %48 : vector<10x128xf32>
    %50 = math.erf %49 : vector<10x128xf32>
    %cst_36 = arith.constant 1.000000e+00 : f32
    %51 = vector.broadcast %cst_36 : f32 to vector<10x128xf32>
    %52 = arith.addf %51, %50 : vector<10x128xf32>
    %53 = arith.mulf %47, %52 : vector<10x128xf32>
    %54 = arith.truncf %53 : vector<10x128xf32> to vector<10x128xbf16>
    %c0_37 = arith.constant 0 : index
    %c256_38 = arith.constant 256 : index
    %55 = vector.load %arg8[%c0_37, %c256_38] : memref<10x512xbf16, #tpu.memory_space<vmem>>, vector<10x128xbf16>
    tpu.vector_store %arg8[%c0_37, %c256_38], %54 {strides = array<i32>} : memref<10x512xbf16, #tpu.memory_space<vmem>>, vector<10x128xbf16>,
    %c0_39 = arith.constant 0 : index
    %c0_40 = arith.constant 0 : index
    %c384 = arith.constant 384 : index
    %56 = vector.load %arg2[%c0_39, %c0_40, %c384] : memref<1x16x512xbf16, #tpu.memory_space<vmem>>, vector<1x10x128xbf16>
    %57 = vector.shape_cast %56 : vector<1x10x128xbf16> to vector<10x128xbf16>
    %c0_41 = arith.constant 0 : index
    %c0_42 = arith.constant 0 : index
    %58 = vector.load %arg3[%c0_41, %c0_42] : memref<384x128xbf16, #tpu.memory_space<vmem>>, vector<128x128xbf16>
    %cst_43 = arith.constant dense<0.000000e+00> : vector<10x128xf32>
    %59 = tpu.matmul %57, %58, %cst_43 {dimension_numbers = #tpu.dot_dimension_numbers<[1], [0], [0], [1], [0, 0, 1, 1], [], []>} : vector<10x128xbf16>, vector<128x128xbf16>, vector<10x128xf32> -> vector<10x128xf32>
    %c0_44 = arith.constant 0 : index
    %c1_45 = arith.constant 1 : index
    %c0_46 = arith.constant 0 : index
    %60 = vector.load %arg2[%c0_44, %c1_45, %c0_46] : memref<1x16x512xbf16, #tpu.memory_space<vmem>>, vector<1x10x256xbf16>
    %61 = vector.shape_cast %60 : vector<1x10x256xbf16> to vector<10x256xbf16>
    %c128_47 = arith.constant 128 : index
    %c0_48 = arith.constant 0 : index
    %62 = vector.load %arg3[%c128_47, %c0_48] : memref<384x128xbf16, #tpu.memory_space<vmem>>, vector<256x128xbf16>
    %cst_49 = arith.constant dense<0.000000e+00> : vector<10x128xf32>
    %63 = tpu.matmul %61, %62, %cst_49 {dimension_numbers = #tpu.dot_dimension_numbers<[1], [0], [0], [1], [0, 0, 1, 1], [], []>} : vector<10x256xbf16>, vector<256x128xbf16>, vector<10x128xf32> -> vector<10x128xf32>
    %64 = arith.addf %59, %63 : vector<10x128xf32>
    %65 = vector.broadcast %0 : vector<1x128xf32> to vector<10x128xf32>
    %66 = arith.addf %64, %65 : vector<10x128xf32>
    %cst_50 = arith.constant 5.000000e-01 : f32
    %67 = vector.broadcast %cst_50 : f32 to vector<10x128xf32>
    %68 = arith.mulf %67, %66 : vector<10x128xf32>
    %cst_51 = arith.constant 0.707106769 : f32
    %69 = vector.broadcast %cst_51 : f32 to vector<10x128xf32>
    %70 = arith.mulf %66, %69 : vector<10x128xf32>
    %71 = math.erf %70 : vector<10x128xf32>
    %cst_52 = arith.constant 1.000000e+00 : f32
    %72 = vector.broadcast %cst_52 : f32 to vector<10x128xf32>
    %73 = arith.addf %72, %71 : vector<10x128xf32>
    %74 = arith.mulf %68, %73 : vector<10x128xf32>
    %75 = arith.truncf %74 : vector<10x128xf32> to vector<10x128xbf16>
    %c0_53 = arith.constant 0 : index
    %c384_54 = arith.constant 384 : index
    %76 = vector.load %arg8[%c0_53, %c384_54] : memref<10x512xbf16, #tpu.memory_space<vmem>>, vector<10x128xbf16>
    tpu.vector_store %arg8[%c0_53, %c384_54], %75 {strides = array<i32>} : memref<10x512xbf16, #tpu.memory_space<vmem>>, vector<10x128xbf16>,
    %c0_i32 = arith.constant 0 : i32
    %77 = arith.cmpi eq, %arg1, %c0_i32 : i32
    %78 = arith.extui %77 : i1 to i32
    %c0_i32_55 = arith.constant 0 : i32
    %79 = arith.cmpi ne, %78, %c0_i32_55 : i32
    scf.if %79 {
      %cst_99 = arith.constant 0.000000e+00 : bf16
      %138 = vector.broadcast %cst_99 : bf16 to vector<1x512xbf16>
      %c0_100 = arith.constant 0 : index
      %c0_101 = arith.constant 0 : index
      %139 = vector.load %arg8[%c0_100, %c0_101] : memref<10x512xbf16, #tpu.memory_space<vmem>>, vector<1x512xbf16>
      tpu.vector_store %arg8[%c0_100, %c0_101], %138 {strides = array<i32>} : memref<10x512xbf16, #tpu.memory_space<vmem>>, vector<1x512xbf16>,
      %cst_102 = arith.constant 0.000000e+00 : bf16
      %140 = vector.broadcast %cst_102 : bf16 to vector<1x256xbf16>
      %c1_103 = arith.constant 1 : index
      %c0_104 = arith.constant 0 : index
      %141 = vector.load %arg8[%c1_103, %c0_104] : memref<10x512xbf16, #tpu.memory_space<vmem>>, vector<1x256xbf16>
      tpu.vector_store %arg8[%c1_103, %c0_104], %140 {strides = array<i32>} : memref<10x512xbf16, #tpu.memory_space<vmem>>, vector<1x256xbf16>,
    } else {
    }
    %c0_56 = arith.constant 0 : index
    %c0_57 = arith.constant 0 : index
    %80 = vector.load %arg8[%c0_56, %c0_57] : memref<10x512xbf16, #tpu.memory_space<vmem>>, vector<9x384xbf16>
    %c0_58 = arith.constant 0 : index
    %c0_59 = arith.constant 0 : index
    %81 = vector.load %arg4[%c0_58, %c0_59] : memref<384x128xbf16, #tpu.memory_space<vmem>>, vector<384x128xbf16>
    %cst_60 = arith.constant dense<0.000000e+00> : vector<9x128xf32>
    %82 = tpu.matmul %80, %81, %cst_60 {dimension_numbers = #tpu.dot_dimension_numbers<[1], [0], [0], [1], [0, 0, 1, 1], [], []>} : vector<9x384xbf16>, vector<384x128xbf16>, vector<9x128xf32> -> vector<9x128xf32>
    %83 = vector.broadcast %1 : vector<1x128xf32> to vector<9x128xf32>
    %84 = arith.addf %82, %83 : vector<9x128xf32>
    %cst_61 = arith.constant 5.000000e-01 : f32
    %85 = vector.broadcast %cst_61 : f32 to vector<9x128xf32>
    %86 = arith.mulf %85, %84 : vector<9x128xf32>
    %cst_62 = arith.constant 0.707106769 : f32
    %87 = vector.broadcast %cst_62 : f32 to vector<9x128xf32>
    %88 = arith.mulf %84, %87 : vector<9x128xf32>
    %89 = math.erf %88 : vector<9x128xf32>
    %cst_63 = arith.constant 1.000000e+00 : f32
    %90 = vector.broadcast %cst_63 : f32 to vector<9x128xf32>
    %91 = arith.addf %90, %89 : vector<9x128xf32>
    %92 = arith.mulf %86, %91 : vector<9x128xf32>
    %93 = arith.truncf %92 : vector<9x128xf32> to vector<9x128xbf16>
    %c0_64 = arith.constant 0 : index
    %c0_65 = arith.constant 0 : index
    %94 = vector.load %arg9[%c0_64, %c0_65] : memref<9x256xbf16, #tpu.memory_space<vmem>>, vector<9x128xbf16>
    tpu.vector_store %arg9[%c0_64, %c0_65], %93 {strides = array<i32>} : memref<9x256xbf16, #tpu.memory_space<vmem>>, vector<9x128xbf16>,
    %c0_66 = arith.constant 0 : index
    %c256_67 = arith.constant 256 : index
    %95 = vector.load %arg8[%c0_66, %c256_67] : memref<10x512xbf16, #tpu.memory_space<vmem>>, vector<9x256xbf16>
    %c0_68 = arith.constant 0 : index
    %c0_69 = arith.constant 0 : index
    %96 = vector.load %arg4[%c0_68, %c0_69] : memref<384x128xbf16, #tpu.memory_space<vmem>>, vector<256x128xbf16>
    %cst_70 = arith.constant dense<0.000000e+00> : vector<9x128xf32>
    %97 = tpu.matmul %95, %96, %cst_70 {dimension_numbers = #tpu.dot_dimension_numbers<[1], [0], [0], [1], [0, 0, 1, 1], [], []>} : vector<9x256xbf16>, vector<256x128xbf16>, vector<9x128xf32> -> vector<9x128xf32>
    %c1_71 = arith.constant 1 : index
    %c0_72 = arith.constant 0 : index
    %98 = vector.load %arg8[%c1_71, %c0_72] : memref<10x512xbf16, #tpu.memory_space<vmem>>, vector<9x128xbf16>
    %c256_73 = arith.constant 256 : index
    %c0_74 = arith.constant 0 : index
    %99 = vector.load %arg4[%c256_73, %c0_74] : memref<384x128xbf16, #tpu.memory_space<vmem>>, vector<128x128xbf16>
    %cst_75 = arith.constant dense<0.000000e+00> : vector<9x128xf32>
    %100 = tpu.matmul %98, %99, %cst_75 {dimension_numbers = #tpu.dot_dimension_numbers<[1], [0], [0], [1], [0, 0, 1, 1], [], []>} : vector<9x128xbf16>, vector<128x128xbf16>, vector<9x128xf32> -> vector<9x128xf32>
    %101 = arith.addf %97, %100 : vector<9x128xf32>
    %102 = vector.broadcast %1 : vector<1x128xf32> to vector<9x128xf32>
    %103 = arith.addf %101, %102 : vector<9x128xf32>
    %cst_76 = arith.constant 5.000000e-01 : f32
    %104 = vector.broadcast %cst_76 : f32 to vector<9x128xf32>
    %105 = arith.mulf %104, %103 : vector<9x128xf32>
    %cst_77 = arith.constant 0.707106769 : f32
    %106 = vector.broadcast %cst_77 : f32 to vector<9x128xf32>
    %107 = arith.mulf %103, %106 : vector<9x128xf32>
    %108 = math.erf %107 : vector<9x128xf32>
    %cst_78 = arith.constant 1.000000e+00 : f32
    %109 = vector.broadcast %cst_78 : f32 to vector<9x128xf32>
    %110 = arith.addf %109, %108 : vector<9x128xf32>
    %111 = arith.mulf %105, %110 : vector<9x128xf32>
    %112 = arith.truncf %111 : vector<9x128xf32> to vector<9x128xbf16>
    %c0_79 = arith.constant 0 : index
    %c128_80 = arith.constant 128 : index
    %113 = vector.load %arg9[%c0_79, %c128_80] : memref<9x256xbf16, #tpu.memory_space<vmem>>, vector<9x128xbf16>
    tpu.vector_store %arg9[%c0_79, %c128_80], %112 {strides = array<i32>} : memref<9x256xbf16, #tpu.memory_space<vmem>>, vector<9x128xbf16>,
    %c0_i32_81 = arith.constant 0 : i32
    %114 = arith.cmpi eq, %arg1, %c0_i32_81 : i32
    %115 = arith.extui %114 : i1 to i32
    %c0_i32_82 = arith.constant 0 : i32
    %116 = arith.cmpi ne, %115, %c0_i32_82 : i32
    scf.if %116 {
      %cst_99 = arith.constant 0.000000e+00 : bf16
      %138 = vector.broadcast %cst_99 : bf16 to vector<1x256xbf16>
      %c0_100 = arith.constant 0 : index
      %c0_101 = arith.constant 0 : index
      %139 = vector.load %arg9[%c0_100, %c0_101] : memref<9x256xbf16, #tpu.memory_space<vmem>>, vector<1x256xbf16>
      tpu.vector_store %arg9[%c0_100, %c0_101], %138 {strides = array<i32>} : memref<9x256xbf16, #tpu.memory_space<vmem>>, vector<1x256xbf16>,
    } else {
    }
    %c0_83 = arith.constant 0 : index
    %c0_84 = arith.constant 0 : index
    %117 = vector.load %arg9[%c0_83, %c0_84] : memref<9x256xbf16, #tpu.memory_space<vmem>>, vector<8x256xbf16>
    %c0_85 = arith.constant 0 : index
    %c0_86 = arith.constant 0 : index
    %118 = vector.load %arg5[%c0_85, %c0_86] : memref<384x128xbf16, #tpu.memory_space<vmem>>, vector<256x128xbf16>
    %cst_87 = arith.constant dense<0.000000e+00> : vector<8x128xf32>
    %119 = tpu.matmul %117, %118, %cst_87 {dimension_numbers = #tpu.dot_dimension_numbers<[1], [0], [0], [1], [0, 0, 1, 1], [], []>} : vector<8x256xbf16>, vector<256x128xbf16>, vector<8x128xf32> -> vector<8x128xf32>
    %c1_88 = arith.constant 1 : index
    %c0_89 = arith.constant 0 : index
    %120 = vector.load %arg9[%c1_88, %c0_89] : memref<9x256xbf16, #tpu.memory_space<vmem>>, vector<8x128xbf16>
    %c256_90 = arith.constant 256 : index
    %c0_91 = arith.constant 0 : index
    %121 = vector.load %arg5[%c256_90, %c0_91] : memref<384x128xbf16, #tpu.memory_space<vmem>>, vector<128x128xbf16>
    %cst_92 = arith.constant dense<0.000000e+00> : vector<8x128xf32>
    %122 = tpu.matmul %120, %121, %cst_92 {dimension_numbers = #tpu.dot_dimension_numbers<[1], [0], [0], [1], [0, 0, 1, 1], [], []>} : vector<8x128xbf16>, vector<128x128xbf16>, vector<8x128xf32> -> vector<8x128xf32>
    %123 = arith.addf %119, %122 : vector<8x128xf32>
    %124 = vector.broadcast %2 : vector<1x128xf32> to vector<8x128xf32>
    %125 = arith.addf %123, %124 : vector<8x128xf32>
    %cst_93 = arith.constant 5.000000e-01 : f32
    %126 = vector.broadcast %cst_93 : f32 to vector<8x128xf32>
    %127 = arith.mulf %126, %125 : vector<8x128xf32>
    %cst_94 = arith.constant 0.707106769 : f32
    %128 = vector.broadcast %cst_94 : f32 to vector<8x128xf32>
    %129 = arith.mulf %125, %128 : vector<8x128xf32>
    %130 = math.erf %129 : vector<8x128xf32>
    %cst_95 = arith.constant 1.000000e+00 : f32
    %131 = vector.broadcast %cst_95 : f32 to vector<8x128xf32>
    %132 = arith.addf %131, %130 : vector<8x128xf32>
    %133 = arith.mulf %127, %132 : vector<8x128xf32>
    %134 = arith.truncf %133 : vector<8x128xf32> to vector<8x128xbf16>
    %c0_96 = arith.constant 0 : index
    %c0_97 = arith.constant 0 : index
    %c0_98 = arith.constant 0 : index
    %135 = vector.load %arg7[%c0_96, %c0_97, %c0_98] : memref<1x8x128xbf16, #tpu.memory_space<vmem>>, vector<1x8x128xbf16>
    %136 = vector.shape_cast %135 : vector<1x8x128xbf16> to vector<8x128xbf16>
    %137 = vector.shape_cast %134 : vector<8x128xbf16> to vector<1x8x128xbf16>
    tpu.vector_store %arg7[%c0_96, %c0_97, %c0_98], %137 {strides = array<i32>} : memref<1x8x128xbf16, #tpu.memory_space<vmem>>, vector<1x8x128xbf16>,
    return
  }
  func.func @transform_0(%arg0: i32, %arg1: i32) -> (i32, i32, i32) {
    %c1_i32 = arith.constant 1 : i32
    %0 = arith.muli %arg0, %c1_i32 : i32
    %1 = arith.addi %0, %arg1 : i32
    %c0_i32 = arith.constant 0 : i32
    %c0_i32_0 = arith.constant 0 : i32
    %c0_i32_1 = arith.constant 0 : i32
    return %1, %c0_i32, %c0_i32_0 : i32, i32, i32
  }
  func.func @transform_1(%arg0: i32, %arg1: i32) -> (i32, i32) {
    %c0_i32 = arith.constant 0 : i32
    %c0_i32_0 = arith.constant 0 : i32
    %c0_i32_1 = arith.constant 0 : i32
    return %c0_i32, %c0_i32_0 : i32, i32
  }
  func.func @transform_2(%arg0: i32, %arg1: i32) -> (i32, i32) {
    %c0_i32 = arith.constant 0 : i32
    %c0_i32_0 = arith.constant 0 : i32
    %c0_i32_1 = arith.constant 0 : i32
    return %c0_i32, %c0_i32_0 : i32, i32
  }
  func.func @transform_3(%arg0: i32, %arg1: i32) -> (i32, i32) {
    %c0_i32 = arith.constant 0 : i32
    %c0_i32_0 = arith.constant 0 : i32
    %c0_i32_1 = arith.constant 0 : i32
    return %c0_i32, %c0_i32_0 : i32, i32
  }
  func.func @transform_4(%arg0: i32, %arg1: i32) -> (i32, i32) {
    %c0_i32 = arith.constant 0 : i32
    %c0_i32_0 = arith.constant 0 : i32
    %c0_i32_1 = arith.constant 0 : i32
    return %c0_i32, %c0_i32_0 : i32, i32
  }
  func.func @transform_5(%arg0: i32, %arg1: i32) -> (i32, i32, i32) {
    %c0_i32 = arith.constant 0 : i32
    %c0_i32_0 = arith.constant 0 : i32
    return %arg0, %arg1, %c0_i32 : i32, i32, i32
  }
}

</mosaic_0001>

<llo_original>
// kernel: tpu_custom_call.1
$region0: #{tpu_custom_call.1}
  #allocation0 [shape = 'u32[]', space=smem, size = 0x4, offset = 0x4, fixed_abs, tag = 'smem constant byte address 0x4 - core index']
  #allocation1 [shape = 'u32[144,128]{1,0:T(1,128)}', space=vmem, size = 0x12000, scoped, tag = 'internal scratch']
  #allocation2 [shape = 'bf16[10,512]{1,0:T(8,128)(2,1)}', space=vmem, size = 0x4000, scoped, tag = 'scratch operand']
  #allocation3 [shape = 'bf16[9,256]{1,0:T(8,128)(2,1)}', space=vmem, size = 0x2000, scoped, tag = 'scratch operand']
  %s0 = inlined_call_operand.hbm [shape: bf16[2,16,512], index: 0, kind: input, shape index: {}]
  %s1 = inlined_call_operand.hbm [shape: bf16[384,128], index: 1, kind: input, shape index: {}]
  %s2 = inlined_call_operand.hbm [shape: bf16[384,128], index: 2, kind: input, shape index: {}]
  %s3 = inlined_call_operand.hbm [shape: bf16[384,128], index: 3, kind: input, shape index: {}]
  %s4 = inlined_call_operand.vmem [shape: f32[3,128], index: 4, kind: input, shape index: {}]
  %s5 = inlined_call_operand.hbm [shape: bf16[2,8,128], index: 5, kind: output, shape index: {}]
  %s6 = sld [smem:[#allocation0]]
  $region77: #{tpu_custom_call.1} parent=0
    _
  %s8 = ssub.s32 1, %s6
  %s9 = scalar_select 0, %s8, %s6
  $region1: #{tpu_custom_call.1} parent=0
    #allocation4 [shape = 'u8[32768]{0}', space=vmem, size = 0x8000, scoped, tag = 'input window, operand 0']
    #allocation5 [shape = 's32[2]{0}', space=sflag, size = 0x8, scoped, tag = 'scoped memory for tpu_custom_call.1']
    #allocation6 [shape = 's32[2]{0}', space=sflag, size = 0x8, scoped, tag = 'scoped memory for tpu_custom_call.1']
    #allocation7 [shape = 'u8[98304]{0}', space=vmem, size = 0x18000, scoped, tag = 'input window, operand 1, single buffered']
    #allocation8 [shape = 's32[1]{0}', space=sflag, size = 0x4, scoped, tag = 'scoped memory for tpu_custom_call.1']
    #allocation9 [shape = 'u8[98304]{0}', space=vmem, size = 0x18000, scoped, tag = 'input window, operand 2, single buffered']
    #allocation10 [shape = 'u8[98304]{0}', space=vmem, size = 0x18000, scoped, tag = 'input window, operand 3, single buffered']
    #allocation11 [shape = 's32[1]{0}', space=sflag, size = 0x4, scoped, tag = 'scoped memory for tpu_custom_call.1']
    #allocation12 [shape = 'u8[4096]{0}', space=vmem, size = 0x1000, scoped, tag = 'output window, operand 0']
    %10 = vsyncpa [#allocation5], 0
    %s11 = scalar_lea.sflag [#allocation5], 1
    %12 = vsyncpa %s11, 0
    %13 = vsyncpa [#allocation8], 0
    %14 = vsyncpa [#allocation11], 0
    %15 = vsyncpa [#allocation6], 0
    %s16 = scalar_lea.sflag [#allocation6], 1
    %17 = vsyncpa %s16, 0
    loop: start=0, step=1, limit=4
    $region2: #{tpu_custom_call.1} parent=1 // loop_pre_header
      _
    $region3: #{tpu_custom_call.1} parent=1 // loop_header
      %s19 = sphi 0, %s23
      %p20 = scmp.ge.s32.totalorder %s19, 4
      %s26 = sphi 0, %s38
      %s27 = sphi 0, %s34
      %s28 = sphi 0, %s26
      %s29 = sphi 0, %s27
      %s30 = sphi 0, %s28
      %s31 = sphi 0, %s29
      %s43 = sphi 0, %s45
      %s46 = sphi 0, %s43
      %s47 = sphi 0, %s46
      %s63 = sphi 0, %s47
      %s67 = sphi 0, %s67
      %s69 = sphi 0, %s67
      %s70 = sphi 0, %s69
      %s84 = sphi 0, %s70
      %s88 = sphi 0, %s88
      %s90 = sphi 0, %s88
      %s91 = sphi 0, %s90
      %s105 = sphi 0, %s91
      %s109 = sphi 0, %s109
      %s111 = sphi 0, %s109
      %s112 = sphi 0, %s111
      %s126 = sphi 0, %s112
      %s130 = sphi 0, %s130
      %s132 = sphi 0, %s130
      %s133 = sphi 0, %s132
      %s147 = sphi 0, %s133
      %s155 = sphi 0, %s157
      %s158 = sphi 0, %s155
      %s159 = sphi 0, %s158
      %s175 = sphi 0, %s159
    $region4: #{tpu_custom_call.1} parent=1 // loop_header_branch
      %22 = sbr.rel (%p20) target = $region8
    $region5: #{tpu_custom_call.1} parent=1 // loop_body
      %s24 = ssub.s32 %s19, 1
      %s25 = ssub.s32 %s19, 2
      %s32 = sadd.s32 1, %s27
      %p33 = scmp.ge.s32.totalorder %s32, 1
      %s34 = scalar_select %p33, 0, %s32
      %s35 = sadd.s32 1, %s26
      %s36 = scalar_select %p33, %s35, %s26
      %p37 = scmp.ge.s32.totalorder %s36, 2
      %s38 = scalar_select %p37, 0, %s36
      %s39 = sadd.s32 %s26, %s27
      %s40 = sadd.s32 %s38, %s34
      %s41 = ssub.s32 %s39, %s40
      %p42 = scmp.eq.s32.totalorder %s41, 0
      %s44 = sadd.s32 %s43, 1
      %s45 = scalar_select %p42, %s43, %s44
      %p48 = pneg %p42
      %p49 = scmp.eq.s32.totalorder %s19, 1
      %p50 = por %p48, %p49
      %p51 = scmp.ne.s32.totalorder %s43, %s46
      %p52 = scmp.eq.s32.totalorder %s19, 0
      %p53 = por %p51, %p52
      %p54 = scmp.ne.s32.totalorder %s43, %s46
      %p55 = scmp.eq.s32.totalorder %s24, 1
      %p56 = por %p54, %p55
      %p57 = scmp.ne.s32.totalorder %s46, %s47
      %p58 = scmp.eq.s32.totalorder %s24, 0
      %p59 = por %p57, %p58
      %p60 = scmp.ne.s32.totalorder %s46, %s47
      %p61 = scmp.eq.s32.totalorder %s25, 1
      %p62 = por %p60, %p61
      %p64 = scmp.ne.s32.totalorder %s47, %s63
      %p65 = scmp.eq.s32.totalorder %s25, 0
      %p66 = por %p64, %p65
      %s68 = sadd.s32 %s67, 1
      %p71 = scmp.eq.s32.totalorder %s19, 1
      %p72 = scmp.ne.s32.totalorder %s67, %s69
      %p73 = scmp.eq.s32.totalorder %s19, 0
      %p74 = por %p72, %p73
      %p75 = scmp.ne.s32.totalorder %s67, %s69
      %p76 = scmp.eq.s32.totalorder %s24, 1
      %p77 = por %p75, %p76
      %p78 = scmp.ne.s32.totalorder %s69, %s70
      %p79 = scmp.eq.s32.totalorder %s24, 0
      %p80 = por %p78, %p79
      %p81 = scmp.ne.s32.totalorder %s69, %s70
      %p82 = scmp.eq.s32.totalorder %s25, 1
      %p83 = por %p81, %p82
      %p85 = scmp.ne.s32.totalorder %s70, %s84
      %p86 = scmp.eq.s32.totalorder %s25, 0
      %p87 = por %p85, %p86
      %s89 = sadd.s32 %s88, 1
      %p92 = scmp.eq.s32.totalorder %s19, 1
      %p93 = scmp.ne.s32.totalorder %s88, %s90
      %p94 = scmp.eq.s32.totalorder %s19, 0
      %p95 = por %p93, %p94
      %p96 = scmp.ne.s32.totalorder %s88, %s90
      %p97 = scmp.eq.s32.totalorder %s24, 1
      %p98 = por %p96, %p97
      %p99 = scmp.ne.s32.totalorder %s90, %s91
      %p100 = scmp.eq.s32.totalorder %s24, 0
      %p101 = por %p99, %p100
      %p102 = scmp.ne.s32.totalorder %s90, %s91
      %p103 = scmp.eq.s32.totalorder %s25, 1
      %p104 = por %p102, %p103
      %p106 = scmp.ne.s32.totalorder %s91, %s105
      %p107 = scmp.eq.s32.totalorder %s25, 0
      %p108 = por %p106, %p107
      %s110 = sadd.s32 %s109, 1
      %p113 = scmp.eq.s32.totalorder %s19, 1
      %p114 = scmp.ne.s32.totalorder %s109, %s111
      %p115 = scmp.eq.s32.totalorder %s19, 0
      %p116 = por %p114, %p115
      %p117 = scmp.ne.s32.totalorder %s109, %s111
      %p118 = scmp.eq.s32.totalorder %s24, 1
      %p119 = por %p117, %p118
      %p120 = scmp.ne.s32.totalorder %s111, %s112
      %p121 = scmp.eq.s32.totalorder %s24, 0
      %p122 = por %p120, %p121
      %p123 = scmp.ne.s32.totalorder %s111, %s112
      %p124 = scmp.eq.s32.totalorder %s25, 1
      %p125 = por %p123, %p124
      %p127 = scmp.ne.s32.totalorder %s112, %s126
      %p128 = scmp.eq.s32.totalorder %s25, 0
      %p129 = por %p127, %p128
      %s131 = sadd.s32 %s130, 1
      %p134 = scmp.eq.s32.totalorder %s19, 1
      %p135 = scmp.ne.s32.totalorder %s130, %s132
      %p136 = scmp.eq.s32.totalorder %s19, 0
      %p137 = por %p135, %p136
      %p138 = scmp.ne.s32.totalorder %s130, %s132
      %p139 = scmp.eq.s32.totalorder %s24, 1
      %p140 = por %p138, %p139
      %p141 = scmp.ne.s32.totalorder %s132, %s133
      %p142 = scmp.eq.s32.totalorder %s24, 0
      %p143 = por %p141, %p142
      %p144 = scmp.ne.s32.totalorder %s132, %s133
      %p145 = scmp.eq.s32.totalorder %s25, 1
      %p146 = por %p144, %p145
      %p148 = scmp.ne.s32.totalorder %s133, %s147
      %p149 = scmp.eq.s32.totalorder %s25, 0
      %p150 = por %p148, %p149
      %s151 = ssub.s32 %s26, %s38
      %s152 = ssub.s32 %s27, %s34
      %s153 = sor.u32 %s151, %s152
      %p154 = scmp.eq.s32.totalorder %s153, 0
      %s156 = sadd.s32 %s155, 1
      %s157 = scalar_select %p154, %s155, %s156
      %p160 = pneg %p154
      %p161 = scmp.eq.s32.totalorder %s19, 1
      %p162 = por %p160, %p161
      %p163 = scmp.ne.s32.totalorder %s155, %s158
      %p164 = scmp.eq.s32.totalorder %s19, 0
      %p165 = por %p163, %p164
      %p166 = scmp.ne.s32.totalorder %s155, %s158
      %p167 = scmp.eq.s32.totalorder %s24, 1
      %p168 = por %p166, %p167
      %p169 = scmp.ne.s32.totalorder %s158, %s159
      %p170 = scmp.eq.s32.totalorder %s24, 0
      %p171 = por %p169, %p170
      %p172 = scmp.ne.s32.totalorder %s158, %s159
      %p173 = scmp.eq.s32.totalorder %s25, 1
      %p174 = por %p172, %p173
      %p176 = scmp.ne.s32.totalorder %s159, %s175
      %p177 = scmp.eq.s32.totalorder %s25, 0
      %p178 = por %p176, %p177
      %p179 = scmp.le.s32.totalorder 1, %s19
      %p180 = scmp.lt.s32.totalorder %s19, 3
      %p181 = pnand %p179, %p180
      %p182 = pneg %p181
      // Predicated region
      $region9: #{tpu_custom_call.1} parent=5 // pred_check
        _
      $region10: #{tpu_custom_call.1} parent=5 // pred_check_branch
        %184 = sbr.rel (%p181) target = $region12
      $region11: #{tpu_custom_call.1} parent=5 // pred_region
        %s185 = ssub.s32 %s19, 1
        // Predicated region
        $region13: #{tpu_custom_call.1} parent=11 // pred_check
          %p186 = pneg %p80
        $region14: #{tpu_custom_call.1} parent=11 // pred_check_branch
          %188 = sbr.rel (%p186) target = $region16
        $region15: #{tpu_custom_call.1} parent=11 // pred_region
          %s190 = ssub.s32 3072, 3072
          %191 = vsyncadd [#allocation8], %s190
          %s192 = sshll.u32 [#allocation7], 4
          %s193 = int_to_ptr.vmem [resolvable:$true] %s192
          %198 = dma.hbm_to_vmem [thread:$0]  %s1, 3072, %s193, [#allocation8], 64, 64, 4
        $region16: #{tpu_custom_call.1} parent=11 // pred_fallthru
          _
        // Predicated region
        $region17: #{tpu_custom_call.1} parent=11 // pred_check
          %p199 = pneg %p101
        $region18: #{tpu_custom_call.1} parent=11 // pred_check_branch
          %201 = sbr.rel (%p199) target = $region20
        $region19: #{tpu_custom_call.1} parent=11 // pred_region
          %s203 = ssub.s32 3072, 3072
          %204 = vsyncadd [#allocation8], %s203
          %s205 = sshll.u32 [#allocation9], 4
          %s206 = int_to_ptr.vmem [resolvable:$true] %s205
          %211 = dma.hbm_to_vmem [thread:$0]  %s2, 3072, %s206, [#allocation8], 64, 64, 4
        $region20: #{tpu_custom_call.1} parent=11 // pred_fallthru
          _
        // Predicated region
        $region21: #{tpu_custom_call.1} parent=11 // pred_check
          %p212 = pneg %p122
        $region22: #{tpu_custom_call.1} parent=11 // pred_check_branch
          %214 = sbr.rel (%p212) target = $region24
        $region23: #{tpu_custom_call.1} parent=11 // pred_region
          %s216 = ssub.s32 3072, 3072
          %217 = vsyncadd [#allocation11], %s216
          %s218 = sshll.u32 [#allocation10], 4
          %s219 = int_to_ptr.vmem [resolvable:$true] %s218
          %224 = dma.hbm_to_vmem [thread:$0]  %s3, 3072, %s219, [#allocation11], 64, 64, 4
        $region24: #{tpu_custom_call.1} parent=11 // pred_fallthru
          _
        // Predicated region
        $region25: #{tpu_custom_call.1} parent=11 // pred_check
          %p225 = pneg %p143
        $region26: #{tpu_custom_call.1} parent=11 // pred_check_branch
          %227 = sbr.rel (%p225) target = $region28
        $region27: #{tpu_custom_call.1} parent=11 // pred_region
          _
        $region28: #{tpu_custom_call.1} parent=11 // pred_fallthru
          _
      $region12: #{tpu_custom_call.1} parent=5 // pred_fallthru
        _
      %p228 = scmp.lt.s32.totalorder %s19, 2
      // Predicated region
      $region29: #{tpu_custom_call.1} parent=5 // pred_check
        %p229 = pneg %p228
      $region30: #{tpu_custom_call.1} parent=5 // pred_check_branch
        %231 = sbr.rel (%p229) target = $region32
      $region31: #{tpu_custom_call.1} parent=5 // pred_region
        // Predicated region
        $region33: #{tpu_custom_call.1} parent=31 // pred_check
          %p232 = pneg %p53
        $region34: #{tpu_custom_call.1} parent=31 // pred_check_branch
          %234 = sbr.rel (%p232) target = $region36
        $region35: #{tpu_custom_call.1} parent=31 // pred_region
          %s235 = sand.u32 %s43, 1
          %s236 = scalar_lea.sflag [#allocation5], %s235
          %s237 = sand.u32 %s43, 1
          %s238 = smul.addr %s237, 32
          %s239 = scalar_lea.vmem [#allocation4], %s238
          %s240 = sadd.s32 %s26, %s27
          %s242 = ssub.s32 512, 512
          %243 = vsyncadd %s236, %s242
          %s244 = smul.addr %s240, 8
          %s245 = smul.addr %s244, 64
          %s246 = scalar_lea.hbm %s0, %s245
          %s247 = sshll.u32 %s239, 4
          %s248 = int_to_ptr.vmem [resolvable:$true] %s247
          %253 = dma.hbm_to_vmem [thread:$0]  %s246, 512, %s248, %s236, 256, 256, 16
        $region36: #{tpu_custom_call.1} parent=31 // pred_fallthru
          _
      $region32: #{tpu_custom_call.1} parent=5 // pred_fallthru
        _
      %p254 = scmp.le.s32.totalorder 1, %s19
      %p255 = scmp.lt.s32.totalorder %s19, 3
      %p256 = pnand %p254, %p255
      %p257 = pneg %p256
      // Predicated region
      $region37: #{tpu_custom_call.1} parent=5 // pred_check
        _
      $region38: #{tpu_custom_call.1} parent=5 // pred_check_branch
        %259 = sbr.rel (%p256) target = $region40
      $region39: #{tpu_custom_call.1} parent=5 // pred_region
        %s260 = ssub.s32 %s19, 1
        %s261 = sand.u32 %s46, 1
        %s262 = scalar_lea.sflag [#allocation5], %s261
        %s263 = sand.u32 %s46, 1
        %s264 = smul.addr %s263, 32
        %s265 = scalar_lea.vmem [#allocation4], %s264
        // Predicated region
        $region41: #{tpu_custom_call.1} parent=39 // pred_check
          %p266 = pneg %p59
        $region42: #{tpu_custom_call.1} parent=39 // pred_check_branch
          %268 = sbr.rel (%p266) target = $region44
        $region43: #{tpu_custom_call.1} parent=39 // pred_region
          %269 = dma.done %s262, 512
        $region44: #{tpu_custom_call.1} parent=39 // pred_fallthru
          _
        // Predicated region
        $region45: #{tpu_custom_call.1} parent=39 // pred_check
          %p270 = pneg %p80
        $region46: #{tpu_custom_call.1} parent=39 // pred_check_branch
          %272 = sbr.rel (%p270) target = $region48
        $region47: #{tpu_custom_call.1} parent=39 // pred_region
          %273 = dma.done [#allocation8], 3072
        $region48: #{tpu_custom_call.1} parent=39 // pred_fallthru
          _
        // Predicated region
        $region49: #{tpu_custom_call.1} parent=39 // pred_check
          %p274 = pneg %p101
        $region50: #{tpu_custom_call.1} parent=39 // pred_check_branch
          %276 = sbr.rel (%p274) target = $region52
        $region51: #{tpu_custom_call.1} parent=39 // pred_region
          %277 = dma.done [#allocation8], 3072
        $region52: #{tpu_custom_call.1} parent=39 // pred_fallthru
          _
        // Predicated region
        $region53: #{tpu_custom_call.1} parent=39 // pred_check
          %p278 = pneg %p122
        $region54: #{tpu_custom_call.1} parent=39 // pred_check_branch
          %280 = sbr.rel (%p278) target = $region56
        $region55: #{tpu_custom_call.1} parent=39 // pred_region
          %281 = dma.done [#allocation11], 3072
        $region56: #{tpu_custom_call.1} parent=39 // pred_fallthru
          _
        %s282 = sand.u32 %s46, 1
        %s283 = scalar_lea.sflag [#allocation5], %s282
        %s284 = sand.u32 %s46, 1
        %s285 = smul.addr %s284, 32
        %s286 = scalar_lea.vmem [#allocation4], %s285
        %p287 = pneg %p59
        %p288 = pneg %p56
        %p289 = pneg %p80
        %p290 = pneg %p77
        %p291 = pneg %p101
        %p292 = pneg %p98
        %p293 = pneg %p122
        %p294 = pneg %p119
        %p295 = pneg %p143
        %p296 = pneg %p140
        %p297 = pneg %p171
        %p298 = pneg %p168
        %s299 = sand.u32 %s158, 1
        %s300 = scalar_lea.sflag [#allocation6], %s299
        %s301 = sand.u32 %s158, 1
        %s302 = smul.addr %s301, 4
        %s303 = scalar_lea.vmem [#allocation12], %s302
        %s304 = sadd.s32 %s28, %s29
        %v306 = vld [vmem:[%s4] sm:$0x1]
        %v307 = vld [vmem:[%s4 + $0x1] sm:$0x1]
        %v308 = vld [vmem:[%s4 + $0x2] sm:$0x1]
        %v309 = vld [vmem:[%s265] sm:$0xff]
        %v310 = vld [vmem:[%s265 + $0x8] sm:$0xf]
        %v311 = vld [vmem:[%s265 + $0x10] sm:$0x11]
        %v312 = vld [vmem:[%s265 + $0x18] sm:$0x1]
        %v313 = vld [vmem:[#allocation7] sm:$0xf]
        %v314 = vld [vmem:[#allocation7 + $0x4] sm:$0xf]
        %v315 = vld [vmem:[#allocation7 + $0x8] sm:$0xf]
        %v316 = vld [vmem:[#allocation7 + $0xc] sm:$0xf]
        %v317 = vld [vmem:[#allocation7 + $0x10] sm:$0xf]
        %v318 = vld [vmem:[#allocation7 + $0x14] sm:$0xf]
        %v319 = vld [vmem:[#allocation7 + $0x18] sm:$0xf]
        %v320 = vld [vmem:[#allocation7 + $0x1c] sm:$0xf]
        %v321 = vld [vmem:[#allocation7 + $0x20] sm:$0xf]
        %v322 = vld [vmem:[#allocation7 + $0x24] sm:$0xf]
        %v323 = vld [vmem:[#allocation7 + $0x28] sm:$0xf]
        %v324 = vld [vmem:[#allocation7 + $0x2c] sm:$0xf]
        %v325 = vld [vmem:[#allocation7 + $0x30] sm:$0xf]
        %v326 = vld [vmem:[#allocation7 + $0x34] sm:$0xf]
        %v327 = vld [vmem:[#allocation7 + $0x38] sm:$0xf]
        %v328 = vld [vmem:[#allocation7 + $0x3c] sm:$0xf]
        %v329 = vld [vmem:[#allocation7 + $0x40] sm:$0xf]
        %v330 = vld [vmem:[#allocation7 + $0x44] sm:$0xf]
        %v331 = vld [vmem:[#allocation7 + $0x48] sm:$0xf]
        %v332 = vld [vmem:[#allocation7 + $0x4c] sm:$0xf]
        %v333 = vld [vmem:[#allocation7 + $0x50] sm:$0xf]
        %v334 = vld [vmem:[#allocation7 + $0x54] sm:$0xf]
        %v335 = vld [vmem:[#allocation7 + $0x58] sm:$0xf]
        %v336 = vld [vmem:[#allocation7 + $0x5c] sm:$0xf]
        %v337 = vld [vmem:[#allocation7 + $0x60] sm:$0xf]
        %v338 = vld [vmem:[#allocation7 + $0x64] sm:$0xf]
        %v339 = vld [vmem:[#allocation7 + $0x68] sm:$0xf]
        %v340 = vld [vmem:[#allocation7 + $0x6c] sm:$0xf]
        %v341 = vld [vmem:[#allocation7 + $0x70] sm:$0xf]
        %v342 = vld [vmem:[#allocation7 + $0x74] sm:$0xf]
        %v343 = vld [vmem:[#allocation7 + $0x78] sm:$0xf]
        %v344 = vld [vmem:[#allocation7 + $0x7c] sm:$0xf]
        %v345 = vld [vmem:[#allocation7 + $0x80] sm:$0xf]
        %v346 = vld [vmem:[#allocation7 + $0x84] sm:$0xf]
        %v347 = vld [vmem:[#allocation7 + $0x88] sm:$0xf]
        %v348 = vld [vmem:[#allocation7 + $0x8c] sm:$0xf]
        %v349 = vld [vmem:[#allocation7 + $0x90] sm:$0xf]
        %v350 = vld [vmem:[#allocation7 + $0x94] sm:$0xf]
        %v351 = vld [vmem:[#allocation7 + $0x98] sm:$0xf]
        %v352 = vld [vmem:[#allocation7 + $0x9c] sm:$0xf]
        %v353 = vld [vmem:[#allocation7 + $0xa0] sm:$0xf]
        %v354 = vld [vmem:[#allocation7 + $0xa4] sm:$0xf]
        %v355 = vld [vmem:[#allocation7 + $0xa8] sm:$0xf]
        %v356 = vld [vmem:[#allocation7 + $0xac] sm:$0xf]
        %v357 = vld [vmem:[#allocation7 + $0xb0] sm:$0xf]
        %v358 = vld [vmem:[#allocation7 + $0xb4] sm:$0xf]
        %v359 = vld [vmem:[#allocation7 + $0xb8] sm:$0xf]
        %v360 = vld [vmem:[#allocation7 + $0xbc] sm:$0xf]
        %v361 = vlaneseq
        %v362 = vshrl.u32 %v361, 7
        %v363 = vsub.s32 0, %v362
        %v364 = vrot.slane %v306, %v363
        %v369 = vunpack.c.l.b16 %v309
        %v370 = vunpack.c.h.b16 %v309
        %v371 = vunpack.c.l.b16 %v310
        %v372 = vunpack.c.l.b16 %v311
        %v373 = vunpack.c.h.b16 %v311
        %v374 = vunpack.c.l.b16 %v312
        %v375 = vpack.c.b16 %v372, %v369
        %v376 = vpack.c.b16 %v373, %v370
        %v377 = vpack.c.b16 %v374, %v371
        %v429 = vunpack.c.l.b16 %v313
        %v430 = vunpack.c.l.b16 %v314
        %v431 = vunpack.c.l.b16 %v315
        %v432 = vunpack.c.l.b16 %v316
        %v433 = vunpack.c.l.b16 %v317
        %v434 = vunpack.c.l.b16 %v318
        %v435 = vunpack.c.l.b16 %v319
        %v436 = vunpack.c.l.b16 %v320
        %v437 = vunpack.c.l.b16 %v321
        %v438 = vunpack.c.l.b16 %v322
        %v439 = vunpack.c.l.b16 %v323
        %v440 = vunpack.c.l.b16 %v324
        %v441 = vunpack.c.l.b16 %v325
        %v442 = vunpack.c.l.b16 %v326
        %v443 = vunpack.c.l.b16 %v327
        %v444 = vunpack.c.l.b16 %v328
        %v445 = vunpack.c.l.b16 %v329
        %v446 = vunpack.c.l.b16 %v330
        %v447 = vunpack.c.l.b16 %v331
        %v448 = vunpack.c.l.b16 %v332
        %v449 = vunpack.c.l.b16 %v333
        %v450 = vunpack.c.l.b16 %v334
        %v451 = vunpack.c.l.b16 %v335
        %v452 = vunpack.c.l.b16 %v336
        %v453 = vunpack.c.l.b16 %v337
        %v454 = vunpack.c.l.b16 %v338
        %v455 = vunpack.c.l.b16 %v339
        %v456 = vunpack.c.l.b16 %v340
        %v457 = vunpack.c.l.b16 %v341
        %v458 = vunpack.c.l.b16 %v342
        %v459 = vunpack.c.l.b16 %v343
        %v460 = vunpack.c.l.b16 %v344
        %v461 = vunpack.c.l.b16 %v345
        %v462 = vunpack.c.l.b16 %v346
        %v463 = vunpack.c.l.b16 %v347
        %v464 = vunpack.c.l.b16 %v348
        %v465 = vunpack.c.l.b16 %v349
        %v466 = vunpack.c.l.b16 %v350
        %v467 = vunpack.c.l.b16 %v351
        %v468 = vunpack.c.l.b16 %v352
        %v469 = vunpack.c.l.b16 %v353
        %v470 = vunpack.c.l.b16 %v354
        %v471 = vunpack.c.l.b16 %v355
        %v472 = vunpack.c.l.b16 %v356
        %v473 = vunpack.c.l.b16 %v357
        %v474 = vunpack.c.l.b16 %v358
        %v475 = vunpack.c.l.b16 %v359
        %v476 = vunpack.c.l.b16 %v360
        %v477 = vpack.c.b16 %v430, %v429
        %v478 = vpack.c.b16 %v432, %v431
        %v479 = vpack.c.b16 %v434, %v433
        %v480 = vpack.c.b16 %v436, %v435
        %v481 = vpack.c.b16 %v438, %v437
        %v482 = vpack.c.b16 %v440, %v439
        %v483 = vpack.c.b16 %v442, %v441
        %v484 = vpack.c.b16 %v444, %v443
        %v485 = vpack.c.b16 %v446, %v445
        %v486 = vpack.c.b16 %v448, %v447
        %v487 = vpack.c.b16 %v450, %v449
        %v488 = vpack.c.b16 %v452, %v451
        %v489 = vpack.c.b16 %v454, %v453
        %v490 = vpack.c.b16 %v456, %v455
        %v491 = vpack.c.b16 %v458, %v457
        %v492 = vpack.c.b16 %v460, %v459
        %v493 = vpack.c.b16 %v462, %v461
        %v494 = vpack.c.b16 %v464, %v463
        %v495 = vpack.c.b16 %v466, %v465
        %v496 = vpack.c.b16 %v468, %v467
        %v497 = vpack.c.b16 %v470, %v469
        %v498 = vpack.c.b16 %v472, %v471
        %v499 = vpack.c.b16 %v474, %v473
        %v500 = vpack.c.b16 %v476, %v475
        %525 = vmatprep.subr.bf16.mxu0 0
        %526 = vmatpush1.bf16.msra.mxu0 %v484
        %527 = vmatprep.subr.bf16.mxu0 0
        %528 = vmatpush1.bf16.msra.mxu0 %v483
        %529 = vmatprep.subr.bf16.mxu0 0
        %530 = vmatpush1.bf16.msra.mxu0 %v482
        %531 = vmatprep.subr.bf16.mxu0 0
        %532 = vmatpush1.bf16.msra.mxu0 %v481
        %533 = vmatprep.subr.bf16.mxu0 0
        %534 = vmatpush1.bf16.msra.mxu0 %v480
        %535 = vmatprep.subr.bf16.mxu0 0
        %536 = vmatpush1.bf16.msra.mxu0 %v479
        %537 = vmatprep.subr.bf16.mxu0 0
        %538 = vmatpush1.bf16.msra.mxu0 %v478
        %539 = vmatprep.subr.bf16.mxu0 0
        %540 = vmatpush1.bf16.msra.mxu0 %v477
        %541 = vmatprep.subr.bf16.mxu0 0
        %542 = vmatpush2.bf16.msra.mxu0 %v492
        %543 = vmatprep.subr.bf16.mxu0 0
        %544 = vmatpush2.bf16.msra.mxu0 %v491
        %545 = vmatprep.subr.bf16.mxu0 0
        %546 = vmatpush2.bf16.msra.mxu0 %v490
        %547 = vmatprep.subr.bf16.mxu0 0
        %548 = vmatpush2.bf16.msra.mxu0 %v489
        %549 = vmatprep.subr.bf16.mxu0 0
        %550 = vmatpush2.bf16.msra.mxu0 %v488
        %551 = vmatprep.subr.bf16.mxu0 0
        %552 = vmatpush2.bf16.msra.mxu0 %v487
        %553 = vmatprep.subr.bf16.mxu0 0
        %554 = vmatpush2.bf16.msra.mxu0 %v486
        %555 = vmatprep.subr.bf16.mxu0 0
        %556 = vmatpush2.bf16.msra.mxu0 %v485
        %557 = vmatprep.mubr.bf16.mxu0 %v376
        %558 = vmatmul.mubr.bf16.gmra.mxu0 %v375
        %v559 = vpop.f32.mrf.mxu0
        %v560 = vadd.f32 %v364, %v559
        %v561 = vpop.f32.mrf.mxu0
        %v562 = vpop.f32.mrf.mxu0
        %v563 = vadd.f32 %v364, %v562
        %v564 = vpop.f32.mrf.mxu0
        %565 = vdwg.mxu0
        %566 = vmatprep.subr.bf16.mxu0 0
        %567 = vmatpush1.bf16.msra.mxu0 %v500
        %568 = vmatprep.subr.bf16.mxu0 0
        %569 = vmatpush1.bf16.msra.mxu0 %v499
        %570 = vmatprep.subr.bf16.mxu0 0
        %571 = vmatpush1.bf16.msra.mxu0 %v498
        %572 = vmatprep.subr.bf16.mxu0 0
        %573 = vmatpush1.bf16.msra.mxu0 %v497
        %574 = vmatprep.subr.bf16.mxu0 0
        %575 = vmatpush1.bf16.msra.mxu0 %v496
        %576 = vmatprep.subr.bf16.mxu0 0
        %577 = vmatpush1.bf16.msra.mxu0 %v495
        %578 = vmatprep.subr.bf16.mxu0 0
        %579 = vmatpush1.bf16.msra.mxu0 %v494
        %580 = vmatprep.subr.bf16.mxu0 0
        %581 = vmatpush1.bf16.msra.mxu0 %v493
        %582 = vmatprep.subr.bf16.mxu0 0
        %583 = vmatpush2.bf16.msra.mxu0 0
        %584 = vmatprep.subr.bf16.mxu0 0
        %585 = vmatpush2.bf16.msra.mxu0 0
        %586 = vmatprep.subr.bf16.mxu0 0
        %587 = vmatpush2.bf16.msra.mxu0 0
        %588 = vmatprep.subr.bf16.mxu0 0
        %589 = vmatpush2.bf16.msra.mxu0 0
        %590 = vmatprep.subr.bf16.mxu0 0
        %591 = vmatpush2.bf16.msra.mxu0 0
        %592 = vmatprep.subr.bf16.mxu0 0
        %593 = vmatpush2.bf16.msra.mxu0 0
        %594 = vmatprep.subr.bf16.mxu0 0
        %595 = vmatpush2.bf16.msra.mxu0 0
        %596 = vmatprep.subr.bf16.mxu0 0
        %597 = vmatpush2.bf16.msra.mxu0 0
        %598 = vmatprep.mubr.bf16.mxu0 0
        %599 = vmatmul.mubr.bf16.gmra.mxu0 %v377
        %v600 = vpop.f32.mrf.mxu0
        %v601 = vadd.f32 %v560, %v600
        %v602 = vpop.f32.mrf.mxu0
        %v603 = vpop.f32.mrf.mxu0
        %v604 = vadd.f32 %v563, %v603
        %v605 = vpop.f32.mrf.mxu0
        %606 = vdwg.mxu0
        %v607 = vmul.f32 %v601, 0.5
        %v608 = vmul.f32 %v604, 0.5
        %v609 = vmul.f32 %v601, 0.70710677
        %v610 = vmul.f32 %v604, 0.70710677
        %v611 = verf.f32.pop %v609
        %v612 = verf.f32.pop %v610
        %v613 = vadd.f32 %v611, 1.0
        %v614 = vadd.f32 %v612, 1.0
        %v615 = vmul.f32 %v607, %v613
        %v616 = vmul.f32 %v608, %v614
        %v617 = vpack.c.bf16 %v616, %v615
        %v619 = vunpack.c.l.b16 %v617
        %v620 = vunpack.c.h.b16 %v617
        %v621 = vpack.c.b16 %v619, %v619
        %v622 = vpack.c.b16 %v620, %v620
        %625 = vst [vmem:[#allocation2] sm:$0xf] %v621
        %626 = vst [vmem:[#allocation2 + $0x10] sm:$0x1] %v622
        %v627 = vld [vmem:[%s265 + $0x4] sm:$0xff]
        %v628 = vld [vmem:[%s265 + $0xc] sm:$0xf]
        %v629 = vld [vmem:[%s265 + $0x14] sm:$0x11]
        %v630 = vld [vmem:[%s265 + $0x1c] sm:$0x1]
        %v631 = vld [vmem:[#allocation7] sm:$0xf]
        %v632 = vld [vmem:[#allocation7 + $0x4] sm:$0xf]
        %v633 = vld [vmem:[#allocation7 + $0x8] sm:$0xf]
        %v634 = vld [vmem:[#allocation7 + $0xc] sm:$0xf]
        %v635 = vld [vmem:[#allocation7 + $0x10] sm:$0xf]
        %v636 = vld [vmem:[#allocation7 + $0x14] sm:$0xf]
        %v637 = vld [vmem:[#allocation7 + $0x18] sm:$0xf]
        %v638 = vld [vmem:[#allocation7 + $0x1c] sm:$0xf]
        %v639 = vld [vmem:[#allocation7 + $0x20] sm:$0xf]
        %v640 = vld [vmem:[#allocation7 + $0x24] sm:$0xf]
        %v641 = vld [vmem:[#allocation7 + $0x28] sm:$0xf]
        %v642 = vld [vmem:[#allocation7 + $0x2c] sm:$0xf]
        %v643 = vld [vmem:[#allocation7 + $0x30] sm:$0xf]
        %v644 = vld [vmem:[#allocation7 + $0x34] sm:$0xf]
        %v645 = vld [vmem:[#allocation7 + $0x38] sm:$0xf]
        %v646 = vld [vmem:[#allocation7 + $0x3c] sm:$0xf]
        %v647 = vld [vmem:[#allocation7 + $0x40] sm:$0xf]
        %v648 = vld [vmem:[#allocation7 + $0x44] sm:$0xf]
        %v649 = vld [vmem:[#allocation7 + $0x48] sm:$0xf]
        %v650 = vld [vmem:[#allocation7 + $0x4c] sm:$0xf]
        %v651 = vld [vmem:[#allocation7 + $0x50] sm:$0xf]
        %v652 = vld [vmem:[#allocation7 + $0x54] sm:$0xf]
        %v653 = vld [vmem:[#allocation7 + $0x58] sm:$0xf]
        %v654 = vld [vmem:[#allocation7 + $0x5c] sm:$0xf]
        %v655 = vld [vmem:[#allocation7 + $0x60] sm:$0xf]
        %v656 = vld [vmem:[#allocation7 + $0x64] sm:$0xf]
        %v657 = vld [vmem:[#allocation7 + $0x68] sm:$0xf]
        %v658 = vld [vmem:[#allocation7 + $0x6c] sm:$0xf]
        %v659 = vld [vmem:[#allocation7 + $0x70] sm:$0xf]
        %v660 = vld [vmem:[#allocation7 + $0x74] sm:$0xf]
        %v661 = vld [vmem:[#allocation7 + $0x78] sm:$0xf]
        %v662 = vld [vmem:[#allocation7 + $0x7c] sm:$0xf]
        %v663 = vld [vmem:[#allocation7 + $0x80] sm:$0xf]
        %v664 = vld [vmem:[#allocation7 + $0x84] sm:$0xf]
        %v665 = vld [vmem:[#allocation7 + $0x88] sm:$0xf]
        %v666 = vld [vmem:[#allocation7 + $0x8c] sm:$0xf]
        %v667 = vld [vmem:[#allocation7 + $0x90] sm:$0xf]
        %v668 = vld [vmem:[#allocation7 + $0x94] sm:$0xf]
        %v669 = vld [vmem:[#allocation7 + $0x98] sm:$0xf]
        %v670 = vld [vmem:[#allocation7 + $0x9c] sm:$0xf]
        %v671 = vld [vmem:[#allocation7 + $0xa0] sm:$0xf]
        %v672 = vld [vmem:[#allocation7 + $0xa4] sm:$0xf]
        %v673 = vld [vmem:[#allocation7 + $0xa8] sm:$0xf]
        %v674 = vld [vmem:[#allocation7 + $0xac] sm:$0xf]
        %v675 = vld [vmem:[#allocation7 + $0xb0] sm:$0xf]
        %v676 = vld [vmem:[#allocation7 + $0xb4] sm:$0xf]
        %v677 = vld [vmem:[#allocation7 + $0xb8] sm:$0xf]
        %v678 = vld [vmem:[#allocation7 + $0xbc] sm:$0xf]
        %v683 = vunpack.c.l.b16 %v627
        %v684 = vunpack.c.h.b16 %v627
        %v685 = vunpack.c.l.b16 %v628
        %v686 = vunpack.c.l.b16 %v629
        %v687 = vunpack.c.h.b16 %v629
        %v688 = vunpack.c.l.b16 %v630
        %v689 = vpack.c.b16 %v686, %v683
        %v690 = vpack.c.b16 %v687, %v684
        %v691 = vpack.c.b16 %v688, %v685
        %v743 = vunpack.c.l.b16 %v631
        %v744 = vunpack.c.l.b16 %v632
        %v745 = vunpack.c.l.b16 %v633
        %v746 = vunpack.c.l.b16 %v634
        %v747 = vunpack.c.l.b16 %v635
        %v748 = vunpack.c.l.b16 %v636
        %v749 = vunpack.c.l.b16 %v637
        %v750 = vunpack.c.l.b16 %v638
        %v751 = vunpack.c.l.b16 %v639
        %v752 = vunpack.c.l.b16 %v640
        %v753 = vunpack.c.l.b16 %v641
        %v754 = vunpack.c.l.b16 %v642
        %v755 = vunpack.c.l.b16 %v643
        %v756 = vunpack.c.l.b16 %v644
        %v757 = vunpack.c.l.b16 %v645
        %v758 = vunpack.c.l.b16 %v646
        %v759 = vunpack.c.l.b16 %v647
        %v760 = vunpack.c.l.b16 %v648
        %v761 = vunpack.c.l.b16 %v649
        %v762 = vunpack.c.l.b16 %v650
        %v763 = vunpack.c.l.b16 %v651
        %v764 = vunpack.c.l.b16 %v652
        %v765 = vunpack.c.l.b16 %v653
        %v766 = vunpack.c.l.b16 %v654
        %v767 = vunpack.c.l.b16 %v655
        %v768 = vunpack.c.l.b16 %v656
        %v769 = vunpack.c.l.b16 %v657
        %v770 = vunpack.c.l.b16 %v658
        %v771 = vunpack.c.l.b16 %v659
        %v772 = vunpack.c.l.b16 %v660
        %v773 = vunpack.c.l.b16 %v661
        %v774 = vunpack.c.l.b16 %v662
        %v775 = vunpack.c.l.b16 %v663
        %v776 = vunpack.c.l.b16 %v664
        %v777 = vunpack.c.l.b16 %v665
        %v778 = vunpack.c.l.b16 %v666
        %v779 = vunpack.c.l.b16 %v667
        %v780 = vunpack.c.l.b16 %v668
        %v781 = vunpack.c.l.b16 %v669
        %v782 = vunpack.c.l.b16 %v670
        %v783 = vunpack.c.l.b16 %v671
        %v784 = vunpack.c.l.b16 %v672
        %v785 = vunpack.c.l.b16 %v673
        %v786 = vunpack.c.l.b16 %v674
        %v787 = vunpack.c.l.b16 %v675
        %v788 = vunpack.c.l.b16 %v676
        %v789 = vunpack.c.l.b16 %v677
        %v790 = vunpack.c.l.b16 %v678
        %v791 = vpack.c.b16 %v744, %v743
        %v792 = vpack.c.b16 %v746, %v745
        %v793 = vpack.c.b16 %v748, %v747
        %v794 = vpack.c.b16 %v750, %v749
        %v795 = vpack.c.b16 %v752, %v751
        %v796 = vpack.c.b16 %v754, %v753
        %v797 = vpack.c.b16 %v756, %v755
        %v798 = vpack.c.b16 %v758, %v757
        %v799 = vpack.c.b16 %v760, %v759
        %v800 = vpack.c.b16 %v762, %v761
        %v801 = vpack.c.b16 %v764, %v763
        %v802 = vpack.c.b16 %v766, %v765
        %v803 = vpack.c.b16 %v768, %v767
        %v804 = vpack.c.b16 %v770, %v769
        %v805 = vpack.c.b16 %v772, %v771
        %v806 = vpack.c.b16 %v774, %v773
        %v807 = vpack.c.b16 %v776, %v775
        %v808 = vpack.c.b16 %v778, %v777
        %v809 = vpack.c.b16 %v780, %v779
        %v810 = vpack.c.b16 %v782, %v781
        %v811 = vpack.c.b16 %v784, %v783
        %v812 = vpack.c.b16 %v786, %v785
        %v813 = vpack.c.b16 %v788, %v787
        %v814 = vpack.c.b16 %v790, %v789
        %839 = vmatprep.subr.bf16.mxu0 0
        %840 = vmatpush1.bf16.msra.mxu0 %v798
        %841 = vmatprep.subr.bf16.mxu0 0
        %842 = vmatpush1.bf16.msra.mxu0 %v797
        %843 = vmatprep.subr.bf16.mxu0 0
        %844 = vmatpush1.bf16.msra.mxu0 %v796
        %845 = vmatprep.subr.bf16.mxu0 0
        %846 = vmatpush1.bf16.msra.mxu0 %v795
        %847 = vmatprep.subr.bf16.mxu0 0
        %848 = vmatpush1.bf16.msra.mxu0 %v794
        %849 = vmatprep.subr.bf16.mxu0 0
        %850 = vmatpush1.bf16.msra.mxu0 %v793
        %851 = vmatprep.subr.bf16.mxu0 0
        %852 = vmatpush1.bf16.msra.mxu0 %v792
        %853 = vmatprep.subr.bf16.mxu0 0
        %854 = vmatpush1.bf16.msra.mxu0 %v791
        %855 = vmatprep.subr.bf16.mxu0 0
        %856 = vmatpush2.bf16.msra.mxu0 %v806
        %857 = vmatprep.subr.bf16.mxu0 0
        %858 = vmatpush2.bf16.msra.mxu0 %v805
        %859 = vmatprep.subr.bf16.mxu0 0
        %860 = vmatpush2.bf16.msra.mxu0 %v804
        %861 = vmatprep.subr.bf16.mxu0 0
        %862 = vmatpush2.bf16.msra.mxu0 %v803
        %863 = vmatprep.subr.bf16.mxu0 0
        %864 = vmatpush2.bf16.msra.mxu0 %v802
        %865 = vmatprep.subr.bf16.mxu0 0
        %866 = vmatpush2.bf16.msra.mxu0 %v801
        %867 = vmatprep.subr.bf16.mxu0 0
        %868 = vmatpush2.bf16.msra.mxu0 %v800
        %869 = vmatprep.subr.bf16.mxu0 0
        %870 = vmatpush2.bf16.msra.mxu0 %v799
        %871 = vmatprep.mubr.bf16.mxu0 %v690
        %872 = vmatmul.mubr.bf16.gmra.mxu0 %v689
        %v873 = vpop.f32.mrf.mxu0
        %v874 = vadd.f32 %v364, %v873
        %v875 = vpop.f32.mrf.mxu0
        %v876 = vpop.f32.mrf.mxu0
        %v877 = vadd.f32 %v364, %v876
        %v878 = vpop.f32.mrf.mxu0
        %879 = vdwg.mxu0
        %880 = vmatprep.subr.bf16.mxu0 0
        %881 = vmatpush1.bf16.msra.mxu0 %v814
        %882 = vmatprep.subr.bf16.mxu0 0
        %883 = vmatpush1.bf16.msra.mxu0 %v813
        %884 = vmatprep.subr.bf16.mxu0 0
        %885 = vmatpush1.bf16.msra.mxu0 %v812
        %886 = vmatprep.subr.bf16.mxu0 0
        %887 = vmatpush1.bf16.msra.mxu0 %v811
        %888 = vmatprep.subr.bf16.mxu0 0
        %889 = vmatpush1.bf16.msra.mxu0 %v810
        %890 = vmatprep.subr.bf16.mxu0 0
        %891 = vmatpush1.bf16.msra.mxu0 %v809
        %892 = vmatprep.subr.bf16.mxu0 0
        %893 = vmatpush1.bf16.msra.mxu0 %v808
        %894 = vmatprep.subr.bf16.mxu0 0
        %895 = vmatpush1.bf16.msra.mxu0 %v807
        %896 = vmatprep.subr.bf16.mxu0 0
        %897 = vmatpush2.bf16.msra.mxu0 0
        %898 = vmatprep.subr.bf16.mxu0 0
        %899 = vmatpush2.bf16.msra.mxu0 0
        %900 = vmatprep.subr.bf16.mxu0 0
        %901 = vmatpush2.bf16.msra.mxu0 0
        %902 = vmatprep.subr.bf16.mxu0 0
        %903 = vmatpush2.bf16.msra.mxu0 0
        %904 = vmatprep.subr.bf16.mxu0 0
        %905 = vmatpush2.bf16.msra.mxu0 0
        %906 = vmatprep.subr.bf16.mxu0 0
        %907 = vmatpush2.bf16.msra.mxu0 0
        %908 = vmatprep.subr.bf16.mxu0 0
        %909 = vmatpush2.bf16.msra.mxu0 0
        %910 = vmatprep.subr.bf16.mxu0 0
        %911 = vmatpush2.bf16.msra.mxu0 0
        %912 = vmatprep.mubr.bf16.mxu0 0
        %913 = vmatmul.mubr.bf16.gmra.mxu0 %v691
        %v914 = vpop.f32.mrf.mxu0
        %v915 = vadd.f32 %v874, %v914
        %v916 = vpop.f32.mrf.mxu0
        %v917 = vpop.f32.mrf.mxu0
        %v918 = vadd.f32 %v877, %v917
        %v919 = vpop.f32.mrf.mxu0
        %920 = vdwg.mxu0
        %v921 = vmul.f32 %v915, 0.5
        %v922 = vmul.f32 %v918, 0.5
        %v923 = vmul.f32 %v915, 0.70710677
        %v924 = vmul.f32 %v918, 0.70710677
        %v925 = verf.f32.pop %v923
        %v926 = verf.f32.pop %v924
        %v927 = vadd.f32 %v925, 1.0
        %v928 = vadd.f32 %v926, 1.0
        %v929 = vmul.f32 %v921, %v927
        %v930 = vmul.f32 %v922, %v928
        %v931 = vpack.c.bf16 %v930, %v929
        %v933 = vunpack.c.l.b16 %v931
        %v934 = vunpack.c.h.b16 %v931
        %v935 = vpack.c.b16 %v933, %v933
        %v936 = vpack.c.b16 %v934, %v934
        %939 = vst [vmem:[#allocation2 + $0x4] sm:$0xf] %v935
        %940 = vst [vmem:[#allocation2 + $0x14] sm:$0x1] %v936
        %v941 = vld [vmem:[%s265 + $0x8] sm:$0xff]
        %v942 = vld [vmem:[%s265 + $0x18] sm:$0x11]
        %v943 = vld [vmem:[#allocation7] sm:$0xf]
        %v944 = vld [vmem:[#allocation7 + $0x4] sm:$0xf]
        %v945 = vld [vmem:[#allocation7 + $0x8] sm:$0xf]
        %v946 = vld [vmem:[#allocation7 + $0xc] sm:$0xf]
        %v947 = vld [vmem:[#allocation7 + $0x10] sm:$0xf]
        %v948 = vld [vmem:[#allocation7 + $0x14] sm:$0xf]
        %v949 = vld [vmem:[#allocation7 + $0x18] sm:$0xf]
        %v950 = vld [vmem:[#allocation7 + $0x1c] sm:$0xf]
        %v951 = vld [vmem:[#allocation7 + $0x20] sm:$0xf]
        %v952 = vld [vmem:[#allocation7 + $0x24] sm:$0xf]
        %v953 = vld [vmem:[#allocation7 + $0x28] sm:$0xf]
        %v954 = vld [vmem:[#allocation7 + $0x2c] sm:$0xf]
        %v955 = vld [vmem:[#allocation7 + $0x30] sm:$0xf]
        %v956 = vld [vmem:[#allocation7 + $0x34] sm:$0xf]
        %v957 = vld [vmem:[#allocation7 + $0x38] sm:$0xf]
        %v958 = vld [vmem:[#allocation7 + $0x3c] sm:$0xf]
        %v959 = vld [vmem:[#allocation7 + $0x40] sm:$0xf]
        %v960 = vld [vmem:[#allocation7 + $0x44] sm:$0xf]
        %v961 = vld [vmem:[#allocation7 + $0x48] sm:$0xf]
        %v962 = vld [vmem:[#allocation7 + $0x4c] sm:$0xf]
        %v963 = vld [vmem:[#allocation7 + $0x50] sm:$0xf]
        %v964 = vld [vmem:[#allocation7 + $0x54] sm:$0xf]
        %v965 = vld [vmem:[#allocation7 + $0x58] sm:$0xf]
        %v966 = vld [vmem:[#allocation7 + $0x5c] sm:$0xf]
        %v967 = vld [vmem:[#allocation7 + $0x60] sm:$0xf]
        %v968 = vld [vmem:[#allocation7 + $0x64] sm:$0xf]
        %v969 = vld [vmem:[#allocation7 + $0x68] sm:$0xf]
        %v970 = vld [vmem:[#allocation7 + $0x6c] sm:$0xf]
        %v971 = vld [vmem:[#allocation7 + $0x70] sm:$0xf]
        %v972 = vld [vmem:[#allocation7 + $0x74] sm:$0xf]
        %v973 = vld [vmem:[#allocation7 + $0x78] sm:$0xf]
        %v974 = vld [vmem:[#allocation7 + $0x7c] sm:$0xf]
        %v975 = vld [vmem:[%s265] sm:$0xf]
        %v976 = vld [vmem:[%s265 + $0x10] sm:$0x3]
        %v977 = vld [vmem:[#allocation7 + $0x80] sm:$0xf]
        %v978 = vld [vmem:[#allocation7 + $0x84] sm:$0xf]
        %v979 = vld [vmem:[#allocation7 + $0x88] sm:$0xf]
        %v980 = vld [vmem:[#allocation7 + $0x8c] sm:$0xf]
        %v981 = vld [vmem:[#allocation7 + $0x90] sm:$0xf]
        %v982 = vld [vmem:[#allocation7 + $0x94] sm:$0xf]
        %v983 = vld [vmem:[#allocation7 + $0x98] sm:$0xf]
        %v984 = vld [vmem:[#allocation7 + $0x9c] sm:$0xf]
        %v985 = vld [vmem:[#allocation7 + $0xa0] sm:$0xf]
        %v986 = vld [vmem:[#allocation7 + $0xa4] sm:$0xf]
        %v987 = vld [vmem:[#allocation7 + $0xa8] sm:$0xf]
        %v988 = vld [vmem:[#allocation7 + $0xac] sm:$0xf]
        %v989 = vld [vmem:[#allocation7 + $0xb0] sm:$0xf]
        %v990 = vld [vmem:[#allocation7 + $0xb4] sm:$0xf]
        %v991 = vld [vmem:[#allocation7 + $0xb8] sm:$0xf]
        %v992 = vld [vmem:[#allocation7 + $0xbc] sm:$0xf]
        %v995 = vunpack.c.l.b16 %v975
        %v996 = vunpack.c.l.b16 %v976
        %v997 = vpack.c.b16 %v996, %v995
        %v999 = vshrl.u32 %v997, 16
        %v1001 = vshll.u32 %v997, 16
        %v1003 = vrot.slane %v1001, 1
        %v1004 = vor.u32 %v999, %v1003
        %v1022 = vunpack.c.l.b16 %v977
        %v1023 = vunpack.c.l.b16 %v978
        %v1024 = vunpack.c.l.b16 %v979
        %v1025 = vunpack.c.l.b16 %v980
        %v1026 = vunpack.c.l.b16 %v981
        %v1027 = vunpack.c.l.b16 %v982
        %v1028 = vunpack.c.l.b16 %v983
        %v1029 = vunpack.c.l.b16 %v984
        %v1030 = vunpack.c.l.b16 %v985
        %v1031 = vunpack.c.l.b16 %v986
        %v1032 = vunpack.c.l.b16 %v987
        %v1033 = vunpack.c.l.b16 %v988
        %v1034 = vunpack.c.l.b16 %v989
        %v1035 = vunpack.c.l.b16 %v990
        %v1036 = vunpack.c.l.b16 %v991
        %v1037 = vunpack.c.l.b16 %v992
        %v1038 = vpack.c.b16 %v1023, %v1022
        %v1039 = vpack.c.b16 %v1025, %v1024
        %v1040 = vpack.c.b16 %v1027, %v1026
        %v1041 = vpack.c.b16 %v1029, %v1028
        %v1042 = vpack.c.b16 %v1031, %v1030
        %v1043 = vpack.c.b16 %v1033, %v1032
        %v1044 = vpack.c.b16 %v1035, %v1034
        %v1045 = vpack.c.b16 %v1037, %v1036
        %1054 = vmatprep.subr.bf16.mxu0 0
        %1055 = vmatpush1.bf16.msra.mxu0 %v1045
        %1056 = vmatprep.subr.bf16.mxu0 0
        %1057 = vmatpush1.bf16.msra.mxu0 %v1044
        %1058 = vmatprep.subr.bf16.mxu0 0
        %1059 = vmatpush1.bf16.msra.mxu0 %v1043
        %1060 = vmatprep.subr.bf16.mxu0 0
        %1061 = vmatpush1.bf16.msra.mxu0 %v1042
        %1062 = vmatprep.subr.bf16.mxu0 0
        %1063 = vmatpush1.bf16.msra.mxu0 %v1041
        %1064 = vmatprep.subr.bf16.mxu0 0
        %1065 = vmatpush1.bf16.msra.mxu0 %v1040
        %1066 = vmatprep.subr.bf16.mxu0 0
        %1067 = vmatpush1.bf16.msra.mxu0 %v1039
        %1068 = vmatprep.subr.bf16.mxu0 0
        %1069 = vmatpush1.bf16.msra.mxu0 %v1038
        %1070 = vmatprep.subr.bf16.mxu0 0
        %1071 = vmatpush2.bf16.msra.mxu0 0
        %1072 = vmatprep.subr.bf16.mxu0 0
        %1073 = vmatpush2.bf16.msra.mxu0 0
        %1074 = vmatprep.subr.bf16.mxu0 0
        %1075 = vmatpush2.bf16.msra.mxu0 0
        %1076 = vmatprep.subr.bf16.mxu0 0
        %1077 = vmatpush2.bf16.msra.mxu0 0
        %1078 = vmatprep.subr.bf16.mxu0 0
        %1079 = vmatpush2.bf16.msra.mxu0 0
        %1080 = vmatprep.subr.bf16.mxu0 0
        %1081 = vmatpush2.bf16.msra.mxu0 0
        %1082 = vmatprep.subr.bf16.mxu0 0
        %1083 = vmatpush2.bf16.msra.mxu0 0
        %1084 = vmatprep.subr.bf16.mxu0 0
        %1085 = vmatpush2.bf16.msra.mxu0 0
        %1086 = vmatprep.mubr.bf16.mxu0 0
        %1087 = vmatmul.mubr.bf16.gmra.mxu0 %v1004
        %v1088 = vpop.f32.mrf.mxu0
        %v1089 = vadd.f32 0.0, %v1088
        %v1090 = vpop.f32.mrf.mxu0
        %v1091 = vpop.f32.mrf.mxu0
        %v1092 = vadd.f32 0.0, %v1091
        %v1093 = vpop.f32.mrf.mxu0
        %1094 = vdwg.mxu0
        %v1097 = vunpack.c.l.b16 %v941
        %v1098 = vunpack.c.h.b16 %v941
        %v1099 = vunpack.c.l.b16 %v942
        %v1100 = vunpack.c.h.b16 %v942
        %v1101 = vpack.c.b16 %v1099, %v1097
        %v1102 = vpack.c.b16 %v1100, %v1098
        %v1137 = vunpack.c.l.b16 %v943
        %v1138 = vunpack.c.l.b16 %v944
        %v1139 = vunpack.c.l.b16 %v945
        %v1140 = vunpack.c.l.b16 %v946
        %v1141 = vunpack.c.l.b16 %v947
        %v1142 = vunpack.c.l.b16 %v948
        %v1143 = vunpack.c.l.b16 %v949
        %v1144 = vunpack.c.l.b16 %v950
        %v1145 = vunpack.c.l.b16 %v951
        %v1146 = vunpack.c.l.b16 %v952
        %v1147 = vunpack.c.l.b16 %v953
        %v1148 = vunpack.c.l.b16 %v954
        %v1149 = vunpack.c.l.b16 %v955
        %v1150 = vunpack.c.l.b16 %v956
        %v1151 = vunpack.c.l.b16 %v957
        %v1152 = vunpack.c.l.b16 %v958
        %v1153 = vunpack.c.l.b16 %v959
        %v1154 = vunpack.c.l.b16 %v960
        %v1155 = vunpack.c.l.b16 %v961
        %v1156 = vunpack.c.l.b16 %v962
        %v1157 = vunpack.c.l.b16 %v963
        %v1158 = vunpack.c.l.b16 %v964
        %v1159 = vunpack.c.l.b16 %v965
        %v1160 = vunpack.c.l.b16 %v966
        %v1161 = vunpack.c.l.b16 %v967
        %v1162 = vunpack.c.l.b16 %v968
        %v1163 = vunpack.c.l.b16 %v969
        %v1164 = vunpack.c.l.b16 %v970
        %v1165 = vunpack.c.l.b16 %v971
        %v1166 = vunpack.c.l.b16 %v972
        %v1167 = vunpack.c.l.b16 %v973
        %v1168 = vunpack.c.l.b16 %v974
        %v1169 = vpack.c.b16 %v1138, %v1137
        %v1170 = vpack.c.b16 %v1140, %v1139
        %v1171 = vpack.c.b16 %v1142, %v1141
        %v1172 = vpack.c.b16 %v1144, %v1143
        %v1173 = vpack.c.b16 %v1146, %v1145
        %v1174 = vpack.c.b16 %v1148, %v1147
        %v1175 = vpack.c.b16 %v1150, %v1149
        %v1176 = vpack.c.b16 %v1152, %v1151
        %v1177 = vpack.c.b16 %v1154, %v1153
        %v1178 = vpack.c.b16 %v1156, %v1155
        %v1179 = vpack.c.b16 %v1158, %v1157
        %v1180 = vpack.c.b16 %v1160, %v1159
        %v1181 = vpack.c.b16 %v1162, %v1161
        %v1182 = vpack.c.b16 %v1164, %v1163
        %v1183 = vpack.c.b16 %v1166, %v1165
        %v1184 = vpack.c.b16 %v1168, %v1167
        %1201 = vmatprep.subr.bf16.mxu0 0
        %1202 = vmatpush1.bf16.msra.mxu0 %v1176
        %1203 = vmatprep.subr.bf16.mxu0 0
        %1204 = vmatpush1.bf16.msra.mxu0 %v1175
        %1205 = vmatprep.subr.bf16.mxu0 0
        %1206 = vmatpush1.bf16.msra.mxu0 %v1174
        %1207 = vmatprep.subr.bf16.mxu0 0
        %1208 = vmatpush1.bf16.msra.mxu0 %v1173
        %1209 = vmatprep.subr.bf16.mxu0 0
        %1210 = vmatpush1.bf16.msra.mxu0 %v1172
        %1211 = vmatprep.subr.bf16.mxu0 0
        %1212 = vmatpush1.bf16.msra.mxu0 %v1171
        %1213 = vmatprep.subr.bf16.mxu0 0
        %1214 = vmatpush1.bf16.msra.mxu0 %v1170
        %1215 = vmatprep.subr.bf16.mxu0 0
        %1216 = vmatpush1.bf16.msra.mxu0 %v1169
        %1217 = vmatprep.subr.bf16.mxu0 0
        %1218 = vmatpush2.bf16.msra.mxu0 %v1184
        %1219 = vmatprep.subr.bf16.mxu0 0
        %1220 = vmatpush2.bf16.msra.mxu0 %v1183
        %1221 = vmatprep.subr.bf16.mxu0 0
        %1222 = vmatpush2.bf16.msra.mxu0 %v1182
        %1223 = vmatprep.subr.bf16.mxu0 0
        %1224 = vmatpush2.bf16.msra.mxu0 %v1181
        %1225 = vmatprep.subr.bf16.mxu0 0
        %1226 = vmatpush2.bf16.msra.mxu0 %v1180
        %1227 = vmatprep.subr.bf16.mxu0 0
        %1228 = vmatpush2.bf16.msra.mxu0 %v1179
        %1229 = vmatprep.subr.bf16.mxu0 0
        %1230 = vmatpush2.bf16.msra.mxu0 %v1178
        %1231 = vmatprep.subr.bf16.mxu0 0
        %1232 = vmatpush2.bf16.msra.mxu0 %v1177
        %1233 = vmatprep.mubr.bf16.mxu0 %v1102
        %1234 = vmatmul.mubr.bf16.gmra.mxu0 %v1101
        %v1235 = vpop.f32.mrf.mxu0
        %v1236 = vadd.f32 %v1089, %v1235
        %v1237 = vpop.f32.mrf.mxu0
        %v1238 = vpop.f32.mrf.mxu0
        %v1239 = vadd.f32 %v1092, %v1238
        %v1240 = vpop.f32.mrf.mxu0
        %1241 = vdwg.mxu0
        %v1242 = vadd.f32 %v1236, %v364
        %v1243 = vadd.f32 %v1239, %v364
        %v1244 = vmul.f32 %v1242, 0.5
        %v1245 = vmul.f32 %v1243, 0.5
        %v1246 = vmul.f32 %v1242, 0.70710677
        %v1247 = vmul.f32 %v1243, 0.70710677
        %v1248 = verf.f32.pop %v1246
        %v1249 = verf.f32.pop %v1247
        %v1250 = vadd.f32 %v1248, 1.0
        %v1251 = vadd.f32 %v1249, 1.0
        %v1252 = vmul.f32 %v1244, %v1250
        %v1253 = vmul.f32 %v1245, %v1251
        %v1254 = vpack.c.bf16 %v1253, %v1252
        %v1256 = vunpack.c.l.b16 %v1254
        %v1257 = vunpack.c.h.b16 %v1254
        %v1258 = vpack.c.b16 %v1256, %v1256
        %v1259 = vpack.c.b16 %v1257, %v1257
        %1262 = vst [vmem:[#allocation2 + $0x8] sm:$0xf] %v1258
        %1263 = vst [vmem:[#allocation2 + $0x18] sm:$0x1] %v1259
        %v1264 = vld [vmem:[%s265 + $0xc] sm:$0xf]
        %v1265 = vld [vmem:[%s265 + $0x1c] sm:$0x1]
        %v1266 = vld [vmem:[#allocation7] sm:$0xf]
        %v1267 = vld [vmem:[#allocation7 + $0x4] sm:$0xf]
        %v1268 = vld [vmem:[#allocation7 + $0x8] sm:$0xf]
        %v1269 = vld [vmem:[#allocation7 + $0xc] sm:$0xf]
        %v1270 = vld [vmem:[#allocation7 + $0x10] sm:$0xf]
        %v1271 = vld [vmem:[#allocation7 + $0x14] sm:$0xf]
        %v1272 = vld [vmem:[#allocation7 + $0x18] sm:$0xf]
        %v1273 = vld [vmem:[#allocation7 + $0x1c] sm:$0xf]
        %v1274 = vld [vmem:[#allocation7 + $0x20] sm:$0xf]
        %v1275 = vld [vmem:[#allocation7 + $0x24] sm:$0xf]
        %v1276 = vld [vmem:[#allocation7 + $0x28] sm:$0xf]
        %v1277 = vld [vmem:[#allocation7 + $0x2c] sm:$0xf]
        %v1278 = vld [vmem:[#allocation7 + $0x30] sm:$0xf]
        %v1279 = vld [vmem:[#allocation7 + $0x34] sm:$0xf]
        %v1280 = vld [vmem:[#allocation7 + $0x38] sm:$0xf]
        %v1281 = vld [vmem:[#allocation7 + $0x3c] sm:$0xf]
        %v1282 = vld [vmem:[%s265] sm:$0xff]
        %v1283 = vld [vmem:[%s265 + $0x10] sm:$0x33]
        %v1284 = vld [vmem:[#allocation7 + $0x40] sm:$0xf]
        %v1285 = vld [vmem:[#allocation7 + $0x44] sm:$0xf]
        %v1286 = vld [vmem:[#allocation7 + $0x48] sm:$0xf]
        %v1287 = vld [vmem:[#allocation7 + $0x4c] sm:$0xf]
        %v1288 = vld [vmem:[#allocation7 + $0x50] sm:$0xf]
        %v1289 = vld [vmem:[#allocation7 + $0x54] sm:$0xf]
        %v1290 = vld [vmem:[#allocation7 + $0x58] sm:$0xf]
        %v1291 = vld [vmem:[#allocation7 + $0x5c] sm:$0xf]
        %v1292 = vld [vmem:[#allocation7 + $0x60] sm:$0xf]
        %v1293 = vld [vmem:[#allocation7 + $0x64] sm:$0xf]
        %v1294 = vld [vmem:[#allocation7 + $0x68] sm:$0xf]
        %v1295 = vld [vmem:[#allocation7 + $0x6c] sm:$0xf]
        %v1296 = vld [vmem:[#allocation7 + $0x70] sm:$0xf]
        %v1297 = vld [vmem:[#allocation7 + $0x74] sm:$0xf]
        %v1298 = vld [vmem:[#allocation7 + $0x78] sm:$0xf]
        %v1299 = vld [vmem:[#allocation7 + $0x7c] sm:$0xf]
        %v1300 = vld [vmem:[#allocation7 + $0x80] sm:$0xf]
        %v1301 = vld [vmem:[#allocation7 + $0x84] sm:$0xf]
        %v1302 = vld [vmem:[#allocation7 + $0x88] sm:$0xf]
        %v1303 = vld [vmem:[#allocation7 + $0x8c] sm:$0xf]
        %v1304 = vld [vmem:[#allocation7 + $0x90] sm:$0xf]
        %v1305 = vld [vmem:[#allocation7 + $0x94] sm:$0xf]
        %v1306 = vld [vmem:[#allocation7 + $0x98] sm:$0xf]
        %v1307 = vld [vmem:[#allocation7 + $0x9c] sm:$0xf]
        %v1308 = vld [vmem:[#allocation7 + $0xa0] sm:$0xf]
        %v1309 = vld [vmem:[#allocation7 + $0xa4] sm:$0xf]
        %v1310 = vld [vmem:[#allocation7 + $0xa8] sm:$0xf]
        %v1311 = vld [vmem:[#allocation7 + $0xac] sm:$0xf]
        %v1312 = vld [vmem:[#allocation7 + $0xb0] sm:$0xf]
        %v1313 = vld [vmem:[#allocation7 + $0xb4] sm:$0xf]
        %v1314 = vld [vmem:[#allocation7 + $0xb8] sm:$0xf]
        %v1315 = vld [vmem:[#allocation7 + $0xbc] sm:$0xf]
        %v1318 = vunpack.c.l.b16 %v1282
        %v1319 = vunpack.c.h.b16 %v1282
        %v1320 = vunpack.c.l.b16 %v1283
        %v1321 = vunpack.c.h.b16 %v1283
        %v1322 = vpack.c.b16 %v1320, %v1318
        %v1323 = vpack.c.b16 %v1321, %v1319
        %v1325 = vshrl.u32 %v1322, 16
        %v1327 = vshll.u32 %v1322, 16
        %v1329 = vrot.slane %v1327, 1
        %v1330 = vor.u32 %v1325, %v1329
        %v1332 = vshrl.u32 %v1323, 16
        %v1334 = vshll.u32 %v1323, 16
        %v1336 = vrot.slane %v1334, 1
        %v1337 = vor.u32 %v1332, %v1336
        %v1372 = vunpack.c.l.b16 %v1284
        %v1373 = vunpack.c.l.b16 %v1285
        %v1374 = vunpack.c.l.b16 %v1286
        %v1375 = vunpack.c.l.b16 %v1287
        %v1376 = vunpack.c.l.b16 %v1288
        %v1377 = vunpack.c.l.b16 %v1289
        %v1378 = vunpack.c.l.b16 %v1290
        %v1379 = vunpack.c.l.b16 %v1291
        %v1380 = vunpack.c.l.b16 %v1292
        %v1381 = vunpack.c.l.b16 %v1293
        %v1382 = vunpack.c.l.b16 %v1294
        %v1383 = vunpack.c.l.b16 %v1295
        %v1384 = vunpack.c.l.b16 %v1296
        %v1385 = vunpack.c.l.b16 %v1297
        %v1386 = vunpack.c.l.b16 %v1298
        %v1387 = vunpack.c.l.b16 %v1299
        %v1388 = vunpack.c.l.b16 %v1300
        %v1389 = vunpack.c.l.b16 %v1301
        %v1390 = vunpack.c.l.b16 %v1302
        %v1391 = vunpack.c.l.b16 %v1303
        %v1392 = vunpack.c.l.b16 %v1304
        %v1393 = vunpack.c.l.b16 %v1305
        %v1394 = vunpack.c.l.b16 %v1306
        %v1395 = vunpack.c.l.b16 %v1307
        %v1396 = vunpack.c.l.b16 %v1308
        %v1397 = vunpack.c.l.b16 %v1309
        %v1398 = vunpack.c.l.b16 %v1310
        %v1399 = vunpack.c.l.b16 %v1311
        %v1400 = vunpack.c.l.b16 %v1312
        %v1401 = vunpack.c.l.b16 %v1313
        %v1402 = vunpack.c.l.b16 %v1314
        %v1403 = vunpack.c.l.b16 %v1315
        %v1404 = vpack.c.b16 %v1373, %v1372
        %v1405 = vpack.c.b16 %v1375, %v1374
        %v1406 = vpack.c.b16 %v1377, %v1376
        %v1407 = vpack.c.b16 %v1379, %v1378
        %v1408 = vpack.c.b16 %v1381, %v1380
        %v1409 = vpack.c.b16 %v1383, %v1382
        %v1410 = vpack.c.b16 %v1385, %v1384
        %v1411 = vpack.c.b16 %v1387, %v1386
        %v1412 = vpack.c.b16 %v1389, %v1388
        %v1413 = vpack.c.b16 %v1391, %v1390
        %v1414 = vpack.c.b16 %v1393, %v1392
        %v1415 = vpack.c.b16 %v1395, %v1394
        %v1416 = vpack.c.b16 %v1397, %v1396
        %v1417 = vpack.c.b16 %v1399, %v1398
        %v1418 = vpack.c.b16 %v1401, %v1400
        %v1419 = vpack.c.b16 %v1403, %v1402
        %1436 = vmatprep.subr.bf16.mxu0 0
        %1437 = vmatpush1.bf16.msra.mxu0 %v1411
        %1438 = vmatprep.subr.bf16.mxu0 0
        %1439 = vmatpush1.bf16.msra.mxu0 %v1410
        %1440 = vmatprep.subr.bf16.mxu0 0
        %1441 = vmatpush1.bf16.msra.mxu0 %v1409
        %1442 = vmatprep.subr.bf16.mxu0 0
        %1443 = vmatpush1.bf16.msra.mxu0 %v1408
        %1444 = vmatprep.subr.bf16.mxu0 0
        %1445 = vmatpush1.bf16.msra.mxu0 %v1407
        %1446 = vmatprep.subr.bf16.mxu0 0
        %1447 = vmatpush1.bf16.msra.mxu0 %v1406
        %1448 = vmatprep.subr.bf16.mxu0 0
        %1449 = vmatpush1.bf16.msra.mxu0 %v1405
        %1450 = vmatprep.subr.bf16.mxu0 0
        %1451 = vmatpush1.bf16.msra.mxu0 %v1404
        %1452 = vmatprep.subr.bf16.mxu0 0
        %1453 = vmatpush2.bf16.msra.mxu0 %v1419
        %1454 = vmatprep.subr.bf16.mxu0 0
        %1455 = vmatpush2.bf16.msra.mxu0 %v1418
        %1456 = vmatprep.subr.bf16.mxu0 0
        %1457 = vmatpush2.bf16.msra.mxu0 %v1417
        %1458 = vmatprep.subr.bf16.mxu0 0
        %1459 = vmatpush2.bf16.msra.mxu0 %v1416
        %1460 = vmatprep.subr.bf16.mxu0 0
        %1461 = vmatpush2.bf16.msra.mxu0 %v1415
        %1462 = vmatprep.subr.bf16.mxu0 0
        %1463 = vmatpush2.bf16.msra.mxu0 %v1414
        %1464 = vmatprep.subr.bf16.mxu0 0
        %1465 = vmatpush2.bf16.msra.mxu0 %v1413
        %1466 = vmatprep.subr.bf16.mxu0 0
        %1467 = vmatpush2.bf16.msra.mxu0 %v1412
        %1468 = vmatprep.mubr.bf16.mxu0 %v1337
        %1469 = vmatmul.mubr.bf16.gmra.mxu0 %v1330
        %v1470 = vpop.f32.mrf.mxu0
        %v1471 = vadd.f32 0.0, %v1470
        %v1472 = vpop.f32.mrf.mxu0
        %v1473 = vpop.f32.mrf.mxu0
        %v1474 = vadd.f32 0.0, %v1473
        %v1475 = vpop.f32.mrf.mxu0
        %1476 = vdwg.mxu0
        %v1479 = vunpack.c.l.b16 %v1264
        %v1480 = vunpack.c.l.b16 %v1265
        %v1481 = vpack.c.b16 %v1480, %v1479
        %v1499 = vunpack.c.l.b16 %v1266
        %v1500 = vunpack.c.l.b16 %v1267
        %v1501 = vunpack.c.l.b16 %v1268
        %v1502 = vunpack.c.l.b16 %v1269
        %v1503 = vunpack.c.l.b16 %v1270
        %v1504 = vunpack.c.l.b16 %v1271
        %v1505 = vunpack.c.l.b16 %v1272
        %v1506 = vunpack.c.l.b16 %v1273
        %v1507 = vunpack.c.l.b16 %v1274
        %v1508 = vunpack.c.l.b16 %v1275
        %v1509 = vunpack.c.l.b16 %v1276
        %v1510 = vunpack.c.l.b16 %v1277
        %v1511 = vunpack.c.l.b16 %v1278
        %v1512 = vunpack.c.l.b16 %v1279
        %v1513 = vunpack.c.l.b16 %v1280
        %v1514 = vunpack.c.l.b16 %v1281
        %v1515 = vpack.c.b16 %v1500, %v1499
        %v1516 = vpack.c.b16 %v1502, %v1501
        %v1517 = vpack.c.b16 %v1504, %v1503
        %v1518 = vpack.c.b16 %v1506, %v1505
        %v1519 = vpack.c.b16 %v1508, %v1507
        %v1520 = vpack.c.b16 %v1510, %v1509
        %v1521 = vpack.c.b16 %v1512, %v1511
        %v1522 = vpack.c.b16 %v1514, %v1513
        %1531 = vmatprep.subr.bf16.mxu0 0
        %1532 = vmatpush1.bf16.msra.mxu0 %v1522
        %1533 = vmatprep.subr.bf16.mxu0 0
        %1534 = vmatpush1.bf16.msra.mxu0 %v1521
        %1535 = vmatprep.subr.bf16.mxu0 0
        %1536 = vmatpush1.bf16.msra.mxu0 %v1520
        %1537 = vmatprep.subr.bf16.mxu0 0
        %1538 = vmatpush1.bf16.msra.mxu0 %v1519
        %1539 = vmatprep.subr.bf16.mxu0 0
        %1540 = vmatpush1.bf16.msra.mxu0 %v1518
        %1541 = vmatprep.subr.bf16.mxu0 0
        %1542 = vmatpush1.bf16.msra.mxu0 %v1517
        %1543 = vmatprep.subr.bf16.mxu0 0
        %1544 = vmatpush1.bf16.msra.mxu0 %v1516
        %1545 = vmatprep.subr.bf16.mxu0 0
        %1546 = vmatpush1.bf16.msra.mxu0 %v1515
        %1547 = vmatprep.subr.bf16.mxu0 0
        %1548 = vmatpush2.bf16.msra.mxu0 0
        %1549 = vmatprep.subr.bf16.mxu0 0
        %1550 = vmatpush2.bf16.msra.mxu0 0
        %1551 = vmatprep.subr.bf16.mxu0 0
        %1552 = vmatpush2.bf16.msra.mxu0 0
        %1553 = vmatprep.subr.bf16.mxu0 0
        %1554 = vmatpush2.bf16.msra.mxu0 0
        %1555 = vmatprep.subr.bf16.mxu0 0
        %1556 = vmatpush2.bf16.msra.mxu0 0
        %1557 = vmatprep.subr.bf16.mxu0 0
        %1558 = vmatpush2.bf16.msra.mxu0 0
        %1559 = vmatprep.subr.bf16.mxu0 0
        %1560 = vmatpush2.bf16.msra.mxu0 0
        %1561 = vmatprep.subr.bf16.mxu0 0
        %1562 = vmatpush2.bf16.msra.mxu0 0
        %1563 = vmatprep.mubr.bf16.mxu0 0
        %1564 = vmatmul.mubr.bf16.gmra.mxu0 %v1481
        %v1565 = vpop.f32.mrf.mxu0
        %v1566 = vadd.f32 %v1471, %v1565
        %v1567 = vpop.f32.mrf.mxu0
        %v1568 = vpop.f32.mrf.mxu0
        %v1569 = vadd.f32 %v1474, %v1568
        %v1570 = vpop.f32.mrf.mxu0
        %1571 = vdwg.mxu0
        %v1572 = vadd.f32 %v1566, %v364
        %v1573 = vadd.f32 %v1569, %v364
        %v1574 = vmul.f32 %v1572, 0.5
        %v1575 = vmul.f32 %v1573, 0.5
        %v1576 = vmul.f32 %v1572, 0.70710677
        %v1577 = vmul.f32 %v1573, 0.70710677
        %v1578 = verf.f32.pop %v1576
        %v1579 = verf.f32.pop %v1577
        %v1580 = vadd.f32 %v1578, 1.0
        %v1581 = vadd.f32 %v1579, 1.0
        %v1582 = vmul.f32 %v1574, %v1580
        %v1583 = vmul.f32 %v1575, %v1581
        %v1584 = vpack.c.bf16 %v1583, %v1582
        %v1586 = vunpack.c.l.b16 %v1584
        %v1587 = vunpack.c.h.b16 %v1584
        %v1588 = vpack.c.b16 %v1586, %v1586
        %v1589 = vpack.c.b16 %v1587, %v1587
        %1592 = vst [vmem:[#allocation2 + $0xc] sm:$0xf] %v1588
        %1593 = vst [vmem:[#allocation2 + $0x1c] sm:$0x1] %v1589
        %p1594 = scmp.eq.s32.totalorder %s29, 0
        // Predicated region
        $region57: #{tpu_custom_call.1} parent=39 // pred_check
          %p1595 = pneg %p1594
        $region58: #{tpu_custom_call.1} parent=39 // pred_check_branch
          %1597 = sbr.rel (%p1595) target = $region60
        $region59: #{tpu_custom_call.1} parent=39 // pred_region
          %vm1598 = vcmask 1040384
          %vm1599 = vsmask.f32 256
          %vm1600 = vmand %vm1598, %vm1599
          %vm1601 = vcmask 1044484
          %vm1602 = vsmask.f32 4352
          %vm1603 = vmand %vm1601, %vm1602
          %vm1604 = vmor %vm1603, %vm1600
          %v1605 = vld [vmem:[#allocation2] sm:$0x11]
          %v1606 = vsel %vm1604, 0, %v1605
          %1607 = vst [vmem:[#allocation2] sm:$0x11] %v1606
          %v1608 = vld [vmem:[#allocation2 + $0x8] sm:$0x11]
          %v1609 = vsel %vm1604, 0, %v1608
          %1610 = vst [vmem:[#allocation2 + $0x8] sm:$0x11] %v1609
          %vm1611 = vsmask.f32 7938
          %vm1612 = vmand %vm1598, %vm1611
          %vm1613 = vsmask.f32 7954
          %vm1614 = vmand %vm1601, %vm1613
          %vm1615 = vmor %vm1614, %vm1612
          %v1616 = vld [vmem:[#allocation2] sm:$0x11]
          %v1617 = vsel %vm1615, 0, %v1616
          %1618 = vst [vmem:[#allocation2] sm:$0x11] %v1617
        $region60: #{tpu_custom_call.1} parent=39 // pred_fallthru
          _
        %v1619 = vld [vmem:[#allocation2] sm:$0xff]
        %v1620 = vld [vmem:[#allocation2 + $0x8] sm:$0xf]
        %v1621 = vld [vmem:[#allocation2 + $0x10] sm:$0x11]
        %v1622 = vld [vmem:[#allocation2 + $0x18] sm:$0x1]
        %v1623 = vld [vmem:[#allocation9] sm:$0xf]
        %v1624 = vld [vmem:[#allocation9 + $0x4] sm:$0xf]
        %v1625 = vld [vmem:[#allocation9 + $0x8] sm:$0xf]
        %v1626 = vld [vmem:[#allocation9 + $0xc] sm:$0xf]
        %v1627 = vld [vmem:[#allocation9 + $0x10] sm:$0xf]
        %v1628 = vld [vmem:[#allocation9 + $0x14] sm:$0xf]
        %v1629 = vld [vmem:[#allocation9 + $0x18] sm:$0xf]
        %v1630 = vld [vmem:[#allocation9 + $0x1c] sm:$0xf]
        %v1631 = vld [vmem:[#allocation9 + $0x20] sm:$0xf]
        %v1632 = vld [vmem:[#allocation9 + $0x24] sm:$0xf]
        %v1633 = vld [vmem:[#allocation9 + $0x28] sm:$0xf]
        %v1634 = vld [vmem:[#allocation9 + $0x2c] sm:$0xf]
        %v1635 = vld [vmem:[#allocation9 + $0x30] sm:$0xf]
        %v1636 = vld [vmem:[#allocation9 + $0x34] sm:$0xf]
        %v1637 = vld [vmem:[#allocation9 + $0x38] sm:$0xf]
        %v1638 = vld [vmem:[#allocation9 + $0x3c] sm:$0xf]
        %v1639 = vld [vmem:[#allocation9 + $0x40] sm:$0xf]
        %v1640 = vld [vmem:[#allocation9 + $0x44] sm:$0xf]
        %v1641 = vld [vmem:[#allocation9 + $0x48] sm:$0xf]
        %v1642 = vld [vmem:[#allocation9 + $0x4c] sm:$0xf]
        %v1643 = vld [vmem:[#allocation9 + $0x50] sm:$0xf]
        %v1644 = vld [vmem:[#allocation9 + $0x54] sm:$0xf]
        %v1645 = vld [vmem:[#allocation9 + $0x58] sm:$0xf]
        %v1646 = vld [vmem:[#allocation9 + $0x5c] sm:$0xf]
        %v1647 = vld [vmem:[#allocation9 + $0x60] sm:$0xf]
        %v1648 = vld [vmem:[#allocation9 + $0x64] sm:$0xf]
        %v1649 = vld [vmem:[#allocation9 + $0x68] sm:$0xf]
        %v1650 = vld [vmem:[#allocation9 + $0x6c] sm:$0xf]
        %v1651 = vld [vmem:[#allocation9 + $0x70] sm:$0xf]
        %v1652 = vld [vmem:[#allocation9 + $0x74] sm:$0xf]
        %v1653 = vld [vmem:[#allocation9 + $0x78] sm:$0xf]
        %v1654 = vld [vmem:[#allocation9 + $0x7c] sm:$0xf]
        %v1655 = vld [vmem:[#allocation9 + $0x80] sm:$0xf]
        %v1656 = vld [vmem:[#allocation9 + $0x84] sm:$0xf]
        %v1657 = vld [vmem:[#allocation9 + $0x88] sm:$0xf]
        %v1658 = vld [vmem:[#allocation9 + $0x8c] sm:$0xf]
        %v1659 = vld [vmem:[#allocation9 + $0x90] sm:$0xf]
        %v1660 = vld [vmem:[#allocation9 + $0x94] sm:$0xf]
        %v1661 = vld [vmem:[#allocation9 + $0x98] sm:$0xf]
        %v1662 = vld [vmem:[#allocation9 + $0x9c] sm:$0xf]
        %v1663 = vld [vmem:[#allocation9 + $0xa0] sm:$0xf]
        %v1664 = vld [vmem:[#allocation9 + $0xa4] sm:$0xf]
        %v1665 = vld [vmem:[#allocation9 + $0xa8] sm:$0xf]
        %v1666 = vld [vmem:[#allocation9 + $0xac] sm:$0xf]
        %v1667 = vld [vmem:[#allocation9 + $0xb0] sm:$0xf]
        %v1668 = vld [vmem:[#allocation9 + $0xb4] sm:$0xf]
        %v1669 = vld [vmem:[#allocation9 + $0xb8] sm:$0xf]
        %v1670 = vld [vmem:[#allocation9 + $0xbc] sm:$0xf]
        %v1671 = vlaneseq
        %v1672 = vshrl.u32 %v1671, 7
        %v1673 = vsub.s32 0, %v1672
        %v1674 = vrot.slane %v307, %v1673
        %v1679 = vunpack.c.l.b16 %v1619
        %v1680 = vunpack.c.h.b16 %v1619
        %v1681 = vunpack.c.l.b16 %v1620
        %v1682 = vunpack.c.l.b16 %v1621
        %v1683 = vunpack.c.h.b16 %v1621
        %v1684 = vunpack.c.l.b16 %v1622
        %v1685 = vpack.c.b16 %v1682, %v1679
        %v1686 = vpack.c.b16 %v1683, %v1680
        %v1687 = vpack.c.b16 %v1684, %v1681
        %v1739 = vunpack.c.l.b16 %v1623
        %v1740 = vunpack.c.l.b16 %v1624
        %v1741 = vunpack.c.l.b16 %v1625
        %v1742 = vunpack.c.l.b16 %v1626
        %v1743 = vunpack.c.l.b16 %v1627
        %v1744 = vunpack.c.l.b16 %v1628
        %v1745 = vunpack.c.l.b16 %v1629
        %v1746 = vunpack.c.l.b16 %v1630
        %v1747 = vunpack.c.l.b16 %v1631
        %v1748 = vunpack.c.l.b16 %v1632
        %v1749 = vunpack.c.l.b16 %v1633
        %v1750 = vunpack.c.l.b16 %v1634
        %v1751 = vunpack.c.l.b16 %v1635
        %v1752 = vunpack.c.l.b16 %v1636
        %v1753 = vunpack.c.l.b16 %v1637
        %v1754 = vunpack.c.l.b16 %v1638
        %v1755 = vunpack.c.l.b16 %v1639
        %v1756 = vunpack.c.l.b16 %v1640
        %v1757 = vunpack.c.l.b16 %v1641
        %v1758 = vunpack.c.l.b16 %v1642
        %v1759 = vunpack.c.l.b16 %v1643
        %v1760 = vunpack.c.l.b16 %v1644
        %v1761 = vunpack.c.l.b16 %v1645
        %v1762 = vunpack.c.l.b16 %v1646
        %v1763 = vunpack.c.l.b16 %v1647
        %v1764 = vunpack.c.l.b16 %v1648
        %v1765 = vunpack.c.l.b16 %v1649
        %v1766 = vunpack.c.l.b16 %v1650
        %v1767 = vunpack.c.l.b16 %v1651
        %v1768 = vunpack.c.l.b16 %v1652
        %v1769 = vunpack.c.l.b16 %v1653
        %v1770 = vunpack.c.l.b16 %v1654
        %v1771 = vunpack.c.l.b16 %v1655
        %v1772 = vunpack.c.l.b16 %v1656
        %v1773 = vunpack.c.l.b16 %v1657
        %v1774 = vunpack.c.l.b16 %v1658
        %v1775 = vunpack.c.l.b16 %v1659
        %v1776 = vunpack.c.l.b16 %v1660
        %v1777 = vunpack.c.l.b16 %v1661
        %v1778 = vunpack.c.l.b16 %v1662
        %v1779 = vunpack.c.l.b16 %v1663
        %v1780 = vunpack.c.l.b16 %v1664
        %v1781 = vunpack.c.l.b16 %v1665
        %v1782 = vunpack.c.l.b16 %v1666
        %v1783 = vunpack.c.l.b16 %v1667
        %v1784 = vunpack.c.l.b16 %v1668
        %v1785 = vunpack.c.l.b16 %v1669
        %v1786 = vunpack.c.l.b16 %v1670
        %v1787 = vpack.c.b16 %v1740, %v1739
        %v1788 = vpack.c.b16 %v1742, %v1741
        %v1789 = vpack.c.b16 %v1744, %v1743
        %v1790 = vpack.c.b16 %v1746, %v1745
        %v1791 = vpack.c.b16 %v1748, %v1747
        %v1792 = vpack.c.b16 %v1750, %v1749
        %v1793 = vpack.c.b16 %v1752, %v1751
        %v1794 = vpack.c.b16 %v1754, %v1753
        %v1795 = vpack.c.b16 %v1756, %v1755
        %v1796 = vpack.c.b16 %v1758, %v1757
        %v1797 = vpack.c.b16 %v1760, %v1759
        %v1798 = vpack.c.b16 %v1762, %v1761
        %v1799 = vpack.c.b16 %v1764, %v1763
        %v1800 = vpack.c.b16 %v1766, %v1765
        %v1801 = vpack.c.b16 %v1768, %v1767
        %v1802 = vpack.c.b16 %v1770, %v1769
        %v1803 = vpack.c.b16 %v1772, %v1771
        %v1804 = vpack.c.b16 %v1774, %v1773
        %v1805 = vpack.c.b16 %v1776, %v1775
        %v1806 = vpack.c.b16 %v1778, %v1777
        %v1807 = vpack.c.b16 %v1780, %v1779
        %v1808 = vpack.c.b16 %v1782, %v1781
        %v1809 = vpack.c.b16 %v1784, %v1783
        %v1810 = vpack.c.b16 %v1786, %v1785
        %1835 = vmatprep.subr.bf16.mxu0 0
        %1836 = vmatpush1.bf16.msra.mxu0 %v1794
        %1837 = vmatprep.subr.bf16.mxu0 0
        %1838 = vmatpush1.bf16.msra.mxu0 %v1793
        %1839 = vmatprep.subr.bf16.mxu0 0
        %1840 = vmatpush1.bf16.msra.mxu0 %v1792
        %1841 = vmatprep.subr.bf16.mxu0 0
        %1842 = vmatpush1.bf16.msra.mxu0 %v1791
        %1843 = vmatprep.subr.bf16.mxu0 0
        %1844 = vmatpush1.bf16.msra.mxu0 %v1790
        %1845 = vmatprep.subr.bf16.mxu0 0
        %1846 = vmatpush1.bf16.msra.mxu0 %v1789
        %1847 = vmatprep.subr.bf16.mxu0 0
        %1848 = vmatpush1.bf16.msra.mxu0 %v1788
        %1849 = vmatprep.subr.bf16.mxu0 0
        %1850 = vmatpush1.bf16.msra.mxu0 %v1787
        %1851 = vmatprep.subr.bf16.mxu0 0
        %1852 = vmatpush2.bf16.msra.mxu0 %v1802
        %1853 = vmatprep.subr.bf16.mxu0 0
        %1854 = vmatpush2.bf16.msra.mxu0 %v1801
        %1855 = vmatprep.subr.bf16.mxu0 0
        %1856 = vmatpush2.bf16.msra.mxu0 %v1800
        %1857 = vmatprep.subr.bf16.mxu0 0
        %1858 = vmatpush2.bf16.msra.mxu0 %v1799
        %1859 = vmatprep.subr.bf16.mxu0 0
        %1860 = vmatpush2.bf16.msra.mxu0 %v1798
        %1861 = vmatprep.subr.bf16.mxu0 0
        %1862 = vmatpush2.bf16.msra.mxu0 %v1797
        %1863 = vmatprep.subr.bf16.mxu0 0
        %1864 = vmatpush2.bf16.msra.mxu0 %v1796
        %1865 = vmatprep.subr.bf16.mxu0 0
        %1866 = vmatpush2.bf16.msra.mxu0 %v1795
        %1867 = vmatprep.mubr.bf16.mxu0 %v1686
        %1868 = vmatmul.mubr.bf16.gmra.mxu0 %v1685
        %v1869 = vpop.f32.mrf.mxu0
        %v1870 = vadd.f32 %v1674, %v1869
        %v1871 = vpop.f32.mrf.mxu0
        %v1872 = vpop.f32.mrf.mxu0
        %v1873 = vadd.f32 %v1674, %v1872
        %v1874 = vpop.f32.mrf.mxu0
        %1875 = vdwg.mxu0
        %1876 = vmatprep.subr.bf16.mxu0 0
        %1877 = vmatpush1.bf16.msra.mxu0 %v1810
        %1878 = vmatprep.subr.bf16.mxu0 0
        %1879 = vmatpush1.bf16.msra.mxu0 %v1809
        %1880 = vmatprep.subr.bf16.mxu0 0
        %1881 = vmatpush1.bf16.msra.mxu0 %v1808
        %1882 = vmatprep.subr.bf16.mxu0 0
        %1883 = vmatpush1.bf16.msra.mxu0 %v1807
        %1884 = vmatprep.subr.bf16.mxu0 0
        %1885 = vmatpush1.bf16.msra.mxu0 %v1806
        %1886 = vmatprep.subr.bf16.mxu0 0
        %1887 = vmatpush1.bf16.msra.mxu0 %v1805
        %1888 = vmatprep.subr.bf16.mxu0 0
        %1889 = vmatpush1.bf16.msra.mxu0 %v1804
        %1890 = vmatprep.subr.bf16.mxu0 0
        %1891 = vmatpush1.bf16.msra.mxu0 %v1803
        %1892 = vmatprep.subr.bf16.mxu0 0
        %1893 = vmatpush2.bf16.msra.mxu0 0
        %1894 = vmatprep.subr.bf16.mxu0 0
        %1895 = vmatpush2.bf16.msra.mxu0 0
        %1896 = vmatprep.subr.bf16.mxu0 0
        %1897 = vmatpush2.bf16.msra.mxu0 0
        %1898 = vmatprep.subr.bf16.mxu0 0
        %1899 = vmatpush2.bf16.msra.mxu0 0
        %1900 = vmatprep.subr.bf16.mxu0 0
        %1901 = vmatpush2.bf16.msra.mxu0 0
        %1902 = vmatprep.subr.bf16.mxu0 0
        %1903 = vmatpush2.bf16.msra.mxu0 0
        %1904 = vmatprep.subr.bf16.mxu0 0
        %1905 = vmatpush2.bf16.msra.mxu0 0
        %1906 = vmatprep.subr.bf16.mxu0 0
        %1907 = vmatpush2.bf16.msra.mxu0 0
        %1908 = vmatprep.mubr.bf16.mxu0 0
        %1909 = vmatmul.mubr.bf16.gmra.mxu0 %v1687
        %v1910 = vpop.f32.mrf.mxu0
        %v1911 = vadd.f32 %v1870, %v1910
        %v1912 = vpop.f32.mrf.mxu0
        %v1913 = vpop.f32.mrf.mxu0
        %v1914 = vadd.f32 %v1873, %v1913
        %v1915 = vpop.f32.mrf.mxu0
        %1916 = vdwg.mxu0
        %v1917 = vmul.f32 %v1911, 0.5
        %v1918 = vmul.f32 %v1914, 0.5
        %v1919 = vmul.f32 %v1911, 0.70710677
        %v1920 = vmul.f32 %v1914, 0.70710677
        %v1921 = verf.f32.pop %v1919
        %v1922 = verf.f32.pop %v1920
        %v1923 = vadd.f32 %v1921, 1.0
        %v1924 = vadd.f32 %v1922, 1.0
        %v1925 = vmul.f32 %v1917, %v1923
        %v1926 = vmul.f32 %v1918, %v1924
        %v1927 = vpack.c.bf16 %v1926, %v1925
        %v1929 = vunpack.c.l.b16 %v1927
        %v1930 = vunpack.c.h.b16 %v1927
        %v1931 = vpack.c.b16 %v1929, %v1929
        %v1932 = vpack.c.b16 %v1930, %v1930
        %1935 = vst [vmem:[#allocation3] sm:$0xf] %v1931
        %vm1936 = vcmask 1040384
        %vm1937 = vsmask.f32 256
        %vm1938 = vmand %vm1936, %vm1937
        %v1939 = vld [vmem:[#allocation3 + $0x8] sm:$0x1]
        %v1940 = vsel %vm1938, %v1932, %v1939
        %1941 = vst [vmem:[#allocation3 + $0x8] sm:$0x1] %v1940
        %v1942 = vld [vmem:[#allocation2 + $0x8] sm:$0xff]
        %v1943 = vld [vmem:[#allocation2 + $0x18] sm:$0x11]
        %v1944 = vld [vmem:[#allocation9] sm:$0xf]
        %v1945 = vld [vmem:[#allocation9 + $0x4] sm:$0xf]
        %v1946 = vld [vmem:[#allocation9 + $0x8] sm:$0xf]
        %v1947 = vld [vmem:[#allocation9 + $0xc] sm:$0xf]
        %v1948 = vld [vmem:[#allocation9 + $0x10] sm:$0xf]
        %v1949 = vld [vmem:[#allocation9 + $0x14] sm:$0xf]
        %v1950 = vld [vmem:[#allocation9 + $0x18] sm:$0xf]
        %v1951 = vld [vmem:[#allocation9 + $0x1c] sm:$0xf]
        %v1952 = vld [vmem:[#allocation9 + $0x20] sm:$0xf]
        %v1953 = vld [vmem:[#allocation9 + $0x24] sm:$0xf]
        %v1954 = vld [vmem:[#allocation9 + $0x28] sm:$0xf]
        %v1955 = vld [vmem:[#allocation9 + $0x2c] sm:$0xf]
        %v1956 = vld [vmem:[#allocation9 + $0x30] sm:$0xf]
        %v1957 = vld [vmem:[#allocation9 + $0x34] sm:$0xf]
        %v1958 = vld [vmem:[#allocation9 + $0x38] sm:$0xf]
        %v1959 = vld [vmem:[#allocation9 + $0x3c] sm:$0xf]
        %v1960 = vld [vmem:[#allocation9 + $0x40] sm:$0xf]
        %v1961 = vld [vmem:[#allocation9 + $0x44] sm:$0xf]
        %v1962 = vld [vmem:[#allocation9 + $0x48] sm:$0xf]
        %v1963 = vld [vmem:[#allocation9 + $0x4c] sm:$0xf]
        %v1964 = vld [vmem:[#allocation9 + $0x50] sm:$0xf]
        %v1965 = vld [vmem:[#allocation9 + $0x54] sm:$0xf]
        %v1966 = vld [vmem:[#allocation9 + $0x58] sm:$0xf]
        %v1967 = vld [vmem:[#allocation9 + $0x5c] sm:$0xf]
        %v1968 = vld [vmem:[#allocation9 + $0x60] sm:$0xf]
        %v1969 = vld [vmem:[#allocation9 + $0x64] sm:$0xf]
        %v1970 = vld [vmem:[#allocation9 + $0x68] sm:$0xf]
        %v1971 = vld [vmem:[#allocation9 + $0x6c] sm:$0xf]
        %v1972 = vld [vmem:[#allocation9 + $0x70] sm:$0xf]
        %v1973 = vld [vmem:[#allocation9 + $0x74] sm:$0xf]
        %v1974 = vld [vmem:[#allocation9 + $0x78] sm:$0xf]
        %v1975 = vld [vmem:[#allocation9 + $0x7c] sm:$0xf]
        %v1976 = vld [vmem:[#allocation2] sm:$0xf]
        %v1977 = vld [vmem:[#allocation2 + $0x10] sm:$0x1]
        %v1978 = vld [vmem:[#allocation9 + $0x80] sm:$0xf]
        %v1979 = vld [vmem:[#allocation9 + $0x84] sm:$0xf]
        %v1980 = vld [vmem:[#allocation9 + $0x88] sm:$0xf]
        %v1981 = vld [vmem:[#allocation9 + $0x8c] sm:$0xf]
        %v1982 = vld [vmem:[#allocation9 + $0x90] sm:$0xf]
        %v1983 = vld [vmem:[#allocation9 + $0x94] sm:$0xf]
        %v1984 = vld [vmem:[#allocation9 + $0x98] sm:$0xf]
        %v1985 = vld [vmem:[#allocation9 + $0x9c] sm:$0xf]
        %v1986 = vld [vmem:[#allocation9 + $0xa0] sm:$0xf]
        %v1987 = vld [vmem:[#allocation9 + $0xa4] sm:$0xf]
        %v1988 = vld [vmem:[#allocation9 + $0xa8] sm:$0xf]
        %v1989 = vld [vmem:[#allocation9 + $0xac] sm:$0xf]
        %v1990 = vld [vmem:[#allocation9 + $0xb0] sm:$0xf]
        %v1991 = vld [vmem:[#allocation9 + $0xb4] sm:$0xf]
        %v1992 = vld [vmem:[#allocation9 + $0xb8] sm:$0xf]
        %v1993 = vld [vmem:[#allocation9 + $0xbc] sm:$0xf]
        %v1996 = vunpack.c.l.b16 %v1976
        %v1997 = vunpack.c.l.b16 %v1977
        %v1998 = vpack.c.b16 %v1997, %v1996
        %v2000 = vshrl.u32 %v1998, 16
        %v2002 = vshll.u32 %v1998, 16
        %v2004 = vrot.slane %v2002, 1
        %v2005 = vor.u32 %v2000, %v2004
        %v2023 = vunpack.c.l.b16 %v1978
        %v2024 = vunpack.c.l.b16 %v1979
        %v2025 = vunpack.c.l.b16 %v1980
        %v2026 = vunpack.c.l.b16 %v1981
        %v2027 = vunpack.c.l.b16 %v1982
        %v2028 = vunpack.c.l.b16 %v1983
        %v2029 = vunpack.c.l.b16 %v1984
        %v2030 = vunpack.c.l.b16 %v1985
        %v2031 = vunpack.c.l.b16 %v1986
        %v2032 = vunpack.c.l.b16 %v1987
        %v2033 = vunpack.c.l.b16 %v1988
        %v2034 = vunpack.c.l.b16 %v1989
        %v2035 = vunpack.c.l.b16 %v1990
        %v2036 = vunpack.c.l.b16 %v1991
        %v2037 = vunpack.c.l.b16 %v1992
        %v2038 = vunpack.c.l.b16 %v1993
        %v2039 = vpack.c.b16 %v2024, %v2023
        %v2040 = vpack.c.b16 %v2026, %v2025
        %v2041 = vpack.c.b16 %v2028, %v2027
        %v2042 = vpack.c.b16 %v2030, %v2029
        %v2043 = vpack.c.b16 %v2032, %v2031
        %v2044 = vpack.c.b16 %v2034, %v2033
        %v2045 = vpack.c.b16 %v2036, %v2035
        %v2046 = vpack.c.b16 %v2038, %v2037
        %2055 = vmatprep.subr.bf16.mxu0 0
        %2056 = vmatpush1.bf16.msra.mxu0 %v2046
        %2057 = vmatprep.subr.bf16.mxu0 0
        %2058 = vmatpush1.bf16.msra.mxu0 %v2045
        %2059 = vmatprep.subr.bf16.mxu0 0
        %2060 = vmatpush1.bf16.msra.mxu0 %v2044
        %2061 = vmatprep.subr.bf16.mxu0 0
        %2062 = vmatpush1.bf16.msra.mxu0 %v2043
        %2063 = vmatprep.subr.bf16.mxu0 0
        %2064 = vmatpush1.bf16.msra.mxu0 %v2042
        %2065 = vmatprep.subr.bf16.mxu0 0
        %2066 = vmatpush1.bf16.msra.mxu0 %v2041
        %2067 = vmatprep.subr.bf16.mxu0 0
        %2068 = vmatpush1.bf16.msra.mxu0 %v2040
        %2069 = vmatprep.subr.bf16.mxu0 0
        %2070 = vmatpush1.bf16.msra.mxu0 %v2039
        %2071 = vmatprep.subr.bf16.mxu0 0
        %2072 = vmatpush2.bf16.msra.mxu0 0
        %2073 = vmatprep.subr.bf16.mxu0 0
        %2074 = vmatpush2.bf16.msra.mxu0 0
        %2075 = vmatprep.subr.bf16.mxu0 0
        %2076 = vmatpush2.bf16.msra.mxu0 0
        %2077 = vmatprep.subr.bf16.mxu0 0
        %2078 = vmatpush2.bf16.msra.mxu0 0
        %2079 = vmatprep.subr.bf16.mxu0 0
        %2080 = vmatpush2.bf16.msra.mxu0 0
        %2081 = vmatprep.subr.bf16.mxu0 0
        %2082 = vmatpush2.bf16.msra.mxu0 0
        %2083 = vmatprep.subr.bf16.mxu0 0
        %2084 = vmatpush2.bf16.msra.mxu0 0
        %2085 = vmatprep.subr.bf16.mxu0 0
        %2086 = vmatpush2.bf16.msra.mxu0 0
        %2087 = vmatprep.mubr.bf16.mxu0 0
        %2088 = vmatmul.mubr.bf16.gmra.mxu0 %v2005
        %v2089 = vpop.f32.mrf.mxu0
        %v2090 = vadd.f32 0.0, %v2089
        %v2091 = vpop.f32.mrf.mxu0
        %v2092 = vpop.f32.mrf.mxu0
        %v2093 = vadd.f32 0.0, %v2092
        %v2094 = vpop.f32.mrf.mxu0
        %2095 = vdwg.mxu0
        %v2098 = vunpack.c.l.b16 %v1942
        %v2099 = vunpack.c.h.b16 %v1942
        %v2100 = vunpack.c.l.b16 %v1943
        %v2101 = vunpack.c.h.b16 %v1943
        %v2102 = vpack.c.b16 %v2100, %v2098
        %v2103 = vpack.c.b16 %v2101, %v2099
        %v2138 = vunpack.c.l.b16 %v1944
        %v2139 = vunpack.c.l.b16 %v1945
        %v2140 = vunpack.c.l.b16 %v1946
        %v2141 = vunpack.c.l.b16 %v1947
        %v2142 = vunpack.c.l.b16 %v1948
        %v2143 = vunpack.c.l.b16 %v1949
        %v2144 = vunpack.c.l.b16 %v1950
        %v2145 = vunpack.c.l.b16 %v1951
        %v2146 = vunpack.c.l.b16 %v1952
        %v2147 = vunpack.c.l.b16 %v1953
        %v2148 = vunpack.c.l.b16 %v1954
        %v2149 = vunpack.c.l.b16 %v1955
        %v2150 = vunpack.c.l.b16 %v1956
        %v2151 = vunpack.c.l.b16 %v1957
        %v2152 = vunpack.c.l.b16 %v1958
        %v2153 = vunpack.c.l.b16 %v1959
        %v2154 = vunpack.c.l.b16 %v1960
        %v2155 = vunpack.c.l.b16 %v1961
        %v2156 = vunpack.c.l.b16 %v1962
        %v2157 = vunpack.c.l.b16 %v1963
        %v2158 = vunpack.c.l.b16 %v1964
        %v2159 = vunpack.c.l.b16 %v1965
        %v2160 = vunpack.c.l.b16 %v1966
        %v2161 = vunpack.c.l.b16 %v1967
        %v2162 = vunpack.c.l.b16 %v1968
        %v2163 = vunpack.c.l.b16 %v1969
        %v2164 = vunpack.c.l.b16 %v1970
        %v2165 = vunpack.c.l.b16 %v1971
        %v2166 = vunpack.c.l.b16 %v1972
        %v2167 = vunpack.c.l.b16 %v1973
        %v2168 = vunpack.c.l.b16 %v1974
        %v2169 = vunpack.c.l.b16 %v1975
        %v2170 = vpack.c.b16 %v2139, %v2138
        %v2171 = vpack.c.b16 %v2141, %v2140
        %v2172 = vpack.c.b16 %v2143, %v2142
        %v2173 = vpack.c.b16 %v2145, %v2144
        %v2174 = vpack.c.b16 %v2147, %v2146
        %v2175 = vpack.c.b16 %v2149, %v2148
        %v2176 = vpack.c.b16 %v2151, %v2150
        %v2177 = vpack.c.b16 %v2153, %v2152
        %v2178 = vpack.c.b16 %v2155, %v2154
        %v2179 = vpack.c.b16 %v2157, %v2156
        %v2180 = vpack.c.b16 %v2159, %v2158
        %v2181 = vpack.c.b16 %v2161, %v2160
        %v2182 = vpack.c.b16 %v2163, %v2162
        %v2183 = vpack.c.b16 %v2165, %v2164
        %v2184 = vpack.c.b16 %v2167, %v2166
        %v2185 = vpack.c.b16 %v2169, %v2168
        %2202 = vmatprep.subr.bf16.mxu0 0
        %2203 = vmatpush1.bf16.msra.mxu0 %v2177
        %2204 = vmatprep.subr.bf16.mxu0 0
        %2205 = vmatpush1.bf16.msra.mxu0 %v2176
        %2206 = vmatprep.subr.bf16.mxu0 0
        %2207 = vmatpush1.bf16.msra.mxu0 %v2175
        %2208 = vmatprep.subr.bf16.mxu0 0
        %2209 = vmatpush1.bf16.msra.mxu0 %v2174
        %2210 = vmatprep.subr.bf16.mxu0 0
        %2211 = vmatpush1.bf16.msra.mxu0 %v2173
        %2212 = vmatprep.subr.bf16.mxu0 0
        %2213 = vmatpush1.bf16.msra.mxu0 %v2172
        %2214 = vmatprep.subr.bf16.mxu0 0
        %2215 = vmatpush1.bf16.msra.mxu0 %v2171
        %2216 = vmatprep.subr.bf16.mxu0 0
        %2217 = vmatpush1.bf16.msra.mxu0 %v2170
        %2218 = vmatprep.subr.bf16.mxu0 0
        %2219 = vmatpush2.bf16.msra.mxu0 %v2185
        %2220 = vmatprep.subr.bf16.mxu0 0
        %2221 = vmatpush2.bf16.msra.mxu0 %v2184
        %2222 = vmatprep.subr.bf16.mxu0 0
        %2223 = vmatpush2.bf16.msra.mxu0 %v2183
        %2224 = vmatprep.subr.bf16.mxu0 0
        %2225 = vmatpush2.bf16.msra.mxu0 %v2182
        %2226 = vmatprep.subr.bf16.mxu0 0
        %2227 = vmatpush2.bf16.msra.mxu0 %v2181
        %2228 = vmatprep.subr.bf16.mxu0 0
        %2229 = vmatpush2.bf16.msra.mxu0 %v2180
        %2230 = vmatprep.subr.bf16.mxu0 0
        %2231 = vmatpush2.bf16.msra.mxu0 %v2179
        %2232 = vmatprep.subr.bf16.mxu0 0
        %2233 = vmatpush2.bf16.msra.mxu0 %v2178
        %2234 = vmatprep.mubr.bf16.mxu0 %v2103
        %2235 = vmatmul.mubr.bf16.gmra.mxu0 %v2102
        %v2236 = vpop.f32.mrf.mxu0
        %v2237 = vadd.f32 %v2090, %v2236
        %v2238 = vpop.f32.mrf.mxu0
        %v2239 = vpop.f32.mrf.mxu0
        %v2240 = vadd.f32 %v2093, %v2239
        %v2241 = vpop.f32.mrf.mxu0
        %2242 = vdwg.mxu0
        %v2243 = vadd.f32 %v2237, %v1674
        %v2244 = vadd.f32 %v2240, %v1674
        %v2245 = vmul.f32 %v2243, 0.5
        %v2246 = vmul.f32 %v2244, 0.5
        %v2247 = vmul.f32 %v2243, 0.70710677
        %v2248 = vmul.f32 %v2244, 0.70710677
        %v2249 = verf.f32.pop %v2247
        %v2250 = verf.f32.pop %v2248
        %v2251 = vadd.f32 %v2249, 1.0
        %v2252 = vadd.f32 %v2250, 1.0
        %v2253 = vmul.f32 %v2245, %v2251
        %v2254 = vmul.f32 %v2246, %v2252
        %v2255 = vpack.c.bf16 %v2254, %v2253
        %v2257 = vunpack.c.l.b16 %v2255
        %v2258 = vunpack.c.h.b16 %v2255
        %v2259 = vpack.c.b16 %v2257, %v2257
        %v2260 = vpack.c.b16 %v2258, %v2258
        %2263 = vst [vmem:[#allocation3 + $0x4] sm:$0xf] %v2259
        %v2264 = vld [vmem:[#allocation3 + $0xc] sm:$0x1]
        %v2265 = vsel %vm1938, %v2260, %v2264
        %2266 = vst [vmem:[#allocation3 + $0xc] sm:$0x1] %v2265
        // Predicated region
        $region61: #{tpu_custom_call.1} parent=39 // pred_check
          %p2267 = pneg %p1594
        $region62: #{tpu_custom_call.1} parent=39 // pred_check_branch
          %2269 = sbr.rel (%p2267) target = $region64
        $region63: #{tpu_custom_call.1} parent=39 // pred_region
          %vm2270 = vcmask 1044484
          %vm2271 = vsmask.f32 4352
          %vm2272 = vmand %vm2270, %vm2271
          %vm2273 = vmor %vm2272, %vm1938
          %v2274 = vld [vmem:[#allocation3] sm:$0x11]
          %v2275 = vsel %vm2273, 0, %v2274
          %2276 = vst [vmem:[#allocation3] sm:$0x11] %v2275
        $region64: #{tpu_custom_call.1} parent=39 // pred_fallthru
          _
        %v2277 = vld [vmem:[#allocation3] sm:$0xff]
        %v2278 = vld [vmem:[#allocation10] sm:$0xf]
        %v2279 = vld [vmem:[#allocation10 + $0x4] sm:$0xf]
        %v2280 = vld [vmem:[#allocation10 + $0x8] sm:$0xf]
        %v2281 = vld [vmem:[#allocation10 + $0xc] sm:$0xf]
        %v2282 = vld [vmem:[#allocation10 + $0x10] sm:$0xf]
        %v2283 = vld [vmem:[#allocation10 + $0x14] sm:$0xf]
        %v2284 = vld [vmem:[#allocation10 + $0x18] sm:$0xf]
        %v2285 = vld [vmem:[#allocation10 + $0x1c] sm:$0xf]
        %v2286 = vld [vmem:[#allocation10 + $0x20] sm:$0xf]
        %v2287 = vld [vmem:[#allocation10 + $0x24] sm:$0xf]
        %v2288 = vld [vmem:[#allocation10 + $0x28] sm:$0xf]
        %v2289 = vld [vmem:[#allocation10 + $0x2c] sm:$0xf]
        %v2290 = vld [vmem:[#allocation10 + $0x30] sm:$0xf]
        %v2291 = vld [vmem:[#allocation10 + $0x34] sm:$0xf]
        %v2292 = vld [vmem:[#allocation10 + $0x38] sm:$0xf]
        %v2293 = vld [vmem:[#allocation10 + $0x3c] sm:$0xf]
        %v2294 = vld [vmem:[#allocation10 + $0x40] sm:$0xf]
        %v2295 = vld [vmem:[#allocation10 + $0x44] sm:$0xf]
        %v2296 = vld [vmem:[#allocation10 + $0x48] sm:$0xf]
        %v2297 = vld [vmem:[#allocation10 + $0x4c] sm:$0xf]
        %v2298 = vld [vmem:[#allocation10 + $0x50] sm:$0xf]
        %v2299 = vld [vmem:[#allocation10 + $0x54] sm:$0xf]
        %v2300 = vld [vmem:[#allocation10 + $0x58] sm:$0xf]
        %v2301 = vld [vmem:[#allocation10 + $0x5c] sm:$0xf]
        %v2302 = vld [vmem:[#allocation10 + $0x60] sm:$0xf]
        %v2303 = vld [vmem:[#allocation10 + $0x64] sm:$0xf]
        %v2304 = vld [vmem:[#allocation10 + $0x68] sm:$0xf]
        %v2305 = vld [vmem:[#allocation10 + $0x6c] sm:$0xf]
        %v2306 = vld [vmem:[#allocation10 + $0x70] sm:$0xf]
        %v2307 = vld [vmem:[#allocation10 + $0x74] sm:$0xf]
        %v2308 = vld [vmem:[#allocation10 + $0x78] sm:$0xf]
        %v2309 = vld [vmem:[#allocation10 + $0x7c] sm:$0xf]
        %v2310 = vld [vmem:[#allocation3] sm:$0xf]
        %v2311 = vld [vmem:[#allocation3 + $0x8] sm:$0x1]
        %v2312 = vld [vmem:[#allocation10 + $0x80] sm:$0xf]
        %v2313 = vld [vmem:[#allocation10 + $0x84] sm:$0xf]
        %v2314 = vld [vmem:[#allocation10 + $0x88] sm:$0xf]
        %v2315 = vld [vmem:[#allocation10 + $0x8c] sm:$0xf]
        %v2316 = vld [vmem:[#allocation10 + $0x90] sm:$0xf]
        %v2317 = vld [vmem:[#allocation10 + $0x94] sm:$0xf]
        %v2318 = vld [vmem:[#allocation10 + $0x98] sm:$0xf]
        %v2319 = vld [vmem:[#allocation10 + $0x9c] sm:$0xf]
        %v2320 = vld [vmem:[#allocation10 + $0xa0] sm:$0xf]
        %v2321 = vld [vmem:[#allocation10 + $0xa4] sm:$0xf]
        %v2322 = vld [vmem:[#allocation10 + $0xa8] sm:$0xf]
        %v2323 = vld [vmem:[#allocation10 + $0xac] sm:$0xf]
        %v2324 = vld [vmem:[#allocation10 + $0xb0] sm:$0xf]
        %v2325 = vld [vmem:[#allocation10 + $0xb4] sm:$0xf]
        %v2326 = vld [vmem:[#allocation10 + $0xb8] sm:$0xf]
        %v2327 = vld [vmem:[#allocation10 + $0xbc] sm:$0xf]
        %v2330 = vunpack.c.l.b16 %v2310
        %v2331 = vunpack.c.l.b16 %v2311
        %v2332 = vpack.c.b16 %v2331, %v2330
        %v2334 = vshrl.u32 %v2332, 16
        %v2336 = vshll.u32 %v2332, 16
        %v2338 = vrot.slane %v2336, 1
        %v2339 = vor.u32 %v2334, %v2338
        %v2357 = vunpack.c.l.b16 %v2312
        %v2358 = vunpack.c.l.b16 %v2313
        %v2359 = vunpack.c.l.b16 %v2314
        %v2360 = vunpack.c.l.b16 %v2315
        %v2361 = vunpack.c.l.b16 %v2316
        %v2362 = vunpack.c.l.b16 %v2317
        %v2363 = vunpack.c.l.b16 %v2318
        %v2364 = vunpack.c.l.b16 %v2319
        %v2365 = vunpack.c.l.b16 %v2320
        %v2366 = vunpack.c.l.b16 %v2321
        %v2367 = vunpack.c.l.b16 %v2322
        %v2368 = vunpack.c.l.b16 %v2323
        %v2369 = vunpack.c.l.b16 %v2324
        %v2370 = vunpack.c.l.b16 %v2325
        %v2371 = vunpack.c.l.b16 %v2326
        %v2372 = vunpack.c.l.b16 %v2327
        %v2373 = vpack.c.b16 %v2358, %v2357
        %v2374 = vpack.c.b16 %v2360, %v2359
        %v2375 = vpack.c.b16 %v2362, %v2361
        %v2376 = vpack.c.b16 %v2364, %v2363
        %v2377 = vpack.c.b16 %v2366, %v2365
        %v2378 = vpack.c.b16 %v2368, %v2367
        %v2379 = vpack.c.b16 %v2370, %v2369
        %v2380 = vpack.c.b16 %v2372, %v2371
        %2389 = vmatprep.subr.bf16.mxu0 0
        %2390 = vmatpush1.bf16.msra.mxu0 %v2380
        %2391 = vmatprep.subr.bf16.mxu0 0
        %2392 = vmatpush1.bf16.msra.mxu0 %v2379
        %2393 = vmatprep.subr.bf16.mxu0 0
        %2394 = vmatpush1.bf16.msra.mxu0 %v2378
        %2395 = vmatprep.subr.bf16.mxu0 0
        %2396 = vmatpush1.bf16.msra.mxu0 %v2377
        %2397 = vmatprep.subr.bf16.mxu0 0
        %2398 = vmatpush1.bf16.msra.mxu0 %v2376
        %2399 = vmatprep.subr.bf16.mxu0 0
        %2400 = vmatpush1.bf16.msra.mxu0 %v2375
        %2401 = vmatprep.subr.bf16.mxu0 0
        %2402 = vmatpush1.bf16.msra.mxu0 %v2374
        %2403 = vmatprep.subr.bf16.mxu0 0
        %2404 = vmatpush1.bf16.msra.mxu0 %v2373
        %2405 = vmatprep.subr.bf16.mxu0 0
        %2406 = vmatpush2.bf16.msra.mxu0 0
        %2407 = vmatprep.subr.bf16.mxu0 0
        %2408 = vmatpush2.bf16.msra.mxu0 0
        %2409 = vmatprep.subr.bf16.mxu0 0
        %2410 = vmatpush2.bf16.msra.mxu0 0
        %2411 = vmatprep.subr.bf16.mxu0 0
        %2412 = vmatpush2.bf16.msra.mxu0 0
        %2413 = vmatprep.subr.bf16.mxu0 0
        %2414 = vmatpush2.bf16.msra.mxu0 0
        %2415 = vmatprep.subr.bf16.mxu0 0
        %2416 = vmatpush2.bf16.msra.mxu0 0
        %2417 = vmatprep.subr.bf16.mxu0 0
        %2418 = vmatpush2.bf16.msra.mxu0 0
        %2419 = vmatprep.subr.bf16.mxu0 0
        %2420 = vmatpush2.bf16.msra.mxu0 0
        %2421 = vmatprep.mubr.bf16.mxu0 0
        %2422 = vmatmul.mubr.bf16.gmra.mxu0 %v2339
        %v2423 = vpop.f32.mrf.mxu0
        %v2424 = vadd.f32 0.0, %v2423
        %v2425 = vpop.f32.mrf.mxu0
        %v2426 = vpop.f32.mrf.mxu0
        %v2427 = vpop.f32.mrf.mxu0
        %2428 = vdwg.mxu0
        %v2430 = vunpack.c.l.b16 %v2277
        %v2431 = vunpack.c.h.b16 %v2277
        %v2432 = vpack.c.b16 %v2430, %v2430
        %v2433 = vpack.c.b16 %v2431, %v2431
        %v2468 = vunpack.c.l.b16 %v2278
        %v2469 = vunpack.c.l.b16 %v2279
        %v2470 = vunpack.c.l.b16 %v2280
        %v2471 = vunpack.c.l.b16 %v2281
        %v2472 = vunpack.c.l.b16 %v2282
        %v2473 = vunpack.c.l.b16 %v2283
        %v2474 = vunpack.c.l.b16 %v2284
        %v2475 = vunpack.c.l.b16 %v2285
        %v2476 = vunpack.c.l.b16 %v2286
        %v2477 = vunpack.c.l.b16 %v2287
        %v2478 = vunpack.c.l.b16 %v2288
        %v2479 = vunpack.c.l.b16 %v2289
        %v2480 = vunpack.c.l.b16 %v2290
        %v2481 = vunpack.c.l.b16 %v2291
        %v2482 = vunpack.c.l.b16 %v2292
        %v2483 = vunpack.c.l.b16 %v2293
        %v2484 = vunpack.c.l.b16 %v2294
        %v2485 = vunpack.c.l.b16 %v2295
        %v2486 = vunpack.c.l.b16 %v2296
        %v2487 = vunpack.c.l.b16 %v2297
        %v2488 = vunpack.c.l.b16 %v2298
        %v2489 = vunpack.c.l.b16 %v2299
        %v2490 = vunpack.c.l.b16 %v2300
        %v2491 = vunpack.c.l.b16 %v2301
        %v2492 = vunpack.c.l.b16 %v2302
        %v2493 = vunpack.c.l.b16 %v2303
        %v2494 = vunpack.c.l.b16 %v2304
        %v2495 = vunpack.c.l.b16 %v2305
        %v2496 = vunpack.c.l.b16 %v2306
        %v2497 = vunpack.c.l.b16 %v2307
        %v2498 = vunpack.c.l.b16 %v2308
        %v2499 = vunpack.c.l.b16 %v2309
        %v2500 = vpack.c.b16 %v2469, %v2468
        %v2501 = vpack.c.b16 %v2471, %v2470
        %v2502 = vpack.c.b16 %v2473, %v2472
        %v2503 = vpack.c.b16 %v2475, %v2474
        %v2504 = vpack.c.b16 %v2477, %v2476
        %v2505 = vpack.c.b16 %v2479, %v2478
        %v2506 = vpack.c.b16 %v2481, %v2480
        %v2507 = vpack.c.b16 %v2483, %v2482
        %v2508 = vpack.c.b16 %v2485, %v2484
        %v2509 = vpack.c.b16 %v2487, %v2486
        %v2510 = vpack.c.b16 %v2489, %v2488
        %v2511 = vpack.c.b16 %v2491, %v2490
        %v2512 = vpack.c.b16 %v2493, %v2492
        %v2513 = vpack.c.b16 %v2495, %v2494
        %v2514 = vpack.c.b16 %v2497, %v2496
        %v2515 = vpack.c.b16 %v2499, %v2498
        %2532 = vmatprep.subr.bf16.mxu0 0
        %2533 = vmatpush1.bf16.msra.mxu0 %v2507
        %2534 = vmatprep.subr.bf16.mxu0 0
        %2535 = vmatpush1.bf16.msra.mxu0 %v2506
        %2536 = vmatprep.subr.bf16.mxu0 0
        %2537 = vmatpush1.bf16.msra.mxu0 %v2505
        %2538 = vmatprep.subr.bf16.mxu0 0
        %2539 = vmatpush1.bf16.msra.mxu0 %v2504
        %2540 = vmatprep.subr.bf16.mxu0 0
        %2541 = vmatpush1.bf16.msra.mxu0 %v2503
        %2542 = vmatprep.subr.bf16.mxu0 0
        %2543 = vmatpush1.bf16.msra.mxu0 %v2502
        %2544 = vmatprep.subr.bf16.mxu0 0
        %2545 = vmatpush1.bf16.msra.mxu0 %v2501
        %2546 = vmatprep.subr.bf16.mxu0 0
        %2547 = vmatpush1.bf16.msra.mxu0 %v2500
        %2548 = vmatprep.subr.bf16.mxu0 0
        %2549 = vmatpush2.bf16.msra.mxu0 %v2515
        %2550 = vmatprep.subr.bf16.mxu0 0
        %2551 = vmatpush2.bf16.msra.mxu0 %v2514
        %2552 = vmatprep.subr.bf16.mxu0 0
        %2553 = vmatpush2.bf16.msra.mxu0 %v2513
        %2554 = vmatprep.subr.bf16.mxu0 0
        %2555 = vmatpush2.bf16.msra.mxu0 %v2512
        %2556 = vmatprep.subr.bf16.mxu0 0
        %2557 = vmatpush2.bf16.msra.mxu0 %v2511
        %2558 = vmatprep.subr.bf16.mxu0 0
        %2559 = vmatpush2.bf16.msra.mxu0 %v2510
        %2560 = vmatprep.subr.bf16.mxu0 0
        %2561 = vmatpush2.bf16.msra.mxu0 %v2509
        %2562 = vmatprep.subr.bf16.mxu0 0
        %2563 = vmatpush2.bf16.msra.mxu0 %v2508
        %2564 = vmatprep.mubr.bf16.mxu0 %v2433
        %2565 = vmatmul.mubr.bf16.gmra.mxu0 %v2432
        %v2566 = vpop.f32.mrf.mxu0
        %v2567 = vadd.f32 %v2424, %v2566
        %v2568 = vpop.f32.mrf.mxu0
        %v2569 = vpop.f32.mrf.mxu0
        %v2570 = vpop.f32.mrf.mxu0
        %2571 = vdwg.mxu0
        %v2572 = vlaneseq
        %v2573 = vshrl.u32 %v2572, 7
        %v2574 = vsub.s32 0, %v2573
        %v2575 = vrot.slane %v308, %v2574
        %v2576 = vadd.f32 %v2567, %v2575
        %v2577 = vmul.f32 %v2576, 0.5
        %v2578 = vmul.f32 %v2576, 0.70710677
        %v2579 = verf.f32.pop %v2578
        %v2580 = vadd.f32 %v2579, 1.0
        %v2581 = vmul.f32 %v2577, %v2580
        %v2582 = vpack.c.bf16 %v2581, %v2581
        %2583 = vst [vmem:[%s303] sm:$0xf] %v2582
        %s2584 = sand.u32 %s158, 1
        %s2585 = scalar_lea.sflag [#allocation6], %s2584
        %s2586 = sand.u32 %s158, 1
        %s2587 = smul.addr %s2586, 4
        %s2588 = scalar_lea.vmem [#allocation12], %s2587
        // Predicated region
        $region65: #{tpu_custom_call.1} parent=39 // pred_check
          %p2589 = pneg %p168
        $region66: #{tpu_custom_call.1} parent=39 // pred_check_branch
          %2591 = sbr.rel (%p2589) target = $region68
        $region67: #{tpu_custom_call.1} parent=39 // pred_region
          %s2593 = ssub.s32 64, 64
          %2594 = vsyncadd %s2585, %s2593
          %s2595 = sadd.s32 %s29, %s28
          %s2596 = smul.addr %s2595, 64
          %s2597 = scalar_lea.hbm %s5, %s2596
          %s2599 = sshll.u32 %s2588, 4
          %s2600 = int_to_ptr.vmem [resolvable:$true] %s2599
          %2602 = dma.vmem_to_hbm [thread:$0]  %s2600, 64, %s2597, %s2585
        $region68: #{tpu_custom_call.1} parent=39 // pred_fallthru
          _
      $region40: #{tpu_custom_call.1} parent=5 // pred_fallthru
        _
      %p2603 = scmp.le.s32.totalorder 2, %s19
      // Predicated region
      $region69: #{tpu_custom_call.1} parent=5 // pred_check
        %p2604 = pneg %p2603
      $region70: #{tpu_custom_call.1} parent=5 // pred_check_branch
        %2606 = sbr.rel (%p2604) target = $region72
      $region71: #{tpu_custom_call.1} parent=5 // pred_region
        %s2607 = ssub.s32 %s19, 2
        // Predicated region
        $region73: #{tpu_custom_call.1} parent=71 // pred_check
          %p2608 = pneg %p174
        $region74: #{tpu_custom_call.1} parent=71 // pred_check_branch
          %2610 = sbr.rel (%p2608) target = $region76
        $region75: #{tpu_custom_call.1} parent=71 // pred_region
          %s2611 = sand.u32 %s159, 1
          %s2612 = scalar_lea.sflag [#allocation6], %s2611
          %s2613 = sand.u32 %s159, 1
          %s2614 = smul.addr %s2613, 4
          %s2615 = scalar_lea.vmem [#allocation12], %s2614
          %2616 = dma.done %s2612, 64
        $region76: #{tpu_custom_call.1} parent=71 // pred_fallthru
          _
      $region72: #{tpu_custom_call.1} parent=5 // pred_fallthru
        _
    $region6: #{tpu_custom_call.1} parent=1 // loop_footer
      %s23 = sadd.s32 1, %s19
    $region7: #{tpu_custom_call.1} parent=1 // loop_footer_branch
      %18 = sbr.rel target = $region3
    $region8: #{tpu_custom_call.1} parent=1 // loop_exit
      _
    %2617 = vsyncpa [#allocation5], 1
    %s2618 = scalar_lea.sflag [#allocation5], 1
    %2619 = vsyncpa %s2618, 1
    %2620 = vsyncpa [#allocation8], 1
    %2621 = vsyncpa [#allocation11], 1
    %2622 = vsyncpa [#allocation6], 1
    %s2623 = scalar_lea.sflag [#allocation6], 1
    %2624 = vsyncpa %s2623, 1

// kernel: tpu_custom_call.1
$region0: #{tpu_custom_call.1}
  #allocation0 [shape = 'u32[]', space=smem, size = 0x4, offset = 0x4, fixed_abs, tag = 'smem constant byte address 0x4 - core index']
  #allocation1 [shape = 'u32[144,128]{1,0:T(1,128)}', space=vmem, size = 0x12000, scoped, tag = 'internal scratch']
  #allocation2 [shape = 'bf16[10,512]{1,0:T(8,128)(2,1)}', space=vmem, size = 0x4000, scoped, tag = 'scratch operand']
  #allocation3 [shape = 'bf16[9,256]{1,0:T(8,128)(2,1)}', space=vmem, size = 0x2000, scoped, tag = 'scratch operand']
  %s0 = inlined_call_operand.hbm [shape: bf16[2,16,512], index: 0, kind: input, shape index: {}]
  %s1 = inlined_call_operand.hbm [shape: bf16[384,128], index: 1, kind: input, shape index: {}]
  %s2 = inlined_call_operand.hbm [shape: bf16[384,128], index: 2, kind: input, shape index: {}]
  %s3 = inlined_call_operand.hbm [shape: bf16[384,128], index: 3, kind: input, shape index: {}]
  %s4 = inlined_call_operand.vmem [shape: f32[3,128], index: 4, kind: input, shape index: {}]
  %s5 = inlined_call_operand.hbm [shape: bf16[2,8,128], index: 5, kind: output, shape index: {}]
  %s6 = sld [smem:[#allocation0]]
  $region77: #{tpu_custom_call.1} parent=0
    _
  %s8 = ssub.s32 1, %s6
  %s9 = scalar_select 0, %s8, %s6
  $region1: #{tpu_custom_call.1} parent=0
    #allocation4 [shape = 'u8[32768]{0}', space=vmem, size = 0x8000, scoped, tag = 'input window, operand 0']
    #allocation5 [shape = 's32[2]{0}', space=sflag, size = 0x8, scoped, tag = 'scoped memory for tpu_custom_call.1']
    #allocation6 [shape = 's32[2]{0}', space=sflag, size = 0x8, scoped, tag = 'scoped memory for tpu_custom_call.1']
    #allocation7 [shape = 'u8[98304]{0}', space=vmem, size = 0x18000, scoped, tag = 'input window, operand 1, single buffered']
    #allocation8 [shape = 's32[1]{0}', space=sflag, size = 0x4, scoped, tag = 'scoped memory for tpu_custom_call.1']
    #allocation9 [shape = 'u8[98304]{0}', space=vmem, size = 0x18000, scoped, tag = 'input window, operand 2, single buffered']
    #allocation10 [shape = 'u8[98304]{0}', space=vmem, size = 0x18000, scoped, tag = 'input window, operand 3, single buffered']
    #allocation11 [shape = 's32[1]{0}', space=sflag, size = 0x4, scoped, tag = 'scoped memory for tpu_custom_call.1']
    #allocation12 [shape = 'u8[4096]{0}', space=vmem, size = 0x1000, scoped, tag = 'output window, operand 0']
    %10 = vsyncpa [#allocation5], 0
    %s11 = scalar_lea.sflag [#allocation5], 1
    %12 = vsyncpa %s11, 0
    %13 = vsyncpa [#allocation8], 0
    %14 = vsyncpa [#allocation11], 0
    %15 = vsyncpa [#allocation6], 0
    %s16 = scalar_lea.sflag [#allocation6], 1
    %17 = vsyncpa %s16, 0
    loop: start=0, step=1, limit=4
    $region2: #{tpu_custom_call.1} parent=1 // loop_pre_header
      _
    $region3: #{tpu_custom_call.1} parent=1 // loop_header
      %s19 = sphi 0, %s23
      %p20 = scmp.ge.s32.totalorder %s19, 4
      %s26 = sphi 0, %s38
      %s27 = sphi 0, %s34
      %s28 = sphi 0, %s26
      %s29 = sphi 0, %s27
      %s30 = sphi 0, %s28
      %s31 = sphi 0, %s29
      %s43 = sphi 0, %s45
      %s46 = sphi 0, %s43
      %s47 = sphi 0, %s46
      %s63 = sphi 0, %s47
      %s67 = sphi 0, %s67
      %s69 = sphi 0, %s67
      %s70 = sphi 0, %s69
      %s84 = sphi 0, %s70
      %s88 = sphi 0, %s88
      %s90 = sphi 0, %s88
      %s91 = sphi 0, %s90
      %s105 = sphi 0, %s91
      %s109 = sphi 0, %s109
      %s111 = sphi 0, %s109
      %s112 = sphi 0, %s111
      %s126 = sphi 0, %s112
      %s130 = sphi 0, %s130
      %s132 = sphi 0, %s130
      %s133 = sphi 0, %s132
      %s147 = sphi 0, %s133
      %s155 = sphi 0, %s157
      %s158 = sphi 0, %s155
      %s159 = sphi 0, %s158
      %s175 = sphi 0, %s159
    $region4: #{tpu_custom_call.1} parent=1 // loop_header_branch
      %22 = sbr.rel (%p20) target = $region8
    $region5: #{tpu_custom_call.1} parent=1 // loop_body
      %s24 = ssub.s32 %s19, 1
      %s25 = ssub.s32 %s19, 2
      %s32 = sadd.s32 1, %s27
      %p33 = scmp.ge.s32.totalorder %s32, 1
      %s34 = scalar_select %p33, 0, %s32
      %s35 = sadd.s32 1, %s26
      %s36 = scalar_select %p33, %s35, %s26
      %p37 = scmp.ge.s32.totalorder %s36, 2
      %s38 = scalar_select %p37, 0, %s36
      %s39 = sadd.s32 %s26, %s27
      %s40 = sadd.s32 %s38, %s34
      %s41 = ssub.s32 %s39, %s40
      %p42 = scmp.eq.s32.totalorder %s41, 0
      %s44 = sadd.s32 %s43, 1
      %s45 = scalar_select %p42, %s43, %s44
      %p48 = pneg %p42
      %p49 = scmp.eq.s32.totalorder %s19, 1
      %p50 = por %p48, %p49
      %p51 = scmp.ne.s32.totalorder %s43, %s46
      %p52 = scmp.eq.s32.totalorder %s19, 0
      %p53 = por %p51, %p52
      %p54 = scmp.ne.s32.totalorder %s43, %s46
      %p55 = scmp.eq.s32.totalorder %s24, 1
      %p56 = por %p54, %p55
      %p57 = scmp.ne.s32.totalorder %s46, %s47
      %p58 = scmp.eq.s32.totalorder %s24, 0
      %p59 = por %p57, %p58
      %p60 = scmp.ne.s32.totalorder %s46, %s47
      %p61 = scmp.eq.s32.totalorder %s25, 1
      %p62 = por %p60, %p61
      %p64 = scmp.ne.s32.totalorder %s47, %s63
      %p65 = scmp.eq.s32.totalorder %s25, 0
      %p66 = por %p64, %p65
      %s68 = sadd.s32 %s67, 1
      %p71 = scmp.eq.s32.totalorder %s19, 1
      %p72 = scmp.ne.s32.totalorder %s67, %s69
      %p73 = scmp.eq.s32.totalorder %s19, 0
      %p74 = por %p72, %p73
      %p75 = scmp.ne.s32.totalorder %s67, %s69
      %p76 = scmp.eq.s32.totalorder %s24, 1
      %p77 = por %p75, %p76
      %p78 = scmp.ne.s32.totalorder %s69, %s70
      %p79 = scmp.eq.s32.totalorder %s24, 0
      %p80 = por %p78, %p79
      %p81 = scmp.ne.s32.totalorder %s69, %s70
      %p82 = scmp.eq.s32.totalorder %s25, 1
      %p83 = por %p81, %p82
      %p85 = scmp.ne.s32.totalorder %s70, %s84
      %p86 = scmp.eq.s32.totalorder %s25, 0
      %p87 = por %p85, %p86
      %s89 = sadd.s32 %s88, 1
      %p92 = scmp.eq.s32.totalorder %s19, 1
      %p93 = scmp.ne.s32.totalorder %s88, %s90
      %p94 = scmp.eq.s32.totalorder %s19, 0
      %p95 = por %p93, %p94
      %p96 = scmp.ne.s32.totalorder %s88, %s90
      %p97 = scmp.eq.s32.totalorder %s24, 1
      %p98 = por %p96, %p97
      %p99 = scmp.ne.s32.totalorder %s90, %s91
      %p100 = scmp.eq.s32.totalorder %s24, 0
      %p101 = por %p99, %p100
      %p102 = scmp.ne.s32.totalorder %s90, %s91
      %p103 = scmp.eq.s32.totalorder %s25, 1
      %p104 = por %p102, %p103
      %p106 = scmp.ne.s32.totalorder %s91, %s105
      %p107 = scmp.eq.s32.totalorder %s25, 0
      %p108 = por %p106, %p107
      %s110 = sadd.s32 %s109, 1
      %p113 = scmp.eq.s32.totalorder %s19, 1
      %p114 = scmp.ne.s32.totalorder %s109, %s111
      %p115 = scmp.eq.s32.totalorder %s19, 0
      %p116 = por %p114, %p115
      %p117 = scmp.ne.s32.totalorder %s109, %s111
      %p118 = scmp.eq.s32.totalorder %s24, 1
      %p119 = por %p117, %p118
      %p120 = scmp.ne.s32.totalorder %s111, %s112
      %p121 = scmp.eq.s32.totalorder %s24, 0
      %p122 = por %p120, %p121
      %p123 = scmp.ne.s32.totalorder %s111, %s112
      %p124 = scmp.eq.s32.totalorder %s25, 1
      %p125 = por %p123, %p124
      %p127 = scmp.ne.s32.totalorder %s112, %s126
      %p128 = scmp.eq.s32.totalorder %s25, 0
      %p129 = por %p127, %p128
      %s131 = sadd.s32 %s130, 1
      %p134 = scmp.eq.s32.totalorder %s19, 1
      %p135 = scmp.ne.s32.totalorder %s130, %s132
      %p136 = scmp.eq.s32.totalorder %s19, 0
      %p137 = por %p135, %p136
      %p138 = scmp.ne.s32.totalorder %s130, %s132
      %p139 = scmp.eq.s32.totalorder %s24, 1
      %p140 = por %p138, %p139
      %p141 = scmp.ne.s32.totalorder %s132, %s133
      %p142 = scmp.eq.s32.totalorder %s24, 0
      %p143 = por %p141, %p142
      %p144 = scmp.ne.s32.totalorder %s132, %s133
      %p145 = scmp.eq.s32.totalorder %s25, 1
      %p146 = por %p144, %p145
      %p148 = scmp.ne.s32.totalorder %s133, %s147
      %p149 = scmp.eq.s32.totalorder %s25, 0
      %p150 = por %p148, %p149
      %s151 = ssub.s32 %s26, %s38
      %s152 = ssub.s32 %s27, %s34
      %s153 = sor.u32 %s151, %s152
      %p154 = scmp.eq.s32.totalorder %s153, 0
      %s156 = sadd.s32 %s155, 1
      %s157 = scalar_select %p154, %s155, %s156
      %p160 = pneg %p154
      %p161 = scmp.eq.s32.totalorder %s19, 1
      %p162 = por %p160, %p161
      %p163 = scmp.ne.s32.totalorder %s155, %s158
      %p164 = scmp.eq.s32.totalorder %s19, 0
      %p165 = por %p163, %p164
      %p166 = scmp.ne.s32.totalorder %s155, %s158
      %p167 = scmp.eq.s32.totalorder %s24, 1
      %p168 = por %p166, %p167
      %p169 = scmp.ne.s32.totalorder %s158, %s159
      %p170 = scmp.eq.s32.totalorder %s24, 0
      %p171 = por %p169, %p170
      %p172 = scmp.ne.s32.totalorder %s158, %s159
      %p173 = scmp.eq.s32.totalorder %s25, 1
      %p174 = por %p172, %p173
      %p176 = scmp.ne.s32.totalorder %s159, %s175
      %p177 = scmp.eq.s32.totalorder %s25, 0
      %p178 = por %p176, %p177
      %p179 = scmp.le.s32.totalorder 1, %s19
      %p180 = scmp.lt.s32.totalorder %s19, 3
      %p181 = pnand %p179, %p180
      %p182 = pneg %p181
      // Predicated region
      $region9: #{tpu_custom_call.1} parent=5 // pred_check
        _
      $region10: #{tpu_custom_call.1} parent=5 // pred_check_branch
        %184 = sbr.rel (%p181) target = $region12
      $region11: #{tpu_custom_call.1} parent=5 // pred_region
        %s185 = ssub.s32 %s19, 1
        // Predicated region
        $region13: #{tpu_custom_call.1} parent=11 // pred_check
          %p186 = pneg %p80
        $region14: #{tpu_custom_call.1} parent=11 // pred_check_branch
          %188 = sbr.rel (%p186) target = $region16
        $region15: #{tpu_custom_call.1} parent=11 // pred_region
          %s190 = ssub.s32 3072, 3072
          %191 = vsyncadd [#allocation8], %s190
          %s192 = sshll.u32 [#allocation7], 4
          %s193 = int_to_ptr.vmem [resolvable:$true] %s192
          %198 = dma.hbm_to_vmem [thread:$0]  %s1, 3072, %s193, [#allocation8], 64, 64, 4
        $region16: #{tpu_custom_call.1} parent=11 // pred_fallthru
          _
        // Predicated region
        $region17: #{tpu_custom_call.1} parent=11 // pred_check
          %p199 = pneg %p101
        $region18: #{tpu_custom_call.1} parent=11 // pred_check_branch
          %201 = sbr.rel (%p199) target = $region20
        $region19: #{tpu_custom_call.1} parent=11 // pred_region
          %s203 = ssub.s32 3072, 3072
          %204 = vsyncadd [#allocation8], %s203
          %s205 = sshll.u32 [#allocation9], 4
          %s206 = int_to_ptr.vmem [resolvable:$true] %s205
          %211 = dma.hbm_to_vmem [thread:$0]  %s2, 3072, %s206, [#allocation8], 64, 64, 4
        $region20: #{tpu_custom_call.1} parent=11 // pred_fallthru
          _
        // Predicated region
        $region21: #{tpu_custom_call.1} parent=11 // pred_check
          %p212 = pneg %p122
        $region22: #{tpu_custom_call.1} parent=11 // pred_check_branch
          %214 = sbr.rel (%p212) target = $region24
        $region23: #{tpu_custom_call.1} parent=11 // pred_region
          %s216 = ssub.s32 3072, 3072
          %217 = vsyncadd [#allocation11], %s216
          %s218 = sshll.u32 [#allocation10], 4
          %s219 = int_to_ptr.vmem [resolvable:$true] %s218
          %224 = dma.hbm_to_vmem [thread:$0]  %s3, 3072, %s219, [#allocation11], 64, 64, 4
        $region24: #{tpu_custom_call.1} parent=11 // pred_fallthru
          _
        // Predicated region
        $region25: #{tpu_custom_call.1} parent=11 // pred_check
          %p225 = pneg %p143
        $region26: #{tpu_custom_call.1} parent=11 // pred_check_branch
          %227 = sbr.rel (%p225) target = $region28
        $region27: #{tpu_custom_call.1} parent=11 // pred_region
          _
        $region28: #{tpu_custom_call.1} parent=11 // pred_fallthru
          _
      $region12: #{tpu_custom_call.1} parent=5 // pred_fallthru
        _
      %p228 = scmp.lt.s32.totalorder %s19, 2
      // Predicated region
      $region29: #{tpu_custom_call.1} parent=5 // pred_check
        %p229 = pneg %p228
      $region30: #{tpu_custom_call.1} parent=5 // pred_check_branch
        %231 = sbr.rel (%p229) target = $region32
      $region31: #{tpu_custom_call.1} parent=5 // pred_region
        // Predicated region
        $region33: #{tpu_custom_call.1} parent=31 // pred_check
          %p232 = pneg %p53
        $region34: #{tpu_custom_call.1} parent=31 // pred_check_branch
          %234 = sbr.rel (%p232) target = $region36
        $region35: #{tpu_custom_call.1} parent=31 // pred_region
          %s235 = sand.u32 %s43, 1
          %s236 = scalar_lea.sflag [#allocation5], %s235
          %s237 = sand.u32 %s43, 1
          %s238 = smul.addr %s237, 32
          %s239 = scalar_lea.vmem [#allocation4], %s238
          %s240 = sadd.s32 %s26, %s27
          %s242 = ssub.s32 512, 512
          %243 = vsyncadd %s236, %s242
          %s244 = smul.addr %s240, 8
          %s245 = smul.addr %s244, 64
          %s246 = scalar_lea.hbm %s0, %s245
          %s247 = sshll.u32 %s239, 4
          %s248 = int_to_ptr.vmem [resolvable:$true] %s247
          %253 = dma.hbm_to_vmem [thread:$0]  %s246, 512, %s248, %s236, 256, 256, 16
        $region36: #{tpu_custom_call.1} parent=31 // pred_fallthru
          _
      $region32: #{tpu_custom_call.1} parent=5 // pred_fallthru
        _
      %p254 = scmp.le.s32.totalorder 1, %s19
      %p255 = scmp.lt.s32.totalorder %s19, 3
      %p256 = pnand %p254, %p255
      %p257 = pneg %p256
      // Predicated region
      $region37: #{tpu_custom_call.1} parent=5 // pred_check
        _
      $region38: #{tpu_custom_call.1} parent=5 // pred_check_branch
        %259 = sbr.rel (%p256) target = $region40
      $region39: #{tpu_custom_call.1} parent=5 // pred_region
        %s260 = ssub.s32 %s19, 1
        %s261 = sand.u32 %s46, 1
        %s262 = scalar_lea.sflag [#allocation5], %s261
        %s263 = sand.u32 %s46, 1
        %s264 = smul.addr %s263, 32
        %s265 = scalar_lea.vmem [#allocation4], %s264
        // Predicated region
        $region41: #{tpu_custom_call.1} parent=39 // pred_check
          %p266 = pneg %p59
        $region42: #{tpu_custom_call.1} parent=39 // pred_check_branch
          %268 = sbr.rel (%p266) target = $region44
        $region43: #{tpu_custom_call.1} parent=39 // pred_region
          %269 = dma.done %s262, 512
        $region44: #{tpu_custom_call.1} parent=39 // pred_fallthru
          _
        // Predicated region
        $region45: #{tpu_custom_call.1} parent=39 // pred_check
          %p270 = pneg %p80
        $region46: #{tpu_custom_call.1} parent=39 // pred_check_branch
          %272 = sbr.rel (%p270) target = $region48
        $region47: #{tpu_custom_call.1} parent=39 // pred_region
          %273 = dma.done [#allocation8], 3072
        $region48: #{tpu_custom_call.1} parent=39 // pred_fallthru
          _
        // Predicated region
        $region49: #{tpu_custom_call.1} parent=39 // pred_check
          %p274 = pneg %p101
        $region50: #{tpu_custom_call.1} parent=39 // pred_check_branch
          %276 = sbr.rel (%p274) target = $region52
        $region51: #{tpu_custom_call.1} parent=39 // pred_region
          %277 = dma.done [#allocation8], 3072
        $region52: #{tpu_custom_call.1} parent=39 // pred_fallthru
          _
        // Predicated region
        $region53: #{tpu_custom_call.1} parent=39 // pred_check
          %p278 = pneg %p122
        $region54: #{tpu_custom_call.1} parent=39 // pred_check_branch
          %280 = sbr.rel (%p278) target = $region56
        $region55: #{tpu_custom_call.1} parent=39 // pred_region
          %281 = dma.done [#allocation11], 3072
        $region56: #{tpu_custom_call.1} parent=39 // pred_fallthru
          _
        %s282 = sand.u32 %s46, 1
        %s283 = scalar_lea.sflag [#allocation5], %s282
        %s284 = sand.u32 %s46, 1
        %s285 = smul.addr %s284, 32
        %s286 = scalar_lea.vmem [#allocation4], %s285
        %p287 = pneg %p59
        %p288 = pneg %p56
        %p289 = pneg %p80
        %p290 = pneg %p77
        %p291 = pneg %p101
        %p292 = pneg %p98
        %p293 = pneg %p122
        %p294 = pneg %p119
        %p295 = pneg %p143
        %p296 = pneg %p140
        %p297 = pneg %p171
        %p298 = pneg %p168
        %s299 = sand.u32 %s158, 1
        %s300 = scalar_lea.sflag [#allocation6], %s299
        %s301 = sand.u32 %s158, 1
        %s302 = smul.addr %s301, 4
        %s303 = scalar_lea.vmem [#allocation12], %s302
        %s304 = sadd.s32 %s28, %s29
        %v306 = vld [vmem:[%s4] sm:$0x1]
        %v307 = vld [vmem:[%s4 + $0x1] sm:$0x1]
        %v308 = vld [vmem:[%s4 + $0x2] sm:$0x1]
        %v309 = vld [vmem:[%s265] sm:$0xff]
        %v310 = vld [vmem:[%s265 + $0x8] sm:$0xf]
        %v311 = vld [vmem:[%s265 + $0x10] sm:$0x11]
        %v312 = vld [vmem:[%s265 + $0x18] sm:$0x1]
        %v313 = vld [vmem:[#allocation7] sm:$0xf]
        %v314 = vld [vmem:[#allocation7 + $0x4] sm:$0xf]
        %v315 = vld [vmem:[#allocation7 + $0x8] sm:$0xf]
        %v316 = vld [vmem:[#allocation7 + $0xc] sm:$0xf]
        %v317 = vld [vmem:[#allocation7 + $0x10] sm:$0xf]
        %v318 = vld [vmem:[#allocation7 + $0x14] sm:$0xf]
        %v319 = vld [vmem:[#allocation7 + $0x18] sm:$0xf]
        %v320 = vld [vmem:[#allocation7 + $0x1c] sm:$0xf]
        %v321 = vld [vmem:[#allocation7 + $0x20] sm:$0xf]
        %v322 = vld [vmem:[#allocation7 + $0x24] sm:$0xf]
        %v323 = vld [vmem:[#allocation7 + $0x28] sm:$0xf]
        %v324 = vld [vmem:[#allocation7 + $0x2c] sm:$0xf]
        %v325 = vld [vmem:[#allocation7 + $0x30] sm:$0xf]
        %v326 = vld [vmem:[#allocation7 + $0x34] sm:$0xf]
        %v327 = vld [vmem:[#allocation7 + $0x38] sm:$0xf]
        %v328 = vld [vmem:[#allocation7 + $0x3c] sm:$0xf]
        %v329 = vld [vmem:[#allocation7 + $0x40] sm:$0xf]
        %v330 = vld [vmem:[#allocation7 + $0x44] sm:$0xf]
        %v331 = vld [vmem:[#allocation7 + $0x48] sm:$0xf]
        %v332 = vld [vmem:[#allocation7 + $0x4c] sm:$0xf]
        %v333 = vld [vmem:[#allocation7 + $0x50] sm:$0xf]
        %v334 = vld [vmem:[#allocation7 + $0x54] sm:$0xf]
        %v335 = vld [vmem:[#allocation7 + $0x58] sm:$0xf]
        %v336 = vld [vmem:[#allocation7 + $0x5c] sm:$0xf]
        %v337 = vld [vmem:[#allocation7 + $0x60] sm:$0xf]
        %v338 = vld [vmem:[#allocation7 + $0x64] sm:$0xf]
        %v339 = vld [vmem:[#allocation7 + $0x68] sm:$0xf]
        %v340 = vld [vmem:[#allocation7 + $0x6c] sm:$0xf]
        %v341 = vld [vmem:[#allocation7 + $0x70] sm:$0xf]
        %v342 = vld [vmem:[#allocation7 + $0x74] sm:$0xf]
        %v343 = vld [vmem:[#allocation7 + $0x78] sm:$0xf]
        %v344 = vld [vmem:[#allocation7 + $0x7c] sm:$0xf]
        %v345 = vld [vmem:[#allocation7 + $0x80] sm:$0xf]
        %v346 = vld [vmem:[#allocation7 + $0x84] sm:$0xf]
        %v347 = vld [vmem:[#allocation7 + $0x88] sm:$0xf]
        %v348 = vld [vmem:[#allocation7 + $0x8c] sm:$0xf]
        %v349 = vld [vmem:[#allocation7 + $0x90] sm:$0xf]
        %v350 = vld [vmem:[#allocation7 + $0x94] sm:$0xf]
        %v351 = vld [vmem:[#allocation7 + $0x98] sm:$0xf]
        %v352 = vld [vmem:[#allocation7 + $0x9c] sm:$0xf]
        %v353 = vld [vmem:[#allocation7 + $0xa0] sm:$0xf]
        %v354 = vld [vmem:[#allocation7 + $0xa4] sm:$0xf]
        %v355 = vld [vmem:[#allocation7 + $0xa8] sm:$0xf]
        %v356 = vld [vmem:[#allocation7 + $0xac] sm:$0xf]
        %v357 = vld [vmem:[#allocation7 + $0xb0] sm:$0xf]
        %v358 = vld [vmem:[#allocation7 + $0xb4] sm:$0xf]
        %v359 = vld [vmem:[#allocation7 + $0xb8] sm:$0xf]
        %v360 = vld [vmem:[#allocation7 + $0xbc] sm:$0xf]
        %v361 = vlaneseq
        %v362 = vshrl.u32 %v361, 7
        %v363 = vsub.s32 0, %v362
        %v364 = vrot.slane %v306, %v363
        %v369 = vunpack.c.l.b16 %v309
        %v370 = vunpack.c.h.b16 %v309
        %v371 = vunpack.c.l.b16 %v310
        %v372 = vunpack.c.l.b16 %v311
        %v373 = vunpack.c.h.b16 %v311
        %v374 = vunpack.c.l.b16 %v312
        %v375 = vpack.c.b16 %v372, %v369
        %v376 = vpack.c.b16 %v373, %v370
        %v377 = vpack.c.b16 %v374, %v371
        %v429 = vunpack.c.l.b16 %v313
        %v430 = vunpack.c.l.b16 %v314
        %v431 = vunpack.c.l.b16 %v315
        %v432 = vunpack.c.l.b16 %v316
        %v433 = vunpack.c.l.b16 %v317
        %v434 = vunpack.c.l.b16 %v318
        %v435 = vunpack.c.l.b16 %v319
        %v436 = vunpack.c.l.b16 %v320
        %v437 = vunpack.c.l.b16 %v321
        %v438 = vunpack.c.l.b16 %v322
        %v439 = vunpack.c.l.b16 %v323
        %v440 = vunpack.c.l.b16 %v324
        %v441 = vunpack.c.l.b16 %v325
        %v442 = vunpack.c.l.b16 %v326
        %v443 = vunpack.c.l.b16 %v327
        %v444 = vunpack.c.l.b16 %v328
        %v445 = vunpack.c.l.b16 %v329
        %v446 = vunpack.c.l.b16 %v330
        %v447 = vunpack.c.l.b16 %v331
        %v448 = vunpack.c.l.b16 %v332
        %v449 = vunpack.c.l.b16 %v333
        %v450 = vunpack.c.l.b16 %v334
        %v451 = vunpack.c.l.b16 %v335
        %v452 = vunpack.c.l.b16 %v336
        %v453 = vunpack.c.l.b16 %v337
        %v454 = vunpack.c.l.b16 %v338
        %v455 = vunpack.c.l.b16 %v339
        %v456 = vunpack.c.l.b16 %v340
        %v457 = vunpack.c.l.b16 %v341
        %v458 = vunpack.c.l.b16 %v342
        %v459 = vunpack.c.l.b16 %v343
        %v460 = vunpack.c.l.b16 %v344
        %v461 = vunpack.c.l.b16 %v345
        %v462 = vunpack.c.l.b16 %v346
        %v463 = vunpack.c.l.b16 %v347
        %v464 = vunpack.c.l.b16 %v348
        %v465 = vunpack.c.l.b16 %v349
        %v466 = vunpack.c.l.b16 %v350
        %v467 = vunpack.c.l.b16 %v351
        %v468 = vunpack.c.l.b16 %v352
        %v469 = vunpack.c.l.b16 %v353
        %v470 = vunpack.c.l.b16 %v354
        %v471 = vunpack.c.l.b16 %v355
        %v472 = vunpack.c.l.b16 %v356
        %v473 = vunpack.c.l.b16 %v357
        %v474 = vunpack.c.l.b16 %v358
        %v475 = vunpack.c.l.b16 %v359
        %v476 = vunpack.c.l.b16 %v360
        %v477 = vpack.c.b16 %v430, %v429
        %v478 = vpack.c.b16 %v432, %v431
        %v479 = vpack.c.b16 %v434, %v433
        %v480 = vpack.c.b16 %v436, %v435
        %v481 = vpack.c.b16 %v438, %v437
        %v482 = vpack.c.b16 %v440, %v439
        %v483 = vpack.c.b16 %v442, %v441
        %v484 = vpack.c.b16 %v444, %v443
        %v485 = vpack.c.b16 %v446, %v445
        %v486 = vpack.c.b16 %v448, %v447
        %v487 = vpack.c.b16 %v450, %v449
        %v488 = vpack.c.b16 %v452, %v451
        %v489 = vpack.c.b16 %v454, %v453
        %v490 = vpack.c.b16 %v456, %v455
        %v491 = vpack.c.b16 %v458, %v457
        %v492 = vpack.c.b16 %v460, %v459
        %v493 = vpack.c.b16 %v462, %v461
        %v494 = vpack.c.b16 %v464, %v463
        %v495 = vpack.c.b16 %v466, %v465
        %v496 = vpack.c.b16 %v468, %v467
        %v497 = vpack.c.b16 %v470, %v469
        %v498 = vpack.c.b16 %v472, %v471
        %v499 = vpack.c.b16 %v474, %v473
        %v500 = vpack.c.b16 %v476, %v475
        %525 = vmatprep.subr.bf16.mxu0 0
        %526 = vmatpush1.bf16.msra.mxu0 %v484
        %527 = vmatprep.subr.bf16.mxu0 0
        %528 = vmatpush1.bf16.msra.mxu0 %v483
        %529 = vmatprep.subr.bf16.mxu0 0
        %530 = vmatpush1.bf16.msra.mxu0 %v482
        %531 = vmatprep.subr.bf16.mxu0 0
        %532 = vmatpush1.bf16.msra.mxu0 %v481
        %533 = vmatprep.subr.bf16.mxu0 0
        %534 = vmatpush1.bf16.msra.mxu0 %v480
        %535 = vmatprep.subr.bf16.mxu0 0
        %536 = vmatpush1.bf16.msra.mxu0 %v479
        %537 = vmatprep.subr.bf16.mxu0 0
        %538 = vmatpush1.bf16.msra.mxu0 %v478
        %539 = vmatprep.subr.bf16.mxu0 0
        %540 = vmatpush1.bf16.msra.mxu0 %v477
        %541 = vmatprep.subr.bf16.mxu0 0
        %542 = vmatpush2.bf16.msra.mxu0 %v492
        %543 = vmatprep.subr.bf16.mxu0 0
        %544 = vmatpush2.bf16.msra.mxu0 %v491
        %545 = vmatprep.subr.bf16.mxu0 0
        %546 = vmatpush2.bf16.msra.mxu0 %v490
        %547 = vmatprep.subr.bf16.mxu0 0
        %548 = vmatpush2.bf16.msra.mxu0 %v489
        %549 = vmatprep.subr.bf16.mxu0 0
        %550 = vmatpush2.bf16.msra.mxu0 %v488
        %551 = vmatprep.subr.bf16.mxu0 0
        %552 = vmatpush2.bf16.msra.mxu0 %v487
        %553 = vmatprep.subr.bf16.mxu0 0
        %554 = vmatpush2.bf16.msra.mxu0 %v486
        %555 = vmatprep.subr.bf16.mxu0 0
        %556 = vmatpush2.bf16.msra.mxu0 %v485
        %557 = vmatprep.mubr.bf16.mxu0 %v376
        %558 = vmatmul.mubr.bf16.gmra.mxu0 %v375
        %v559 = vpop.f32.mrf.mxu0
        %v560 = vadd.f32 %v364, %v559
        %v561 = vpop.f32.mrf.mxu0
        %v562 = vpop.f32.mrf.mxu0
        %v563 = vadd.f32 %v364, %v562
        %v564 = vpop.f32.mrf.mxu0
        %565 = vdwg.mxu0
        %566 = vmatprep.subr.bf16.mxu0 0
        %567 = vmatpush1.bf16.msra.mxu0 %v500
        %568 = vmatprep.subr.bf16.mxu0 0
        %569 = vmatpush1.bf16.msra.mxu0 %v499
        %570 = vmatprep.subr.bf16.mxu0 0
        %571 = vmatpush1.bf16.msra.mxu0 %v498
        %572 = vmatprep.subr.bf16.mxu0 0
        %573 = vmatpush1.bf16.msra.mxu0 %v497
        %574 = vmatprep.subr.bf16.mxu0 0
        %575 = vmatpush1.bf16.msra.mxu0 %v496
        %576 = vmatprep.subr.bf16.mxu0 0
        %577 = vmatpush1.bf16.msra.mxu0 %v495
        %578 = vmatprep.subr.bf16.mxu0 0
        %579 = vmatpush1.bf16.msra.mxu0 %v494
        %580 = vmatprep.subr.bf16.mxu0 0
        %581 = vmatpush1.bf16.msra.mxu0 %v493
        %582 = vmatprep.subr.bf16.mxu0 0
        %583 = vmatpush2.bf16.msra.mxu0 0
        %584 = vmatprep.subr.bf16.mxu0 0
        %585 = vmatpush2.bf16.msra.mxu0 0
        %586 = vmatprep.subr.bf16.mxu0 0
        %587 = vmatpush2.bf16.msra.mxu0 0
        %588 = vmatprep.subr.bf16.mxu0 0
        %589 = vmatpush2.bf16.msra.mxu0 0
        %590 = vmatprep.subr.bf16.mxu0 0
        %591 = vmatpush2.bf16.msra.mxu0 0
        %592 = vmatprep.subr.bf16.mxu0 0
        %593 = vmatpush2.bf16.msra.mxu0 0
        %594 = vmatprep.subr.bf16.mxu0 0
        %595 = vmatpush2.bf16.msra.mxu0 0
        %596 = vmatprep.subr.bf16.mxu0 0
        %597 = vmatpush2.bf16.msra.mxu0 0
        %598 = vmatprep.mubr.bf16.mxu0 0
        %599 = vmatmul.mubr.bf16.gmra.mxu0 %v377
        %v600 = vpop.f32.mrf.mxu0
        %v601 = vadd.f32 %v560, %v600
        %v602 = vpop.f32.mrf.mxu0
        %v603 = vpop.f32.mrf.mxu0
        %v604 = vadd.f32 %v563, %v603
        %v605 = vpop.f32.mrf.mxu0
        %606 = vdwg.mxu0
        %v607 = vmul.f32 %v601, 0.5
        %v608 = vmul.f32 %v604, 0.5
        %v609 = vmul.f32 %v601, 0.70710677
        %v610 = vmul.f32 %v604, 0.70710677
        %v611 = verf.f32.pop %v609
        %v612 = verf.f32.pop %v610
        %v613 = vadd.f32 %v611, 1.0
        %v614 = vadd.f32 %v612, 1.0
        %v615 = vmul.f32 %v607, %v613
        %v616 = vmul.f32 %v608, %v614
        %v617 = vpack.c.bf16 %v616, %v615
        %v619 = vunpack.c.l.b16 %v617
        %v620 = vunpack.c.h.b16 %v617
        %v621 = vpack.c.b16 %v619, %v619
        %v622 = vpack.c.b16 %v620, %v620
        %625 = vst [vmem:[#allocation2] sm:$0xf] %v621
        %626 = vst [vmem:[#allocation2 + $0x10] sm:$0x1] %v622
        %v627 = vld [vmem:[%s265 + $0x4] sm:$0xff]
        %v628 = vld [vmem:[%s265 + $0xc] sm:$0xf]
        %v629 = vld [vmem:[%s265 + $0x14] sm:$0x11]
        %v630 = vld [vmem:[%s265 + $0x1c] sm:$0x1]
        %v631 = vld [vmem:[#allocation7] sm:$0xf]
        %v632 = vld [vmem:[#allocation7 + $0x4] sm:$0xf]
        %v633 = vld [vmem:[#allocation7 + $0x8] sm:$0xf]
        %v634 = vld [vmem:[#allocation7 + $0xc] sm:$0xf]
        %v635 = vld [vmem:[#allocation7 + $0x10] sm:$0xf]
        %v636 = vld [vmem:[#allocation7 + $0x14] sm:$0xf]
        %v637 = vld [vmem:[#allocation7 + $0x18] sm:$0xf]
        %v638 = vld [vmem:[#allocation7 + $0x1c] sm:$0xf]
        %v639 = vld [vmem:[#allocation7 + $0x20] sm:$0xf]
        %v640 = vld [vmem:[#allocation7 + $0x24] sm:$0xf]
        %v641 = vld [vmem:[#allocation7 + $0x28] sm:$0xf]
        %v642 = vld [vmem:[#allocation7 + $0x2c] sm:$0xf]
        %v643 = vld [vmem:[#allocation7 + $0x30] sm:$0xf]
        %v644 = vld [vmem:[#allocation7 + $0x34] sm:$0xf]
        %v645 = vld [vmem:[#allocation7 + $0x38] sm:$0xf]
        %v646 = vld [vmem:[#allocation7 + $0x3c] sm:$0xf]
        %v647 = vld [vmem:[#allocation7 + $0x40] sm:$0xf]
        %v648 = vld [vmem:[#allocation7 + $0x44] sm:$0xf]
        %v649 = vld [vmem:[#allocation7 + $0x48] sm:$0xf]
        %v650 = vld [vmem:[#allocation7 + $0x4c] sm:$0xf]
        %v651 = vld [vmem:[#allocation7 + $0x50] sm:$0xf]
        %v652 = vld [vmem:[#allocation7 + $0x54] sm:$0xf]
        %v653 = vld [vmem:[#allocation7 + $0x58] sm:$0xf]
        %v654 = vld [vmem:[#allocation7 + $0x5c] sm:$0xf]
        %v655 = vld [vmem:[#allocation7 + $0x60] sm:$0xf]
        %v656 = vld [vmem:[#allocation7 + $0x64] sm:$0xf]
        %v657 = vld [vmem:[#allocation7 + $0x68] sm:$0xf]
        %v658 = vld [vmem:[#allocation7 + $0x6c] sm:$0xf]
        %v659 = vld [vmem:[#allocation7 + $0x70] sm:$0xf]
        %v660 = vld [vmem:[#allocation7 + $0x74] sm:$0xf]
        %v661 = vld [vmem:[#allocation7 + $0x78] sm:$0xf]
        %v662 = vld [vmem:[#allocation7 + $0x7c] sm:$0xf]
        %v663 = vld [vmem:[#allocation7 + $0x80] sm:$0xf]
        %v664 = vld [vmem:[#allocation7 + $0x84] sm:$0xf]
        %v665 = vld [vmem:[#allocation7 + $0x88] sm:$0xf]
        %v666 = vld [vmem:[#allocation7 + $0x8c] sm:$0xf]
        %v667 = vld [vmem:[#allocation7 + $0x90] sm:$0xf]
        %v668 = vld [vmem:[#allocation7 + $0x94] sm:$0xf]
        %v669 = vld [vmem:[#allocation7 + $0x98] sm:$0xf]
        %v670 = vld [vmem:[#allocation7 + $0x9c] sm:$0xf]
        %v671 = vld [vmem:[#allocation7 + $0xa0] sm:$0xf]
        %v672 = vld [vmem:[#allocation7 + $0xa4] sm:$0xf]
        %v673 = vld [vmem:[#allocation7 + $0xa8] sm:$0xf]
        %v674 = vld [vmem:[#allocation7 + $0xac] sm:$0xf]
        %v675 = vld [vmem:[#allocation7 + $0xb0] sm:$0xf]
        %v676 = vld [vmem:[#allocation7 + $0xb4] sm:$0xf]
        %v677 = vld [vmem:[#allocation7 + $0xb8] sm:$0xf]
        %v678 = vld [vmem:[#allocation7 + $0xbc] sm:$0xf]
        %v683 = vunpack.c.l.b16 %v627
        %v684 = vunpack.c.h.b16 %v627
        %v685 = vunpack.c.l.b16 %v628
        %v686 = vunpack.c.l.b16 %v629
        %v687 = vunpack.c.h.b16 %v629
        %v688 = vunpack.c.l.b16 %v630
        %v689 = vpack.c.b16 %v686, %v683
        %v690 = vpack.c.b16 %v687, %v684
        %v691 = vpack.c.b16 %v688, %v685
        %v743 = vunpack.c.l.b16 %v631
        %v744 = vunpack.c.l.b16 %v632
        %v745 = vunpack.c.l.b16 %v633
        %v746 = vunpack.c.l.b16 %v634
        %v747 = vunpack.c.l.b16 %v635
        %v748 = vunpack.c.l.b16 %v636
        %v749 = vunpack.c.l.b16 %v637
        %v750 = vunpack.c.l.b16 %v638
        %v751 = vunpack.c.l.b16 %v639
        %v752 = vunpack.c.l.b16 %v640
        %v753 = vunpack.c.l.b16 %v641
        %v754 = vunpack.c.l.b16 %v642
        %v755 = vunpack.c.l.b16 %v643
        %v756 = vunpack.c.l.b16 %v644
        %v757 = vunpack.c.l.b16 %v645
        %v758 = vunpack.c.l.b16 %v646
        %v759 = vunpack.c.l.b16 %v647
        %v760 = vunpack.c.l.b16 %v648
        %v761 = vunpack.c.l.b16 %v649
        %v762 = vunpack.c.l.b16 %v650
        %v763 = vunpack.c.l.b16 %v651
        %v764 = vunpack.c.l.b16 %v652
        %v765 = vunpack.c.l.b16 %v653
        %v766 = vunpack.c.l.b16 %v654
        %v767 = vunpack.c.l.b16 %v655
        %v768 = vunpack.c.l.b16 %v656
        %v769 = vunpack.c.l.b16 %v657
        %v770 = vunpack.c.l.b16 %v658
        %v771 = vunpack.c.l.b16 %v659
        %v772 = vunpack.c.l.b16 %v660
        %v773 = vunpack.c.l.b16 %v661
        %v774 = vunpack.c.l.b16 %v662
        %v775 = vunpack.c.l.b16 %v663
        %v776 = vunpack.c.l.b16 %v664
        %v777 = vunpack.c.l.b16 %v665
        %v778 = vunpack.c.l.b16 %v666
        %v779 = vunpack.c.l.b16 %v667
        %v780 = vunpack.c.l.b16 %v668
        %v781 = vunpack.c.l.b16 %v669
        %v782 = vunpack.c.l.b16 %v670
        %v783 = vunpack.c.l.b16 %v671
        %v784 = vunpack.c.l.b16 %v672
        %v785 = vunpack.c.l.b16 %v673
        %v786 = vunpack.c.l.b16 %v674
        %v787 = vunpack.c.l.b16 %v675
        %v788 = vunpack.c.l.b16 %v676
        %v789 = vunpack.c.l.b16 %v677
        %v790 = vunpack.c.l.b16 %v678
        %v791 = vpack.c.b16 %v744, %v743
        %v792 = vpack.c.b16 %v746, %v745
        %v793 = vpack.c.b16 %v748, %v747
        %v794 = vpack.c.b16 %v750, %v749
        %v795 = vpack.c.b16 %v752, %v751
        %v796 = vpack.c.b16 %v754, %v753
        %v797 = vpack.c.b16 %v756, %v755
        %v798 = vpack.c.b16 %v758, %v757
        %v799 = vpack.c.b16 %v760, %v759
        %v800 = vpack.c.b16 %v762, %v761
        %v801 = vpack.c.b16 %v764, %v763
        %v802 = vpack.c.b16 %v766, %v765
        %v803 = vpack.c.b16 %v768, %v767
        %v804 = vpack.c.b16 %v770, %v769
        %v805 = vpack.c.b16 %v772, %v771
        %v806 = vpack.c.b16 %v774, %v773
        %v807 = vpack.c.b16 %v776, %v775
        %v808 = vpack.c.b16 %v778, %v777
        %v809 = vpack.c.b16 %v780, %v779
        %v810 = vpack.c.b16 %v782, %v781
        %v811 = vpack.c.b16 %v784, %v783
        %v812 = vpack.c.b16 %v786, %v785
        %v813 = vpack.c.b16 %v788, %v787
        %v814 = vpack.c.b16 %v790, %v789
        %839 = vmatprep.subr.bf16.mxu0 0
        %840 = vmatpush1.bf16.msra.mxu0 %v798
        %841 = vmatprep.subr.bf16.mxu0 0
        %842 = vmatpush1.bf16.msra.mxu0 %v797
        %843 = vmatprep.subr.bf16.mxu0 0
        %844 = vmatpush1.bf16.msra.mxu0 %v796
        %845 = vmatprep.subr.bf16.mxu0 0
        %846 = vmatpush1.bf16.msra.mxu0 %v795
        %847 = vmatprep.subr.bf16.mxu0 0
        %848 = vmatpush1.bf16.msra.mxu0 %v794
        %849 = vmatprep.subr.bf16.mxu0 0
        %850 = vmatpush1.bf16.msra.mxu0 %v793
        %851 = vmatprep.subr.bf16.mxu0 0
        %852 = vmatpush1.bf16.msra.mxu0 %v792
        %853 = vmatprep.subr.bf16.mxu0 0
        %854 = vmatpush1.bf16.msra.mxu0 %v791
        %855 = vmatprep.subr.bf16.mxu0 0
        %856 = vmatpush2.bf16.msra.mxu0 %v806
        %857 = vmatprep.subr.bf16.mxu0 0
        %858 = vmatpush2.bf16.msra.mxu0 %v805
        %859 = vmatprep.subr.bf16.mxu0 0
        %860 = vmatpush2.bf16.msra.mxu0 %v804
        %861 = vmatprep.subr.bf16.mxu0 0
        %862 = vmatpush2.bf16.msra.mxu0 %v803
        %863 = vmatprep.subr.bf16.mxu0 0
        %864 = vmatpush2.bf16.msra.mxu0 %v802
        %865 = vmatprep.subr.bf16.mxu0 0
        %866 = vmatpush2.bf16.msra.mxu0 %v801
        %867 = vmatprep.subr.bf16.mxu0 0
        %868 = vmatpush2.bf16.msra.mxu0 %v800
        %869 = vmatprep.subr.bf16.mxu0 0
        %870 = vmatpush2.bf16.msra.mxu0 %v799
        %871 = vmatprep.mubr.bf16.mxu0 %v690
        %872 = vmatmul.mubr.bf16.gmra.mxu0 %v689
        %v873 = vpop.f32.mrf.mxu0
        %v874 = vadd.f32 %v364, %v873
        %v875 = vpop.f32.mrf.mxu0
        %v876 = vpop.f32.mrf.mxu0
        %v877 = vadd.f32 %v364, %v876
        %v878 = vpop.f32.mrf.mxu0
        %879 = vdwg.mxu0
        %880 = vmatprep.subr.bf16.mxu0 0
        %881 = vmatpush1.bf16.msra.mxu0 %v814
        %882 = vmatprep.subr.bf16.mxu0 0
        %883 = vmatpush1.bf16.msra.mxu0 %v813
        %884 = vmatprep.subr.bf16.mxu0 0
        %885 = vmatpush1.bf16.msra.mxu0 %v812
        %886 = vmatprep.subr.bf16.mxu0 0
        %887 = vmatpush1.bf16.msra.mxu0 %v811
        %888 = vmatprep.subr.bf16.mxu0 0
        %889 = vmatpush1.bf16.msra.mxu0 %v810
        %890 = vmatprep.subr.bf16.mxu0 0
        %891 = vmatpush1.bf16.msra.mxu0 %v809
        %892 = vmatprep.subr.bf16.mxu0 0
        %893 = vmatpush1.bf16.msra.mxu0 %v808
        %894 = vmatprep.subr.bf16.mxu0 0
        %895 = vmatpush1.bf16.msra.mxu0 %v807
        %896 = vmatprep.subr.bf16.mxu0 0
        %897 = vmatpush2.bf16.msra.mxu0 0
        %898 = vmatprep.subr.bf16.mxu0 0
        %899 = vmatpush2.bf16.msra.mxu0 0
        %900 = vmatprep.subr.bf16.mxu0 0
        %901 = vmatpush2.bf16.msra.mxu0 0
        %902 = vmatprep.subr.bf16.mxu0 0
        %903 = vmatpush2.bf16.msra.mxu0 0
        %904 = vmatprep.subr.bf16.mxu0 0
        %905 = vmatpush2.bf16.msra.mxu0 0
        %906 = vmatprep.subr.bf16.mxu0 0
        %907 = vmatpush2.bf16.msra.mxu0 0
        %908 = vmatprep.subr.bf16.mxu0 0
        %909 = vmatpush2.bf16.msra.mxu0 0
        %910 = vmatprep.subr.bf16.mxu0 0
        %911 = vmatpush2.bf16.msra.mxu0 0
        %912 = vmatprep.mubr.bf16.mxu0 0
        %913 = vmatmul.mubr.bf16.gmra.mxu0 %v691
        %v914 = vpop.f32.mrf.mxu0
        %v915 = vadd.f32 %v874, %v914
        %v916 = vpop.f32.mrf.mxu0
        %v917 = vpop.f32.mrf.mxu0
        %v918 = vadd.f32 %v877, %v917
        %v919 = vpop.f32.mrf.mxu0
        %920 = vdwg.mxu0
        %v921 = vmul.f32 %v915, 0.5
        %v922 = vmul.f32 %v918, 0.5
        %v923 = vmul.f32 %v915, 0.70710677
        %v924 = vmul.f32 %v918, 0.70710677
        %v925 = verf.f32.pop %v923
        %v926 = verf.f32.pop %v924
        %v927 = vadd.f32 %v925, 1.0
        %v928 = vadd.f32 %v926, 1.0
        %v929 = vmul.f32 %v921, %v927
        %v930 = vmul.f32 %v922, %v928
        %v931 = vpack.c.bf16 %v930, %v929
        %v933 = vunpack.c.l.b16 %v931
        %v934 = vunpack.c.h.b16 %v931
        %v935 = vpack.c.b16 %v933, %v933
        %v936 = vpack.c.b16 %v934, %v934
        %939 = vst [vmem:[#allocation2 + $0x4] sm:$0xf] %v935
        %940 = vst [vmem:[#allocation2 + $0x14] sm:$0x1] %v936
        %v941 = vld [vmem:[%s265 + $0x8] sm:$0xff]
        %v942 = vld [vmem:[%s265 + $0x18] sm:$0x11]
        %v943 = vld [vmem:[#allocation7] sm:$0xf]
        %v944 = vld [vmem:[#allocation7 + $0x4] sm:$0xf]
        %v945 = vld [vmem:[#allocation7 + $0x8] sm:$0xf]
        %v946 = vld [vmem:[#allocation7 + $0xc] sm:$0xf]
        %v947 = vld [vmem:[#allocation7 + $0x10] sm:$0xf]
        %v948 = vld [vmem:[#allocation7 + $0x14] sm:$0xf]
        %v949 = vld [vmem:[#allocation7 + $0x18] sm:$0xf]
        %v950 = vld [vmem:[#allocation7 + $0x1c] sm:$0xf]
        %v951 = vld [vmem:[#allocation7 + $0x20] sm:$0xf]
        %v952 = vld [vmem:[#allocation7 + $0x24] sm:$0xf]
        %v953 = vld [vmem:[#allocation7 + $0x28] sm:$0xf]
        %v954 = vld [vmem:[#allocation7 + $0x2c] sm:$0xf]
        %v955 = vld [vmem:[#allocation7 + $0x30] sm:$0xf]
        %v956 = vld [vmem:[#allocation7 + $0x34] sm:$0xf]
        %v957 = vld [vmem:[#allocation7 + $0x38] sm:$0xf]
        %v958 = vld [vmem:[#allocation7 + $0x3c] sm:$0xf]
        %v959 = vld [vmem:[#allocation7 + $0x40] sm:$0xf]
        %v960 = vld [vmem:[#allocation7 + $0x44] sm:$0xf]
        %v961 = vld [vmem:[#allocation7 + $0x48] sm:$0xf]
        %v962 = vld [vmem:[#allocation7 + $0x4c] sm:$0xf]
        %v963 = vld [vmem:[#allocation7 + $0x50] sm:$0xf]
        %v964 = vld [vmem:[#allocation7 + $0x54] sm:$0xf]
        %v965 = vld [vmem:[#allocation7 + $0x58] sm:$0xf]
        %v966 = vld [vmem:[#allocation7 + $0x5c] sm:$0xf]
        %v967 = vld [vmem:[#allocation7 + $0x60] sm:$0xf]
        %v968 = vld [vmem:[#allocation7 + $0x64] sm:$0xf]
        %v969 = vld [vmem:[#allocation7 + $0x68] sm:$0xf]
        %v970 = vld [vmem:[#allocation7 + $0x6c] sm:$0xf]
        %v971 = vld [vmem:[#allocation7 + $0x70] sm:$0xf]
        %v972 = vld [vmem:[#allocation7 + $0x74] sm:$0xf]
        %v973 = vld [vmem:[#allocation7 + $0x78] sm:$0xf]
        %v974 = vld [vmem:[#allocation7 + $0x7c] sm:$0xf]
        %v975 = vld [vmem:[%s265] sm:$0xf]
        %v976 = vld [vmem:[%s265 + $0x10] sm:$0x3]
        %v977 = vld [vmem:[#allocation7 + $0x80] sm:$0xf]
        %v978 = vld [vmem:[#allocation7 + $0x84] sm:$0xf]
        %v979 = vld [vmem:[#allocation7 + $0x88] sm:$0xf]
        %v980 = vld [vmem:[#allocation7 + $0x8c] sm:$0xf]
        %v981 = vld [vmem:[#allocation7 + $0x90] sm:$0xf]
        %v982 = vld [vmem:[#allocation7 + $0x94] sm:$0xf]
        %v983 = vld [vmem:[#allocation7 + $0x98] sm:$0xf]
        %v984 = vld [vmem:[#allocation7 + $0x9c] sm:$0xf]
        %v985 = vld [vmem:[#allocation7 + $0xa0] sm:$0xf]
        %v986 = vld [vmem:[#allocation7 + $0xa4] sm:$0xf]
        %v987 = vld [vmem:[#allocation7 + $0xa8] sm:$0xf]
        %v988 = vld [vmem:[#allocation7 + $0xac] sm:$0xf]
        %v989 = vld [vmem:[#allocation7 + $0xb0] sm:$0xf]
        %v990 = vld [vmem:[#allocation7 + $0xb4] sm:$0xf]
        %v991 = vld [vmem:[#allocation7 + $0xb8] sm:$0xf]
        %v992 = vld [vmem:[#allocation7 + $0xbc] sm:$0xf]
        %v995 = vunpack.c.l.b16 %v975
        %v996 = vunpack.c.l.b16 %v976
        %v997 = vpack.c.b16 %v996, %v995
        %v999 = vshrl.u32 %v997, 16
        %v1001 = vshll.u32 %v997, 16
        %v1003 = vrot.slane %v1001, 1
        %v1004 = vor.u32 %v999, %v1003
        %v1022 = vunpack.c.l.b16 %v977
        %v1023 = vunpack.c.l.b16 %v978
        %v1024 = vunpack.c.l.b16 %v979
        %v1025 = vunpack.c.l.b16 %v980
        %v1026 = vunpack.c.l.b16 %v981
        %v1027 = vunpack.c.l.b16 %v982
        %v1028 = vunpack.c.l.b16 %v983
        %v1029 = vunpack.c.l.b16 %v984
        %v1030 = vunpack.c.l.b16 %v985
        %v1031 = vunpack.c.l.b16 %v986
        %v1032 = vunpack.c.l.b16 %v987
        %v1033 = vunpack.c.l.b16 %v988
        %v1034 = vunpack.c.l.b16 %v989
        %v1035 = vunpack.c.l.b16 %v990
        %v1036 = vunpack.c.l.b16 %v991
        %v1037 = vunpack.c.l.b16 %v992
        %v1038 = vpack.c.b16 %v1023, %v1022
        %v1039 = vpack.c.b16 %v1025, %v1024
        %v1040 = vpack.c.b16 %v1027, %v1026
        %v1041 = vpack.c.b16 %v1029, %v1028
        %v1042 = vpack.c.b16 %v1031, %v1030
        %v1043 = vpack.c.b16 %v1033, %v1032
        %v1044 = vpack.c.b16 %v1035, %v1034
        %v1045 = vpack.c.b16 %v1037, %v1036
        %1054 = vmatprep.subr.bf16.mxu0 0
        %1055 = vmatpush1.bf16.msra.mxu0 %v1045
        %1056 = vmatprep.subr.bf16.mxu0 0
        %1057 = vmatpush1.bf16.msra.mxu0 %v1044
        %1058 = vmatprep.subr.bf16.mxu0 0
        %1059 = vmatpush1.bf16.msra.mxu0 %v1043
        %1060 = vmatprep.subr.bf16.mxu0 0
        %1061 = vmatpush1.bf16.msra.mxu0 %v1042
        %1062 = vmatprep.subr.bf16.mxu0 0
        %1063 = vmatpush1.bf16.msra.mxu0 %v1041
        %1064 = vmatprep.subr.bf16.mxu0 0
        %1065 = vmatpush1.bf16.msra.mxu0 %v1040
        %1066 = vmatprep.subr.bf16.mxu0 0
        %1067 = vmatpush1.bf16.msra.mxu0 %v1039
        %1068 = vmatprep.subr.bf16.mxu0 0
        %1069 = vmatpush1.bf16.msra.mxu0 %v1038
        %1070 = vmatprep.subr.bf16.mxu0 0
        %1071 = vmatpush2.bf16.msra.mxu0 0
        %1072 = vmatprep.subr.bf16.mxu0 0
        %1073 = vmatpush2.bf16.msra.mxu0 0
        %1074 = vmatprep.subr.bf16.mxu0 0
        %1075 = vmatpush2.bf16.msra.mxu0 0
        %1076 = vmatprep.subr.bf16.mxu0 0
        %1077 = vmatpush2.bf16.msra.mxu0 0
        %1078 = vmatprep.subr.bf16.mxu0 0
        %1079 = vmatpush2.bf16.msra.mxu0 0
        %1080 = vmatprep.subr.bf16.mxu0 0
        %1081 = vmatpush2.bf16.msra.mxu0 0
        %1082 = vmatprep.subr.bf16.mxu0 0
        %1083 = vmatpush2.bf16.msra.mxu0 0
        %1084 = vmatprep.subr.bf16.mxu0 0
        %1085 = vmatpush2.bf16.msra.mxu0 0
        %1086 = vmatprep.mubr.bf16.mxu0 0
        %1087 = vmatmul.mubr.bf16.gmra.mxu0 %v1004
        %v1088 = vpop.f32.mrf.mxu0
        %v1089 = vadd.f32 0.0, %v1088
        %v1090 = vpop.f32.mrf.mxu0
        %v1091 = vpop.f32.mrf.mxu0
        %v1092 = vadd.f32 0.0, %v1091
        %v1093 = vpop.f32.mrf.mxu0
        %1094 = vdwg.mxu0
        %v1097 = vunpack.c.l.b16 %v941
        %v1098 = vunpack.c.h.b16 %v941
        %v1099 = vunpack.c.l.b16 %v942
        %v1100 = vunpack.c.h.b16 %v942
        %v1101 = vpack.c.b16 %v1099, %v1097
        %v1102 = vpack.c.b16 %v1100, %v1098
        %v1137 = vunpack.c.l.b16 %v943
        %v1138 = vunpack.c.l.b16 %v944
        %v1139 = vunpack.c.l.b16 %v945
        %v1140 = vunpack.c.l.b16 %v946
        %v1141 = vunpack.c.l.b16 %v947
        %v1142 = vunpack.c.l.b16 %v948
        %v1143 = vunpack.c.l.b16 %v949
        %v1144 = vunpack.c.l.b16 %v950
        %v1145 = vunpack.c.l.b16 %v951
        %v1146 = vunpack.c.l.b16 %v952
        %v1147 = vunpack.c.l.b16 %v953
        %v1148 = vunpack.c.l.b16 %v954
        %v1149 = vunpack.c.l.b16 %v955
        %v1150 = vunpack.c.l.b16 %v956
        %v1151 = vunpack.c.l.b16 %v957
        %v1152 = vunpack.c.l.b16 %v958
        %v1153 = vunpack.c.l.b16 %v959
        %v1154 = vunpack.c.l.b16 %v960
        %v1155 = vunpack.c.l.b16 %v961
        %v1156 = vunpack.c.l.b16 %v962
        %v1157 = vunpack.c.l.b16 %v963
        %v1158 = vunpack.c.l.b16 %v964
        %v1159 = vunpack.c.l.b16 %v965
        %v1160 = vunpack.c.l.b16 %v966
        %v1161 = vunpack.c.l.b16 %v967
        %v1162 = vunpack.c.l.b16 %v968
        %v1163 = vunpack.c.l.b16 %v969
        %v1164 = vunpack.c.l.b16 %v970
        %v1165 = vunpack.c.l.b16 %v971
        %v1166 = vunpack.c.l.b16 %v972
        %v1167 = vunpack.c.l.b16 %v973
        %v1168 = vunpack.c.l.b16 %v974
        %v1169 = vpack.c.b16 %v1138, %v1137
        %v1170 = vpack.c.b16 %v1140, %v1139
        %v1171 = vpack.c.b16 %v1142, %v1141
        %v1172 = vpack.c.b16 %v1144, %v1143
        %v1173 = vpack.c.b16 %v1146, %v1145
        %v1174 = vpack.c.b16 %v1148, %v1147
        %v1175 = vpack.c.b16 %v1150, %v1149
        %v1176 = vpack.c.b16 %v1152, %v1151
        %v1177 = vpack.c.b16 %v1154, %v1153
        %v1178 = vpack.c.b16 %v1156, %v1155
        %v1179 = vpack.c.b16 %v1158, %v1157
        %v1180 = vpack.c.b16 %v1160, %v1159
        %v1181 = vpack.c.b16 %v1162, %v1161
        %v1182 = vpack.c.b16 %v1164, %v1163
        %v1183 = vpack.c.b16 %v1166, %v1165
        %v1184 = vpack.c.b16 %v1168, %v1167
        %1201 = vmatprep.subr.bf16.mxu0 0
        %1202 = vmatpush1.bf16.msra.mxu0 %v1176
        %1203 = vmatprep.subr.bf16.mxu0 0
        %1204 = vmatpush1.bf16.msra.mxu0 %v1175
        %1205 = vmatprep.subr.bf16.mxu0 0
        %1206 = vmatpush1.bf16.msra.mxu0 %v1174
        %1207 = vmatprep.subr.bf16.mxu0 0
        %1208 = vmatpush1.bf16.msra.mxu0 %v1173
        %1209 = vmatprep.subr.bf16.mxu0 0
        %1210 = vmatpush1.bf16.msra.mxu0 %v1172
        %1211 = vmatprep.subr.bf16.mxu0 0
        %1212 = vmatpush1.bf16.msra.mxu0 %v1171
        %1213 = vmatprep.subr.bf16.mxu0 0
        %1214 = vmatpush1.bf16.msra.mxu0 %v1170
        %1215 = vmatprep.subr.bf16.mxu0 0
        %1216 = vmatpush1.bf16.msra.mxu0 %v1169
        %1217 = vmatprep.subr.bf16.mxu0 0
        %1218 = vmatpush2.bf16.msra.mxu0 %v1184
        %1219 = vmatprep.subr.bf16.mxu0 0
        %1220 = vmatpush2.bf16.msra.mxu0 %v1183
        %1221 = vmatprep.subr.bf16.mxu0 0
        %1222 = vmatpush2.bf16.msra.mxu0 %v1182
        %1223 = vmatprep.subr.bf16.mxu0 0
        %1224 = vmatpush2.bf16.msra.mxu0 %v1181
        %1225 = vmatprep.subr.bf16.mxu0 0
        %1226 = vmatpush2.bf16.msra.mxu0 %v1180
        %1227 = vmatprep.subr.bf16.mxu0 0
        %1228 = vmatpush2.bf16.msra.mxu0 %v1179
        %1229 = vmatprep.subr.bf16.mxu0 0
        %1230 = vmatpush2.bf16.msra.mxu0 %v1178
        %1231 = vmatprep.subr.bf16.mxu0 0
        %1232 = vmatpush2.bf16.msra.mxu0 %v1177
        %1233 = vmatprep.mubr.bf16.mxu0 %v1102
        %1234 = vmatmul.mubr.bf16.gmra.mxu0 %v1101
        %v1235 = vpop.f32.mrf.mxu0
        %v1236 = vadd.f32 %v1089, %v1235
        %v1237 = vpop.f32.mrf.mxu0
        %v1238 = vpop.f32.mrf.mxu0
        %v1239 = vadd.f32 %v1092, %v1238
        %v1240 = vpop.f32.mrf.mxu0
        %1241 = vdwg.mxu0
        %v1242 = vadd.f32 %v1236, %v364
        %v1243 = vadd.f32 %v1239, %v364
        %v1244 = vmul.f32 %v1242, 0.5
        %v1245 = vmul.f32 %v1243, 0.5
        %v1246 = vmul.f32 %v1242, 0.70710677
        %v1247 = vmul.f32 %v1243, 0.70710677
        %v1248 = verf.f32.pop %v1246
        %v1249 = verf.f32.pop %v1247
        %v1250 = vadd.f32 %v1248, 1.0
        %v1251 = vadd.f32 %v1249, 1.0
        %v1252 = vmul.f32 %v1244, %v1250
        %v1253 = vmul.f32 %v1245, %v1251
        %v1254 = vpack.c.bf16 %v1253, %v1252
        %v1256 = vunpack.c.l.b16 %v1254
        %v1257 = vunpack.c.h.b16 %v1254
        %v1258 = vpack.c.b16 %v1256, %v1256
        %v1259 = vpack.c.b16 %v1257, %v1257
        %1262 = vst [vmem:[#allocation2 + $0x8] sm:$0xf] %v1258
        %1263 = vst [vmem:[#allocation2 + $0x18] sm:$0x1] %v1259
        %v1264 = vld [vmem:[%s265 + $0xc] sm:$0xf]
        %v1265 = vld [vmem:[%s265 + $0x1c] sm:$0x1]
        %v1266 = vld [vmem:[#allocation7] sm:$0xf]
        %v1267 = vld [vmem:[#allocation7 + $0x4] sm:$0xf]
        %v1268 = vld [vmem:[#allocation7 + $0x8] sm:$0xf]
        %v1269 = vld [vmem:[#allocation7 + $0xc] sm:$0xf]
        %v1270 = vld [vmem:[#allocation7 + $0x10] sm:$0xf]
        %v1271 = vld [vmem:[#allocation7 + $0x14] sm:$0xf]
        %v1272 = vld [vmem:[#allocation7 + $0x18] sm:$0xf]
        %v1273 = vld [vmem:[#allocation7 + $0x1c] sm:$0xf]
        %v1274 = vld [vmem:[#allocation7 + $0x20] sm:$0xf]
        %v1275 = vld [vmem:[#allocation7 + $0x24] sm:$0xf]
        %v1276 = vld [vmem:[#allocation7 + $0x28] sm:$0xf]
        %v1277 = vld [vmem:[#allocation7 + $0x2c] sm:$0xf]
        %v1278 = vld [vmem:[#allocation7 + $0x30] sm:$0xf]
        %v1279 = vld [vmem:[#allocation7 + $0x34] sm:$0xf]
        %v1280 = vld [vmem:[#allocation7 + $0x38] sm:$0xf]
        %v1281 = vld [vmem:[#allocation7 + $0x3c] sm:$0xf]
        %v1282 = vld [vmem:[%s265] sm:$0xff]
        %v1283 = vld [vmem:[%s265 + $0x10] sm:$0x33]
        %v1284 = vld [vmem:[#allocation7 + $0x40] sm:$0xf]
        %v1285 = vld [vmem:[#allocation7 + $0x44] sm:$0xf]
        %v1286 = vld [vmem:[#allocation7 + $0x48] sm:$0xf]
        %v1287 = vld [vmem:[#allocation7 + $0x4c] sm:$0xf]
        %v1288 = vld [vmem:[#allocation7 + $0x50] sm:$0xf]
        %v1289 = vld [vmem:[#allocation7 + $0x54] sm:$0xf]
        %v1290 = vld [vmem:[#allocation7 + $0x58] sm:$0xf]
        %v1291 = vld [vmem:[#allocation7 + $0x5c] sm:$0xf]
        %v1292 = vld [vmem:[#allocation7 + $0x60] sm:$0xf]
        %v1293 = vld [vmem:[#allocation7 + $0x64] sm:$0xf]
        %v1294 = vld [vmem:[#allocation7 + $0x68] sm:$0xf]
        %v1295 = vld [vmem:[#allocation7 + $0x6c] sm:$0xf]
        %v1296 = vld [vmem:[#allocation7 + $0x70] sm:$0xf]
        %v1297 = vld [vmem:[#allocation7 + $0x74] sm:$0xf]
        %v1298 = vld [vmem:[#allocation7 + $0x78] sm:$0xf]
        %v1299 = vld [vmem:[#allocation7 + $0x7c] sm:$0xf]
        %v1300 = vld [vmem:[#allocation7 + $0x80] sm:$0xf]
        %v1301 = vld [vmem:[#allocation7 + $0x84] sm:$0xf]
        %v1302 = vld [vmem:[#allocation7 + $0x88] sm:$0xf]
        %v1303 = vld [vmem:[#allocation7 + $0x8c] sm:$0xf]
        %v1304 = vld [vmem:[#allocation7 + $0x90] sm:$0xf]
        %v1305 = vld [vmem:[#allocation7 + $0x94] sm:$0xf]
        %v1306 = vld [vmem:[#allocation7 + $0x98] sm:$0xf]
        %v1307 = vld [vmem:[#allocation7 + $0x9c] sm:$0xf]
        %v1308 = vld [vmem:[#allocation7 + $0xa0] sm:$0xf]
        %v1309 = vld [vmem:[#allocation7 + $0xa4] sm:$0xf]
        %v1310 = vld [vmem:[#allocation7 + $0xa8] sm:$0xf]
        %v1311 = vld [vmem:[#allocation7 + $0xac] sm:$0xf]
        %v1312 = vld [vmem:[#allocation7 + $0xb0] sm:$0xf]
        %v1313 = vld [vmem:[#allocation7 + $0xb4] sm:$0xf]
        %v1314 = vld [vmem:[#allocation7 + $0xb8] sm:$0xf]
        %v1315 = vld [vmem:[#allocation7 + $0xbc] sm:$0xf]
        %v1318 = vunpack.c.l.b16 %v1282
        %v1319 = vunpack.c.h.b16 %v1282
        %v1320 = vunpack.c.l.b16 %v1283
        %v1321 = vunpack.c.h.b16 %v1283
        %v1322 = vpack.c.b16 %v1320, %v1318
        %v1323 = vpack.c.b16 %v1321, %v1319
        %v1325 = vshrl.u32 %v1322, 16
        %v1327 = vshll.u32 %v1322, 16
        %v1329 = vrot.slane %v1327, 1
        %v1330 = vor.u32 %v1325, %v1329
        %v1332 = vshrl.u32 %v1323, 16
        %v1334 = vshll.u32 %v1323, 16
        %v1336 = vrot.slane %v1334, 1
        %v1337 = vor.u32 %v1332, %v1336
        %v1372 = vunpack.c.l.b16 %v1284
        %v1373 = vunpack.c.l.b16 %v1285
        %v1374 = vunpack.c.l.b16 %v1286
        %v1375 = vunpack.c.l.b16 %v1287
        %v1376 = vunpack.c.l.b16 %v1288
        %v1377 = vunpack.c.l.b16 %v1289
        %v1378 = vunpack.c.l.b16 %v1290
        %v1379 = vunpack.c.l.b16 %v1291
        %v1380 = vunpack.c.l.b16 %v1292
        %v1381 = vunpack.c.l.b16 %v1293
        %v1382 = vunpack.c.l.b16 %v1294
        %v1383 = vunpack.c.l.b16 %v1295
        %v1384 = vunpack.c.l.b16 %v1296
        %v1385 = vunpack.c.l.b16 %v1297
        %v1386 = vunpack.c.l.b16 %v1298
        %v1387 = vunpack.c.l.b16 %v1299
        %v1388 = vunpack.c.l.b16 %v1300
        %v1389 = vunpack.c.l.b16 %v1301
        %v1390 = vunpack.c.l.b16 %v1302
        %v1391 = vunpack.c.l.b16 %v1303
        %v1392 = vunpack.c.l.b16 %v1304
        %v1393 = vunpack.c.l.b16 %v1305
        %v1394 = vunpack.c.l.b16 %v1306
        %v1395 = vunpack.c.l.b16 %v1307
        %v1396 = vunpack.c.l.b16 %v1308
        %v1397 = vunpack.c.l.b16 %v1309
        %v1398 = vunpack.c.l.b16 %v1310
        %v1399 = vunpack.c.l.b16 %v1311
        %v1400 = vunpack.c.l.b16 %v1312
        %v1401 = vunpack.c.l.b16 %v1313
        %v1402 = vunpack.c.l.b16 %v1314
        %v1403 = vunpack.c.l.b16 %v1315
        %v1404 = vpack.c.b16 %v1373, %v1372
        %v1405 = vpack.c.b16 %v1375, %v1374
        %v1406 = vpack.c.b16 %v1377, %v1376
        %v1407 = vpack.c.b16 %v1379, %v1378
        %v1408 = vpack.c.b16 %v1381, %v1380
        %v1409 = vpack.c.b16 %v1383, %v1382
        %v1410 = vpack.c.b16 %v1385, %v1384
        %v1411 = vpack.c.b16 %v1387, %v1386
        %v1412 = vpack.c.b16 %v1389, %v1388
        %v1413 = vpack.c.b16 %v1391, %v1390
        %v1414 = vpack.c.b16 %v1393, %v1392
        %v1415 = vpack.c.b16 %v1395, %v1394
        %v1416 = vpack.c.b16 %v1397, %v1396
        %v1417 = vpack.c.b16 %v1399, %v1398
        %v1418 = vpack.c.b16 %v1401, %v1400
        %v1419 = vpack.c.b16 %v1403, %v1402
        %1436 = vmatprep.subr.bf16.mxu0 0
        %1437 = vmatpush1.bf16.msra.mxu0 %v1411
        %1438 = vmatprep.subr.bf16.mxu0 0
        %1439 = vmatpush1.bf16.msra.mxu0 %v1410
        %1440 = vmatprep.subr.bf16.mxu0 0
        %1441 = vmatpush1.bf16.msra.mxu0 %v1409
        %1442 = vmatprep.subr.bf16.mxu0 0
        %1443 = vmatpush1.bf16.msra.mxu0 %v1408
        %1444 = vmatprep.subr.bf16.mxu0 0
        %1445 = vmatpush1.bf16.msra.mxu0 %v1407
        %1446 = vmatprep.subr.bf16.mxu0 0
        %1447 = vmatpush1.bf16.msra.mxu0 %v1406
        %1448 = vmatprep.subr.bf16.mxu0 0
        %1449 = vmatpush1.bf16.msra.mxu0 %v1405
        %1450 = vmatprep.subr.bf16.mxu0 0
        %1451 = vmatpush1.bf16.msra.mxu0 %v1404
        %1452 = vmatprep.subr.bf16.mxu0 0
        %1453 = vmatpush2.bf16.msra.mxu0 %v1419
        %1454 = vmatprep.subr.bf16.mxu0 0
        %1455 = vmatpush2.bf16.msra.mxu0 %v1418
        %1456 = vmatprep.subr.bf16.mxu0 0
        %1457 = vmatpush2.bf16.msra.mxu0 %v1417
        %1458 = vmatprep.subr.bf16.mxu0 0
        %1459 = vmatpush2.bf16.msra.mxu0 %v1416
        %1460 = vmatprep.subr.bf16.mxu0 0
        %1461 = vmatpush2.bf16.msra.mxu0 %v1415
        %1462 = vmatprep.subr.bf16.mxu0 0
        %1463 = vmatpush2.bf16.msra.mxu0 %v1414
        %1464 = vmatprep.subr.bf16.mxu0 0
        %1465 = vmatpush2.bf16.msra.mxu0 %v1413
        %1466 = vmatprep.subr.bf16.mxu0 0
        %1467 = vmatpush2.bf16.msra.mxu0 %v1412
        %1468 = vmatprep.mubr.bf16.mxu0 %v1337
        %1469 = vmatmul.mubr.bf16.gmra.mxu0 %v1330
        %v1470 = vpop.f32.mrf.mxu0
        %v1471 = vadd.f32 0.0, %v1470
        %v1472 = vpop.f32.mrf.mxu0
        %v1473 = vpop.f32.mrf.mxu0
        %v1474 = vadd.f32 0.0, %v1473
        %v1475 = vpop.f32.mrf.mxu0
        %1476 = vdwg.mxu0
        %v1479 = vunpack.c.l.b16 %v1264
        %v1480 = vunpack.c.l.b16 %v1265
        %v1481 = vpack.c.b16 %v1480, %v1479
        %v1499 = vunpack.c.l.b16 %v1266
        %v1500 = vunpack.c.l.b16 %v1267
        %v1501 = vunpack.c.l.b16 %v1268
        %v1502 = vunpack.c.l.b16 %v1269
        %v1503 = vunpack.c.l.b16 %v1270
        %v1504 = vunpack.c.l.b16 %v1271
        %v1505 = vunpack.c.l.b16 %v1272
        %v1506 = vunpack.c.l.b16 %v1273
        %v1507 = vunpack.c.l.b16 %v1274
        %v1508 = vunpack.c.l.b16 %v1275
        %v1509 = vunpack.c.l.b16 %v1276
        %v1510 = vunpack.c.l.b16 %v1277
        %v1511 = vunpack.c.l.b16 %v1278
        %v1512 = vunpack.c.l.b16 %v1279
        %v1513 = vunpack.c.l.b16 %v1280
        %v1514 = vunpack.c.l.b16 %v1281
        %v1515 = vpack.c.b16 %v1500, %v1499
        %v1516 = vpack.c.b16 %v1502, %v1501
        %v1517 = vpack.c.b16 %v1504, %v1503
        %v1518 = vpack.c.b16 %v1506, %v1505
        %v1519 = vpack.c.b16 %v1508, %v1507
        %v1520 = vpack.c.b16 %v1510, %v1509
        %v1521 = vpack.c.b16 %v1512, %v1511
        %v1522 = vpack.c.b16 %v1514, %v1513
        %1531 = vmatprep.subr.bf16.mxu0 0
        %1532 = vmatpush1.bf16.msra.mxu0 %v1522
        %1533 = vmatprep.subr.bf16.mxu0 0
        %1534 = vmatpush1.bf16.msra.mxu0 %v1521
        %1535 = vmatprep.subr.bf16.mxu0 0
        %1536 = vmatpush1.bf16.msra.mxu0 %v1520
        %1537 = vmatprep.subr.bf16.mxu0 0
        %1538 = vmatpush1.bf16.msra.mxu0 %v1519
        %1539 = vmatprep.subr.bf16.mxu0 0
        %1540 = vmatpush1.bf16.msra.mxu0 %v1518
        %1541 = vmatprep.subr.bf16.mxu0 0
        %1542 = vmatpush1.bf16.msra.mxu0 %v1517
        %1543 = vmatprep.subr.bf16.mxu0 0
        %1544 = vmatpush1.bf16.msra.mxu0 %v1516
        %1545 = vmatprep.subr.bf16.mxu0 0
        %1546 = vmatpush1.bf16.msra.mxu0 %v1515
        %1547 = vmatprep.subr.bf16.mxu0 0
        %1548 = vmatpush2.bf16.msra.mxu0 0
        %1549 = vmatprep.subr.bf16.mxu0 0
        %1550 = vmatpush2.bf16.msra.mxu0 0
        %1551 = vmatprep.subr.bf16.mxu0 0
        %1552 = vmatpush2.bf16.msra.mxu0 0
        %1553 = vmatprep.subr.bf16.mxu0 0
        %1554 = vmatpush2.bf16.msra.mxu0 0
        %1555 = vmatprep.subr.bf16.mxu0 0
        %1556 = vmatpush2.bf16.msra.mxu0 0
        %1557 = vmatprep.subr.bf16.mxu0 0
        %1558 = vmatpush2.bf16.msra.mxu0 0
        %1559 = vmatprep.subr.bf16.mxu0 0
        %1560 = vmatpush2.bf16.msra.mxu0 0
        %1561 = vmatprep.subr.bf16.mxu0 0
        %1562 = vmatpush2.bf16.msra.mxu0 0
        %1563 = vmatprep.mubr.bf16.mxu0 0
        %1564 = vmatmul.mubr.bf16.gmra.mxu0 %v1481
        %v1565 = vpop.f32.mrf.mxu0
        %v1566 = vadd.f32 %v1471, %v1565
        %v1567 = vpop.f32.mrf.mxu0
        %v1568 = vpop.f32.mrf.mxu0
        %v1569 = vadd.f32 %v1474, %v1568
        %v1570 = vpop.f32.mrf.mxu0
        %1571 = vdwg.mxu0
        %v1572 = vadd.f32 %v1566, %v364
        %v1573 = vadd.f32 %v1569, %v364
        %v1574 = vmul.f32 %v1572, 0.5
        %v1575 = vmul.f32 %v1573, 0.5
        %v1576 = vmul.f32 %v1572, 0.70710677
        %v1577 = vmul.f32 %v1573, 0.70710677
        %v1578 = verf.f32.pop %v1576
        %v1579 = verf.f32.pop %v1577
        %v1580 = vadd.f32 %v1578, 1.0
        %v1581 = vadd.f32 %v1579, 1.0
        %v1582 = vmul.f32 %v1574, %v1580
        %v1583 = vmul.f32 %v1575, %v1581
        %v1584 = vpack.c.bf16 %v1583, %v1582
        %v1586 = vunpack.c.l.b16 %v1584
        %v1587 = vunpack.c.h.b16 %v1584
        %v1588 = vpack.c.b16 %v1586, %v1586
        %v1589 = vpack.c.b16 %v1587, %v1587
        %1592 = vst [vmem:[#allocation2 + $0xc] sm:$0xf] %v1588
        %1593 = vst [vmem:[#allocation2 + $0x1c] sm:$0x1] %v1589
        %p1594 = scmp.eq.s32.totalorder %s29, 0
        // Predicated region
        $region57: #{tpu_custom_call.1} parent=39 // pred_check
          %p1595 = pneg %p1594
        $region58: #{tpu_custom_call.1} parent=39 // pred_check_branch
          %1597 = sbr.rel (%p1595) target = $region60
        $region59: #{tpu_custom_call.1} parent=39 // pred_region
          %vm1598 = vcmask 1040384
          %vm1599 = vsmask.f32 256
          %vm1600 = vmand %vm1598, %vm1599
          %vm1601 = vcmask 1044484
          %vm1602 = vsmask.f32 4352
          %vm1603 = vmand %vm1601, %vm1602
          %vm1604 = vmor %vm1603, %vm1600
          %v1605 = vld [vmem:[#allocation2] sm:$0x11]
          %v1606 = vsel %vm1604, 0, %v1605
          %1607 = vst [vmem:[#allocation2] sm:$0x11] %v1606
          %v1608 = vld [vmem:[#allocation2 + $0x8] sm:$0x11]
          %v1609 = vsel %vm1604, 0, %v1608
          %1610 = vst [vmem:[#allocation2 + $0x8] sm:$0x11] %v1609
          %vm1611 = vsmask.f32 7938
          %vm1612 = vmand %vm1598, %vm1611
          %vm1613 = vsmask.f32 7954
          %vm1614 = vmand %vm1601, %vm1613
          %vm1615 = vmor %vm1614, %vm1612
          %v1616 = vld [vmem:[#allocation2] sm:$0x11]
          %v1617 = vsel %vm1615, 0, %v1616
          %1618 = vst [vmem:[#allocation2] sm:$0x11] %v1617
        $region60: #{tpu_custom_call.1} parent=39 // pred_fallthru
          _
        %v1619 = vld [vmem:[#allocation2] sm:$0xff]
        %v1620 = vld [vmem:[#allocation2 + $0x8] sm:$0xf]
        %v1621 = vld [vmem:[#allocation2 + $0x10] sm:$0x11]
        %v1622 = vld [vmem:[#allocation2 + $0x18] sm:$0x1]
        %v1623 = vld [vmem:[#allocation9] sm:$0xf]
        %v1624 = vld [vmem:[#allocation9 + $0x4] sm:$0xf]
        %v1625 = vld [vmem:[#allocation9 + $0x8] sm:$0xf]
        %v1626 = vld [vmem:[#allocation9 + $0xc] sm:$0xf]
        %v1627 = vld [vmem:[#allocation9 + $0x10] sm:$0xf]
        %v1628 = vld [vmem:[#allocation9 + $0x14] sm:$0xf]
        %v1629 = vld [vmem:[#allocation9 + $0x18] sm:$0xf]
        %v1630 = vld [vmem:[#allocation9 + $0x1c] sm:$0xf]
        %v1631 = vld [vmem:[#allocation9 + $0x20] sm:$0xf]
        %v1632 = vld [vmem:[#allocation9 + $0x24] sm:$0xf]
        %v1633 = vld [vmem:[#allocation9 + $0x28] sm:$0xf]
        %v1634 = vld [vmem:[#allocation9 + $0x2c] sm:$0xf]
        %v1635 = vld [vmem:[#allocation9 + $0x30] sm:$0xf]
        %v1636 = vld [vmem:[#allocation9 + $0x34] sm:$0xf]
        %v1637 = vld [vmem:[#allocation9 + $0x38] sm:$0xf]
        %v1638 = vld [vmem:[#allocation9 + $0x3c] sm:$0xf]
        %v1639 = vld [vmem:[#allocation9 + $0x40] sm:$0xf]
        %v1640 = vld [vmem:[#allocation9 + $0x44] sm:$0xf]
        %v1641 = vld [vmem:[#allocation9 + $0x48] sm:$0xf]
        %v1642 = vld [vmem:[#allocation9 + $0x4c] sm:$0xf]
        %v1643 = vld [vmem:[#allocation9 + $0x50] sm:$0xf]
        %v1644 = vld [vmem:[#allocation9 + $0x54] sm:$0xf]
        %v1645 = vld [vmem:[#allocation9 + $0x58] sm:$0xf]
        %v1646 = vld [vmem:[#allocation9 + $0x5c] sm:$0xf]
        %v1647 = vld [vmem:[#allocation9 + $0x60] sm:$0xf]
        %v1648 = vld [vmem:[#allocation9 + $0x64] sm:$0xf]
        %v1649 = vld [vmem:[#allocation9 + $0x68] sm:$0xf]
        %v1650 = vld [vmem:[#allocation9 + $0x6c] sm:$0xf]
        %v1651 = vld [vmem:[#allocation9 + $0x70] sm:$0xf]
        %v1652 = vld [vmem:[#allocation9 + $0x74] sm:$0xf]
        %v1653 = vld [vmem:[#allocation9 + $0x78] sm:$0xf]
        %v1654 = vld [vmem:[#allocation9 + $0x7c] sm:$0xf]
        %v1655 = vld [vmem:[#allocation9 + $0x80] sm:$0xf]
        %v1656 = vld [vmem:[#allocation9 + $0x84] sm:$0xf]
        %v1657 = vld [vmem:[#allocation9 + $0x88] sm:$0xf]
        %v1658 = vld [vmem:[#allocation9 + $0x8c] sm:$0xf]
        %v1659 = vld [vmem:[#allocation9 + $0x90] sm:$0xf]
        %v1660 = vld [vmem:[#allocation9 + $0x94] sm:$0xf]
        %v1661 = vld [vmem:[#allocation9 + $0x98] sm:$0xf]
        %v1662 = vld [vmem:[#allocation9 + $0x9c] sm:$0xf]
        %v1663 = vld [vmem:[#allocation9 + $0xa0] sm:$0xf]
        %v1664 = vld [vmem:[#allocation9 + $0xa4] sm:$0xf]
        %v1665 = vld [vmem:[#allocation9 + $0xa8] sm:$0xf]
        %v1666 = vld [vmem:[#allocation9 + $0xac] sm:$0xf]
        %v1667 = vld [vmem:[#allocation9 + $0xb0] sm:$0xf]
        %v1668 = vld [vmem:[#allocation9 + $0xb4] sm:$0xf]
        %v1669 = vld [vmem:[#allocation9 + $0xb8] sm:$0xf]
        %v1670 = vld [vmem:[#allocation9 + $0xbc] sm:$0xf]
        %v1671 = vlaneseq
        %v1672 = vshrl.u32 %v1671, 7
        %v1673 = vsub.s32 0, %v1672
        %v1674 = vrot.slane %v307, %v1673
        %v1679 = vunpack.c.l.b16 %v1619
        %v1680 = vunpack.c.h.b16 %v1619
        %v1681 = vunpack.c.l.b16 %v1620
        %v1682 = vunpack.c.l.b16 %v1621
        %v1683 = vunpack.c.h.b16 %v1621
        %v1684 = vunpack.c.l.b16 %v1622
        %v1685 = vpack.c.b16 %v1682, %v1679
        %v1686 = vpack.c.b16 %v1683, %v1680
        %v1687 = vpack.c.b16 %v1684, %v1681
        %v1739 = vunpack.c.l.b16 %v1623
        %v1740 = vunpack.c.l.b16 %v1624
        %v1741 = vunpack.c.l.b16 %v1625
        %v1742 = vunpack.c.l.b16 %v1626
        %v1743 = vunpack.c.l.b16 %v1627
        %v1744 = vunpack.c.l.b16 %v1628
        %v1745 = vunpack.c.l.b16 %v1629
        %v1746 = vunpack.c.l.b16 %v1630
        %v1747 = vunpack.c.l.b16 %v1631
        %v1748 = vunpack.c.l.b16 %v1632
        %v1749 = vunpack.c.l.b16 %v1633
        %v1750 = vunpack.c.l.b16 %v1634
        %v1751 = vunpack.c.l.b16 %v1635
        %v1752 = vunpack.c.l.b16 %v1636
        %v1753 = vunpack.c.l.b16 %v1637
        %v1754 = vunpack.c.l.b16 %v1638
        %v1755 = vunpack.c.l.b16 %v1639
        %v1756 = vunpack.c.l.b16 %v1640
        %v1757 = vunpack.c.l.b16 %v1641
        %v1758 = vunpack.c.l.b16 %v1642
        %v1759 = vunpack.c.l.b16 %v1643
        %v1760 = vunpack.c.l.b16 %v1644
        %v1761 = vunpack.c.l.b16 %v1645
        %v1762 = vunpack.c.l.b16 %v1646
        %v1763 = vunpack.c.l.b16 %v1647
        %v1764 = vunpack.c.l.b16 %v1648
        %v1765 = vunpack.c.l.b16 %v1649
        %v1766 = vunpack.c.l.b16 %v1650
        %v1767 = vunpack.c.l.b16 %v1651
        %v1768 = vunpack.c.l.b16 %v1652
        %v1769 = vunpack.c.l.b16 %v1653
        %v1770 = vunpack.c.l.b16 %v1654
        %v1771 = vunpack.c.l.b16 %v1655
        %v1772 = vunpack.c.l.b16 %v1656
        %v1773 = vunpack.c.l.b16 %v1657
        %v1774 = vunpack.c.l.b16 %v1658
        %v1775 = vunpack.c.l.b16 %v1659
        %v1776 = vunpack.c.l.b16 %v1660
        %v1777 = vunpack.c.l.b16 %v1661
        %v1778 = vunpack.c.l.b16 %v1662
        %v1779 = vunpack.c.l.b16 %v1663
        %v1780 = vunpack.c.l.b16 %v1664
        %v1781 = vunpack.c.l.b16 %v1665
        %v1782 = vunpack.c.l.b16 %v1666
        %v1783 = vunpack.c.l.b16 %v1667
        %v1784 = vunpack.c.l.b16 %v1668
        %v1785 = vunpack.c.l.b16 %v1669
        %v1786 = vunpack.c.l.b16 %v1670
        %v1787 = vpack.c.b16 %v1740, %v1739
        %v1788 = vpack.c.b16 %v1742, %v1741
        %v1789 = vpack.c.b16 %v1744, %v1743
        %v1790 = vpack.c.b16 %v1746, %v1745
        %v1791 = vpack.c.b16 %v1748, %v1747
        %v1792 = vpack.c.b16 %v1750, %v1749
        %v1793 = vpack.c.b16 %v1752, %v1751
        %v1794 = vpack.c.b16 %v1754, %v1753
        %v1795 = vpack.c.b16 %v1756, %v1755
        %v1796 = vpack.c.b16 %v1758, %v1757
        %v1797 = vpack.c.b16 %v1760, %v1759
        %v1798 = vpack.c.b16 %v1762, %v1761
        %v1799 = vpack.c.b16 %v1764, %v1763
        %v1800 = vpack.c.b16 %v1766, %v1765
        %v1801 = vpack.c.b16 %v1768, %v1767
        %v1802 = vpack.c.b16 %v1770, %v1769
        %v1803 = vpack.c.b16 %v1772, %v1771
        %v1804 = vpack.c.b16 %v1774, %v1773
        %v1805 = vpack.c.b16 %v1776, %v1775
        %v1806 = vpack.c.b16 %v1778, %v1777
        %v1807 = vpack.c.b16 %v1780, %v1779
        %v1808 = vpack.c.b16 %v1782, %v1781
        %v1809 = vpack.c.b16 %v1784, %v1783
        %v1810 = vpack.c.b16 %v1786, %v1785
        %1835 = vmatprep.subr.bf16.mxu0 0
        %1836 = vmatpush1.bf16.msra.mxu0 %v1794
        %1837 = vmatprep.subr.bf16.mxu0 0
        %1838 = vmatpush1.bf16.msra.mxu0 %v1793
        %1839 = vmatprep.subr.bf16.mxu0 0
        %1840 = vmatpush1.bf16.msra.mxu0 %v1792
        %1841 = vmatprep.subr.bf16.mxu0 0
        %1842 = vmatpush1.bf16.msra.mxu0 %v1791
        %1843 = vmatprep.subr.bf16.mxu0 0
        %1844 = vmatpush1.bf16.msra.mxu0 %v1790
        %1845 = vmatprep.subr.bf16.mxu0 0
        %1846 = vmatpush1.bf16.msra.mxu0 %v1789
        %1847 = vmatprep.subr.bf16.mxu0 0
        %1848 = vmatpush1.bf16.msra.mxu0 %v1788
        %1849 = vmatprep.subr.bf16.mxu0 0
        %1850 = vmatpush1.bf16.msra.mxu0 %v1787
        %1851 = vmatprep.subr.bf16.mxu0 0
        %1852 = vmatpush2.bf16.msra.mxu0 %v1802
        %1853 = vmatprep.subr.bf16.mxu0 0
        %1854 = vmatpush2.bf16.msra.mxu0 %v1801
        %1855 = vmatprep.subr.bf16.mxu0 0
        %1856 = vmatpush2.bf16.msra.mxu0 %v1800
        %1857 = vmatprep.subr.bf16.mxu0 0
        %1858 = vmatpush2.bf16.msra.mxu0 %v1799
        %1859 = vmatprep.subr.bf16.mxu0 0
        %1860 = vmatpush2.bf16.msra.mxu0 %v1798
        %1861 = vmatprep.subr.bf16.mxu0 0
        %1862 = vmatpush2.bf16.msra.mxu0 %v1797
        %1863 = vmatprep.subr.bf16.mxu0 0
        %1864 = vmatpush2.bf16.msra.mxu0 %v1796
        %1865 = vmatprep.subr.bf16.mxu0 0
        %1866 = vmatpush2.bf16.msra.mxu0 %v1795
        %1867 = vmatprep.mubr.bf16.mxu0 %v1686
        %1868 = vmatmul.mubr.bf16.gmra.mxu0 %v1685
        %v1869 = vpop.f32.mrf.mxu0
        %v1870 = vadd.f32 %v1674, %v1869
        %v1871 = vpop.f32.mrf.mxu0
        %v1872 = vpop.f32.mrf.mxu0
        %v1873 = vadd.f32 %v1674, %v1872
        %v1874 = vpop.f32.mrf.mxu0
        %1875 = vdwg.mxu0
        %1876 = vmatprep.subr.bf16.mxu0 0
        %1877 = vmatpush1.bf16.msra.mxu0 %v1810
        %1878 = vmatprep.subr.bf16.mxu0 0
        %1879 = vmatpush1.bf16.msra.mxu0 %v1809
        %1880 = vmatprep.subr.bf16.mxu0 0
        %1881 = vmatpush1.bf16.msra.mxu0 %v1808
        %1882 = vmatprep.subr.bf16.mxu0 0
        %1883 = vmatpush1.bf16.msra.mxu0 %v1807
        %1884 = vmatprep.subr.bf16.mxu0 0
        %1885 = vmatpush1.bf16.msra.mxu0 %v1806
        %1886 = vmatprep.subr.bf16.mxu0 0
        %1887 = vmatpush1.bf16.msra.mxu0 %v1805
        %1888 = vmatprep.subr.bf16.mxu0 0
        %1889 = vmatpush1.bf16.msra.mxu0 %v1804
        %1890 = vmatprep.subr.bf16.mxu0 0
        %1891 = vmatpush1.bf16.msra.mxu0 %v1803
        %1892 = vmatprep.subr.bf16.mxu0 0
        %1893 = vmatpush2.bf16.msra.mxu0 0
        %1894 = vmatprep.subr.bf16.mxu0 0
        %1895 = vmatpush2.bf16.msra.mxu0 0
        %1896 = vmatprep.subr.bf16.mxu0 0
        %1897 = vmatpush2.bf16.msra.mxu0 0
        %1898 = vmatprep.subr.bf16.mxu0 0
        %1899 = vmatpush2.bf16.msra.mxu0 0
        %1900 = vmatprep.subr.bf16.mxu0 0
        %1901 = vmatpush2.bf16.msra.mxu0 0
        %1902 = vmatprep.subr.bf16.mxu0 0
        %1903 = vmatpush2.bf16.msra.mxu0 0
        %1904 = vmatprep.subr.bf16.mxu0 0
        %1905 = vmatpush2.bf16.msra.mxu0 0
        %1906 = vmatprep.subr.bf16.mxu0 0
        %1907 = vmatpush2.bf16.msra.mxu0 0
        %1908 = vmatprep.mubr.bf16.mxu0 0
        %1909 = vmatmul.mubr.bf16.gmra.mxu0 %v1687
        %v1910 = vpop.f32.mrf.mxu0
        %v1911 = vadd.f32 %v1870, %v1910
        %v1912 = vpop.f32.mrf.mxu0
        %v1913 = vpop.f32.mrf.mxu0
        %v1914 = vadd.f32 %v1873, %v1913
        %v1915 = vpop.f32.mrf.mxu0
        %1916 = vdwg.mxu0
        %v1917 = vmul.f32 %v1911, 0.5
        %v1918 = vmul.f32 %v1914, 0.5
        %v1919 = vmul.f32 %v1911, 0.70710677
        %v1920 = vmul.f32 %v1914, 0.70710677
        %v1921 = verf.f32.pop %v1919
        %v1922 = verf.f32.pop %v1920
        %v1923 = vadd.f32 %v1921, 1.0
        %v1924 = vadd.f32 %v1922, 1.0
        %v1925 = vmul.f32 %v1917, %v1923
        %v1926 = vmul.f32 %v1918, %v1924
        %v1927 = vpack.c.bf16 %v1926, %v1925
        %v1929 = vunpack.c.l.b16 %v1927
        %v1930 = vunpack.c.h.b16 %v1927
        %v1931 = vpack.c.b16 %v1929, %v1929
        %v1932 = vpack.c.b16 %v1930, %v1930
        %1935 = vst [vmem:[#allocation3] sm:$0xf] %v1931
        %vm1936 = vcmask 1040384
        %vm1937 = vsmask.f32 256
        %vm1938 = vmand %vm1936, %vm1937
        %v1939 = vld [vmem:[#allocation3 + $0x8] sm:$0x1]
        %v1940 = vsel %vm1938, %v1932, %v1939
        %1941 = vst [vmem:[#allocation3 + $0x8] sm:$0x1] %v1940
        %v1942 = vld [vmem:[#allocation2 + $0x8] sm:$0xff]
        %v1943 = vld [vmem:[#allocation2 + $0x18] sm:$0x11]
        %v1944 = vld [vmem:[#allocation9] sm:$0xf]
        %v1945 = vld [vmem:[#allocation9 + $0x4] sm:$0xf]
        %v1946 = vld [vmem:[#allocation9 + $0x8] sm:$0xf]
        %v1947 = vld [vmem:[#allocation9 + $0xc] sm:$0xf]
        %v1948 = vld [vmem:[#allocation9 + $0x10] sm:$0xf]
        %v1949 = vld [vmem:[#allocation9 + $0x14] sm:$0xf]
        %v1950 = vld [vmem:[#allocation9 + $0x18] sm:$0xf]
        %v1951 = vld [vmem:[#allocation9 + $0x1c] sm:$0xf]
        %v1952 = vld [vmem:[#allocation9 + $0x20] sm:$0xf]
        %v1953 = vld [vmem:[#allocation9 + $0x24] sm:$0xf]
        %v1954 = vld [vmem:[#allocation9 + $0x28] sm:$0xf]
        %v1955 = vld [vmem:[#allocation9 + $0x2c] sm:$0xf]
        %v1956 = vld [vmem:[#allocation9 + $0x30] sm:$0xf]
        %v1957 = vld [vmem:[#allocation9 + $0x34] sm:$0xf]
        %v1958 = vld [vmem:[#allocation9 + $0x38] sm:$0xf]
        %v1959 = vld [vmem:[#allocation9 + $0x3c] sm:$0xf]
        %v1960 = vld [vmem:[#allocation9 + $0x40] sm:$0xf]
        %v1961 = vld [vmem:[#allocation9 + $0x44] sm:$0xf]
        %v1962 = vld [vmem:[#allocation9 + $0x48] sm:$0xf]
        %v1963 = vld [vmem:[#allocation9 + $0x4c] sm:$0xf]
        %v1964 = vld [vmem:[#allocation9 + $0x50] sm:$0xf]
        %v1965 = vld [vmem:[#allocation9 + $0x54] sm:$0xf]
        %v1966 = vld [vmem:[#allocation9 + $0x58] sm:$0xf]
        %v1967 = vld [vmem:[#allocation9 + $0x5c] sm:$0xf]
        %v1968 = vld [vmem:[#allocation9 + $0x60] sm:$0xf]
        %v1969 = vld [vmem:[#allocation9 + $0x64] sm:$0xf]
        %v1970 = vld [vmem:[#allocation9 + $0x68] sm:$0xf]
        %v1971 = vld [vmem:[#allocation9 + $0x6c] sm:$0xf]
        %v1972 = vld [vmem:[#allocation9 + $0x70] sm:$0xf]
        %v1973 = vld [vmem:[#allocation9 + $0x74] sm:$0xf]
        %v1974 = vld [vmem:[#allocation9 + $0x78] sm:$0xf]
        %v1975 = vld [vmem:[#allocation9 + $0x7c] sm:$0xf]
        %v1976 = vld [vmem:[#allocation2] sm:$0xf]
        %v1977 = vld [vmem:[#allocation2 + $0x10] sm:$0x1]
        %v1978 = vld [vmem:[#allocation9 + $0x80] sm:$0xf]
        %v1979 = vld [vmem:[#allocation9 + $0x84] sm:$0xf]
        %v1980 = vld [vmem:[#allocation9 + $0x88] sm:$0xf]
        %v1981 = vld [vmem:[#allocation9 + $0x8c] sm:$0xf]
        %v1982 = vld [vmem:[#allocation9 + $0x90] sm:$0xf]
        %v1983 = vld [vmem:[#allocation9 + $0x94] sm:$0xf]
        %v1984 = vld [vmem:[#allocation9 + $0x98] sm:$0xf]
        %v1985 = vld [vmem:[#allocation9 + $0x9c] sm:$0xf]
        %v1986 = vld [vmem:[#allocation9 + $0xa0] sm:$0xf]
        %v1987 = vld [vmem:[#allocation9 + $0xa4] sm:$0xf]
        %v1988 = vld [vmem:[#allocation9 + $0xa8] sm:$0xf]
        %v1989 = vld [vmem:[#allocation9 + $0xac] sm:$0xf]
        %v1990 = vld [vmem:[#allocation9 + $0xb0] sm:$0xf]
        %v1991 = vld [vmem:[#allocation9 + $0xb4] sm:$0xf]
        %v1992 = vld [vmem:[#allocation9 + $0xb8] sm:$0xf]
        %v1993 = vld [vmem:[#allocation9 + $0xbc] sm:$0xf]
        %v1996 = vunpack.c.l.b16 %v1976
        %v1997 = vunpack.c.l.b16 %v1977
        %v1998 = vpack.c.b16 %v1997, %v1996
        %v2000 = vshrl.u32 %v1998, 16
        %v2002 = vshll.u32 %v1998, 16
        %v2004 = vrot.slane %v2002, 1
        %v2005 = vor.u32 %v2000, %v2004
        %v2023 = vunpack.c.l.b16 %v1978
        %v2024 = vunpack.c.l.b16 %v1979
        %v2025 = vunpack.c.l.b16 %v1980
        %v2026 = vunpack.c.l.b16 %v1981
        %v2027 = vunpack.c.l.b16 %v1982
        %v2028 = vunpack.c.l.b16 %v1983
        %v2029 = vunpack.c.l.b16 %v1984
        %v2030 = vunpack.c.l.b16 %v1985
        %v2031 = vunpack.c.l.b16 %v1986
        %v2032 = vunpack.c.l.b16 %v1987
        %v2033 = vunpack.c.l.b16 %v1988
        %v2034 = vunpack.c.l.b16 %v1989
        %v2035 = vunpack.c.l.b16 %v1990
        %v2036 = vunpack.c.l.b16 %v1991
        %v2037 = vunpack.c.l.b16 %v1992
        %v2038 = vunpack.c.l.b16 %v1993
        %v2039 = vpack.c.b16 %v2024, %v2023
        %v2040 = vpack.c.b16 %v2026, %v2025
        %v2041 = vpack.c.b16 %v2028, %v2027
        %v2042 = vpack.c.b16 %v2030, %v2029
        %v2043 = vpack.c.b16 %v2032, %v2031
        %v2044 = vpack.c.b16 %v2034, %v2033
        %v2045 = vpack.c.b16 %v2036, %v2035
        %v2046 = vpack.c.b16 %v2038, %v2037
        %2055 = vmatprep.subr.bf16.mxu0 0
        %2056 = vmatpush1.bf16.msra.mxu0 %v2046
        %2057 = vmatprep.subr.bf16.mxu0 0
        %2058 = vmatpush1.bf16.msra.mxu0 %v2045
        %2059 = vmatprep.subr.bf16.mxu0 0
        %2060 = vmatpush1.bf16.msra.mxu0 %v2044
        %2061 = vmatprep.subr.bf16.mxu0 0
        %2062 = vmatpush1.bf16.msra.mxu0 %v2043
        %2063 = vmatprep.subr.bf16.mxu0 0
        %2064 = vmatpush1.bf16.msra.mxu0 %v2042
        %2065 = vmatprep.subr.bf16.mxu0 0
        %2066 = vmatpush1.bf16.msra.mxu0 %v2041
        %2067 = vmatprep.subr.bf16.mxu0 0
        %2068 = vmatpush1.bf16.msra.mxu0 %v2040
        %2069 = vmatprep.subr.bf16.mxu0 0
        %2070 = vmatpush1.bf16.msra.mxu0 %v2039
        %2071 = vmatprep.subr.bf16.mxu0 0
        %2072 = vmatpush2.bf16.msra.mxu0 0
        %2073 = vmatprep.subr.bf16.mxu0 0
        %2074 = vmatpush2.bf16.msra.mxu0 0
        %2075 = vmatprep.subr.bf16.mxu0 0
        %2076 = vmatpush2.bf16.msra.mxu0 0
        %2077 = vmatprep.subr.bf16.mxu0 0
        %2078 = vmatpush2.bf16.msra.mxu0 0
        %2079 = vmatprep.subr.bf16.mxu0 0
        %2080 = vmatpush2.bf16.msra.mxu0 0
        %2081 = vmatprep.subr.bf16.mxu0 0
        %2082 = vmatpush2.bf16.msra.mxu0 0
        %2083 = vmatprep.subr.bf16.mxu0 0
        %2084 = vmatpush2.bf16.msra.mxu0 0
        %2085 = vmatprep.subr.bf16.mxu0 0
        %2086 = vmatpush2.bf16.msra.mxu0 0
        %2087 = vmatprep.mubr.bf16.mxu0 0
        %2088 = vmatmul.mubr.bf16.gmra.mxu0 %v2005
        %v2089 = vpop.f32.mrf.mxu0
        %v2090 = vadd.f32 0.0, %v2089
        %v2091 = vpop.f32.mrf.mxu0
        %v2092 = vpop.f32.mrf.mxu0
        %v2093 = vadd.f32 0.0, %v2092
        %v2094 = vpop.f32.mrf.mxu0
        %2095 = vdwg.mxu0
        %v2098 = vunpack.c.l.b16 %v1942
        %v2099 = vunpack.c.h.b16 %v1942
        %v2100 = vunpack.c.l.b16 %v1943
        %v2101 = vunpack.c.h.b16 %v1943
        %v2102 = vpack.c.b16 %v2100, %v2098
        %v2103 = vpack.c.b16 %v2101, %v2099
        %v2138 = vunpack.c.l.b16 %v1944
        %v2139 = vunpack.c.l.b16 %v1945
        %v2140 = vunpack.c.l.b16 %v1946
        %v2141 = vunpack.c.l.b16 %v1947
        %v2142 = vunpack.c.l.b16 %v1948
        %v2143 = vunpack.c.l.b16 %v1949
        %v2144 = vunpack.c.l.b16 %v1950
        %v2145 = vunpack.c.l.b16 %v1951
        %v2146 = vunpack.c.l.b16 %v1952
        %v2147 = vunpack.c.l.b16 %v1953
        %v2148 = vunpack.c.l.b16 %v1954
        %v2149 = vunpack.c.l.b16 %v1955
        %v2150 = vunpack.c.l.b16 %v1956
        %v2151 = vunpack.c.l.b16 %v1957
        %v2152 = vunpack.c.l.b16 %v1958
        %v2153 = vunpack.c.l.b16 %v1959
        %v2154 = vunpack.c.l.b16 %v1960
        %v2155 = vunpack.c.l.b16 %v1961
        %v2156 = vunpack.c.l.b16 %v1962
        %v2157 = vunpack.c.l.b16 %v1963
        %v2158 = vunpack.c.l.b16 %v1964
        %v2159 = vunpack.c.l.b16 %v1965
        %v2160 = vunpack.c.l.b16 %v1966
        %v2161 = vunpack.c.l.b16 %v1967
        %v2162 = vunpack.c.l.b16 %v1968
        %v2163 = vunpack.c.l.b16 %v1969
        %v2164 = vunpack.c.l.b16 %v1970
        %v2165 = vunpack.c.l.b16 %v1971
        %v2166 = vunpack.c.l.b16 %v1972
        %v2167 = vunpack.c.l.b16 %v1973
        %v2168 = vunpack.c.l.b16 %v1974
        %v2169 = vunpack.c.l.b16 %v1975
        %v2170 = vpack.c.b16 %v2139, %v2138
        %v2171 = vpack.c.b16 %v2141, %v2140
        %v2172 = vpack.c.b16 %v2143, %v2142
        %v2173 = vpack.c.b16 %v2145, %v2144
        %v2174 = vpack.c.b16 %v2147, %v2146
        %v2175 = vpack.c.b16 %v2149, %v2148
        %v2176 = vpack.c.b16 %v2151, %v2150
        %v2177 = vpack.c.b16 %v2153, %v2152
        %v2178 = vpack.c.b16 %v2155, %v2154
        %v2179 = vpack.c.b16 %v2157, %v2156
        %v2180 = vpack.c.b16 %v2159, %v2158
        %v2181 = vpack.c.b16 %v2161, %v2160
        %v2182 = vpack.c.b16 %v2163, %v2162
        %v2183 = vpack.c.b16 %v2165, %v2164
        %v2184 = vpack.c.b16 %v2167, %v2166
        %v2185 = vpack.c.b16 %v2169, %v2168
        %2202 = vmatprep.subr.bf16.mxu0 0
        %2203 = vmatpush1.bf16.msra.mxu0 %v2177
        %2204 = vmatprep.subr.bf16.mxu0 0
        %2205 = vmatpush1.bf16.msra.mxu0 %v2176
        %2206 = vmatprep.subr.bf16.mxu0 0
        %2207 = vmatpush1.bf16.msra.mxu0 %v2175
        %2208 = vmatprep.subr.bf16.mxu0 0
        %2209 = vmatpush1.bf16.msra.mxu0 %v2174
        %2210 = vmatprep.subr.bf16.mxu0 0
        %2211 = vmatpush1.bf16.msra.mxu0 %v2173
        %2212 = vmatprep.subr.bf16.mxu0 0
        %2213 = vmatpush1.bf16.msra.mxu0 %v2172
        %2214 = vmatprep.subr.bf16.mxu0 0
        %2215 = vmatpush1.bf16.msra.mxu0 %v2171
        %2216 = vmatprep.subr.bf16.mxu0 0
        %2217 = vmatpush1.bf16.msra.mxu0 %v2170
        %2218 = vmatprep.subr.bf16.mxu0 0
        %2219 = vmatpush2.bf16.msra.mxu0 %v2185
        %2220 = vmatprep.subr.bf16.mxu0 0
        %2221 = vmatpush2.bf16.msra.mxu0 %v2184
        %2222 = vmatprep.subr.bf16.mxu0 0
        %2223 = vmatpush2.bf16.msra.mxu0 %v2183
        %2224 = vmatprep.subr.bf16.mxu0 0
        %2225 = vmatpush2.bf16.msra.mxu0 %v2182
        %2226 = vmatprep.subr.bf16.mxu0 0
        %2227 = vmatpush2.bf16.msra.mxu0 %v2181
        %2228 = vmatprep.subr.bf16.mxu0 0
        %2229 = vmatpush2.bf16.msra.mxu0 %v2180
        %2230 = vmatprep.subr.bf16.mxu0 0
        %2231 = vmatpush2.bf16.msra.mxu0 %v2179
        %2232 = vmatprep.subr.bf16.mxu0 0
        %2233 = vmatpush2.bf16.msra.mxu0 %v2178
        %2234 = vmatprep.mubr.bf16.mxu0 %v2103
        %2235 = vmatmul.mubr.bf16.gmra.mxu0 %v2102
        %v2236 = vpop.f32.mrf.mxu0
        %v2237 = vadd.f32 %v2090, %v2236
        %v2238 = vpop.f32.mrf.mxu0
        %v2239 = vpop.f32.mrf.mxu0
        %v2240 = vadd.f32 %v2093, %v2239
        %v2241 = vpop.f32.mrf.mxu0
        %2242 = vdwg.mxu0
        %v2243 = vadd.f32 %v2237, %v1674
        %v2244 = vadd.f32 %v2240, %v1674
        %v2245 = vmul.f32 %v2243, 0.5
        %v2246 = vmul.f32 %v2244, 0.5
        %v2247 = vmul.f32 %v2243, 0.70710677
        %v2248 = vmul.f32 %v2244, 0.70710677
        %v2249 = verf.f32.pop %v2247
        %v2250 = verf.f32.pop %v2248
        %v2251 = vadd.f32 %v2249, 1.0
        %v2252 = vadd.f32 %v2250, 1.0
        %v2253 = vmul.f32 %v2245, %v2251
        %v2254 = vmul.f32 %v2246, %v2252
        %v2255 = vpack.c.bf16 %v2254, %v2253
        %v2257 = vunpack.c.l.b16 %v2255
        %v2258 = vunpack.c.h.b16 %v2255
        %v2259 = vpack.c.b16 %v2257, %v2257
        %v2260 = vpack.c.b16 %v2258, %v2258
        %2263 = vst [vmem:[#allocation3 + $0x4] sm:$0xf] %v2259
        %v2264 = vld [vmem:[#allocation3 + $0xc] sm:$0x1]
        %v2265 = vsel %vm1938, %v2260, %v2264
        %2266 = vst [vmem:[#allocation3 + $0xc] sm:$0x1] %v2265
        // Predicated region
        $region61: #{tpu_custom_call.1} parent=39 // pred_check
          %p2267 = pneg %p1594
        $region62: #{tpu_custom_call.1} parent=39 // pred_check_branch
          %2269 = sbr.rel (%p2267) target = $region64
        $region63: #{tpu_custom_call.1} parent=39 // pred_region
          %vm2270 = vcmask 1044484
          %vm2271 = vsmask.f32 4352
          %vm2272 = vmand %vm2270, %vm2271
          %vm2273 = vmor %vm2272, %vm1938
          %v2274 = vld [vmem:[#allocation3] sm:$0x11]
          %v2275 = vsel %vm2273, 0, %v2274
          %2276 = vst [vmem:[#allocation3] sm:$0x11] %v2275
        $region64: #{tpu_custom_call.1} parent=39 // pred_fallthru
          _
        %v2277 = vld [vmem:[#allocation3] sm:$0xff]
        %v2278 = vld [vmem:[#allocation10] sm:$0xf]
        %v2279 = vld [vmem:[#allocation10 + $0x4] sm:$0xf]
        %v2280 = vld [vmem:[#allocation10 + $0x8] sm:$0xf]
        %v2281 = vld [vmem:[#allocation10 + $0xc] sm:$0xf]
        %v2282 = vld [vmem:[#allocation10 + $0x10] sm:$0xf]
        %v2283 = vld [vmem:[#allocation10 + $0x14] sm:$0xf]
        %v2284 = vld [vmem:[#allocation10 + $0x18] sm:$0xf]
        %v2285 = vld [vmem:[#allocation10 + $0x1c] sm:$0xf]
        %v2286 = vld [vmem:[#allocation10 + $0x20] sm:$0xf]
        %v2287 = vld [vmem:[#allocation10 + $0x24] sm:$0xf]
        %v2288 = vld [vmem:[#allocation10 + $0x28] sm:$0xf]
        %v2289 = vld [vmem:[#allocation10 + $0x2c] sm:$0xf]
        %v2290 = vld [vmem:[#allocation10 + $0x30] sm:$0xf]
        %v2291 = vld [vmem:[#allocation10 + $0x34] sm:$0xf]
        %v2292 = vld [vmem:[#allocation10 + $0x38] sm:$0xf]
        %v2293 = vld [vmem:[#allocation10 + $0x3c] sm:$0xf]
        %v2294 = vld [vmem:[#allocation10 + $0x40] sm:$0xf]
        %v2295 = vld [vmem:[#allocation10 + $0x44] sm:$0xf]
        %v2296 = vld [vmem:[#allocation10 + $0x48] sm:$0xf]
        %v2297 = vld [vmem:[#allocation10 + $0x4c] sm:$0xf]
        %v2298 = vld [vmem:[#allocation10 + $0x50] sm:$0xf]
        %v2299 = vld [vmem:[#allocation10 + $0x54] sm:$0xf]
        %v2300 = vld [vmem:[#allocation10 + $0x58] sm:$0xf]
        %v2301 = vld [vmem:[#allocation10 + $0x5c] sm:$0xf]
        %v2302 = vld [vmem:[#allocation10 + $0x60] sm:$0xf]
        %v2303 = vld [vmem:[#allocation10 + $0x64] sm:$0xf]
        %v2304 = vld [vmem:[#allocation10 + $0x68] sm:$0xf]
        %v2305 = vld [vmem:[#allocation10 + $0x6c] sm:$0xf]
        %v2306 = vld [vmem:[#allocation10 + $0x70] sm:$0xf]
        %v2307 = vld [vmem:[#allocation10 + $0x74] sm:$0xf]
        %v2308 = vld [vmem:[#allocation10 + $0x78] sm:$0xf]
        %v2309 = vld [vmem:[#allocation10 + $0x7c] sm:$0xf]
        %v2310 = vld [vmem:[#allocation3] sm:$0xf]
        %v2311 = vld [vmem:[#allocation3 + $0x8] sm:$0x1]
        %v2312 = vld [vmem:[#allocation10 + $0x80] sm:$0xf]
        %v2313 = vld [vmem:[#allocation10 + $0x84] sm:$0xf]
        %v2314 = vld [vmem:[#allocation10 + $0x88] sm:$0xf]
        %v2315 = vld [vmem:[#allocation10 + $0x8c] sm:$0xf]
        %v2316 = vld [vmem:[#allocation10 + $0x90] sm:$0xf]
        %v2317 = vld [vmem:[#allocation10 + $0x94] sm:$0xf]
        %v2318 = vld [vmem:[#allocation10 + $0x98] sm:$0xf]
        %v2319 = vld [vmem:[#allocation10 + $0x9c] sm:$0xf]
        %v2320 = vld [vmem:[#allocation10 + $0xa0] sm:$0xf]
        %v2321 = vld [vmem:[#allocation10 + $0xa4] sm:$0xf]
        %v2322 = vld [vmem:[#allocation10 + $0xa8] sm:$0xf]
        %v2323 = vld [vmem:[#allocation10 + $0xac] sm:$0xf]
        %v2324 = vld [vmem:[#allocation10 + $0xb0] sm:$0xf]
        %v2325 = vld [vmem:[#allocation10 + $0xb4] sm:$0xf]
        %v2326 = vld [vmem:[#allocation10 + $0xb8] sm:$0xf]
        %v2327 = vld [vmem:[#allocation10 + $0xbc] sm:$0xf]
        %v2330 = vunpack.c.l.b16 %v2310
        %v2331 = vunpack.c.l.b16 %v2311
        %v2332 = vpack.c.b16 %v2331, %v2330
        %v2334 = vshrl.u32 %v2332, 16
        %v2336 = vshll.u32 %v2332, 16
        %v2338 = vrot.slane %v2336, 1
        %v2339 = vor.u32 %v2334, %v2338
        %v2357 = vunpack.c.l.b16 %v2312
        %v2358 = vunpack.c.l.b16 %v2313
        %v2359 = vunpack.c.l.b16 %v2314
        %v2360 = vunpack.c.l.b16 %v2315
        %v2361 = vunpack.c.l.b16 %v2316
        %v2362 = vunpack.c.l.b16 %v2317
        %v2363 = vunpack.c.l.b16 %v2318
        %v2364 = vunpack.c.l.b16 %v2319
        %v2365 = vunpack.c.l.b16 %v2320
        %v2366 = vunpack.c.l.b16 %v2321
        %v2367 = vunpack.c.l.b16 %v2322
        %v2368 = vunpack.c.l.b16 %v2323
        %v2369 = vunpack.c.l.b16 %v2324
        %v2370 = vunpack.c.l.b16 %v2325
        %v2371 = vunpack.c.l.b16 %v2326
        %v2372 = vunpack.c.l.b16 %v2327
        %v2373 = vpack.c.b16 %v2358, %v2357
        %v2374 = vpack.c.b16 %v2360, %v2359
        %v2375 = vpack.c.b16 %v2362, %v2361
        %v2376 = vpack.c.b16 %v2364, %v2363
        %v2377 = vpack.c.b16 %v2366, %v2365
        %v2378 = vpack.c.b16 %v2368, %v2367
        %v2379 = vpack.c.b16 %v2370, %v2369
        %v2380 = vpack.c.b16 %v2372, %v2371
        %2389 = vmatprep.subr.bf16.mxu0 0
        %2390 = vmatpush1.bf16.msra.mxu0 %v2380
        %2391 = vmatprep.subr.bf16.mxu0 0
        %2392 = vmatpush1.bf16.msra.mxu0 %v2379
        %2393 = vmatprep.subr.bf16.mxu0 0
        %2394 = vmatpush1.bf16.msra.mxu0 %v2378
        %2395 = vmatprep.subr.bf16.mxu0 0
        %2396 = vmatpush1.bf16.msra.mxu0 %v2377
        %2397 = vmatprep.subr.bf16.mxu0 0
        %2398 = vmatpush1.bf16.msra.mxu0 %v2376
        %2399 = vmatprep.subr.bf16.mxu0 0
        %2400 = vmatpush1.bf16.msra.mxu0 %v2375
        %2401 = vmatprep.subr.bf16.mxu0 0
        %2402 = vmatpush1.bf16.msra.mxu0 %v2374
        %2403 = vmatprep.subr.bf16.mxu0 0
        %2404 = vmatpush1.bf16.msra.mxu0 %v2373
        %2405 = vmatprep.subr.bf16.mxu0 0
        %2406 = vmatpush2.bf16.msra.mxu0 0
        %2407 = vmatprep.subr.bf16.mxu0 0
        %2408 = vmatpush2.bf16.msra.mxu0 0
        %2409 = vmatprep.subr.bf16.mxu0 0
        %2410 = vmatpush2.bf16.msra.mxu0 0
        %2411 = vmatprep.subr.bf16.mxu0 0
        %2412 = vmatpush2.bf16.msra.mxu0 0
        %2413 = vmatprep.subr.bf16.mxu0 0
        %2414 = vmatpush2.bf16.msra.mxu0 0
        %2415 = vmatprep.subr.bf16.mxu0 0
        %2416 = vmatpush2.bf16.msra.mxu0 0
        %2417 = vmatprep.subr.bf16.mxu0 0
        %2418 = vmatpush2.bf16.msra.mxu0 0
        %2419 = vmatprep.subr.bf16.mxu0 0
        %2420 = vmatpush2.bf16.msra.mxu0 0
        %2421 = vmatprep.mubr.bf16.mxu0 0
        %2422 = vmatmul.mubr.bf16.gmra.mxu0 %v2339
        %v2423 = vpop.f32.mrf.mxu0
        %v2424 = vadd.f32 0.0, %v2423
        %v2425 = vpop.f32.mrf.mxu0
        %v2426 = vpop.f32.mrf.mxu0
        %v2427 = vpop.f32.mrf.mxu0
        %2428 = vdwg.mxu0
        %v2430 = vunpack.c.l.b16 %v2277
        %v2431 = vunpack.c.h.b16 %v2277
        %v2432 = vpack.c.b16 %v2430, %v2430
        %v2433 = vpack.c.b16 %v2431, %v2431
        %v2468 = vunpack.c.l.b16 %v2278
        %v2469 = vunpack.c.l.b16 %v2279
        %v2470 = vunpack.c.l.b16 %v2280
        %v2471 = vunpack.c.l.b16 %v2281
        %v2472 = vunpack.c.l.b16 %v2282
        %v2473 = vunpack.c.l.b16 %v2283
        %v2474 = vunpack.c.l.b16 %v2284
        %v2475 = vunpack.c.l.b16 %v2285
        %v2476 = vunpack.c.l.b16 %v2286
        %v2477 = vunpack.c.l.b16 %v2287
        %v2478 = vunpack.c.l.b16 %v2288
        %v2479 = vunpack.c.l.b16 %v2289
        %v2480 = vunpack.c.l.b16 %v2290
        %v2481 = vunpack.c.l.b16 %v2291
        %v2482 = vunpack.c.l.b16 %v2292
        %v2483 = vunpack.c.l.b16 %v2293
        %v2484 = vunpack.c.l.b16 %v2294
        %v2485 = vunpack.c.l.b16 %v2295
        %v2486 = vunpack.c.l.b16 %v2296
        %v2487 = vunpack.c.l.b16 %v2297
        %v2488 = vunpack.c.l.b16 %v2298
        %v2489 = vunpack.c.l.b16 %v2299
        %v2490 = vunpack.c.l.b16 %v2300
        %v2491 = vunpack.c.l.b16 %v2301
        %v2492 = vunpack.c.l.b16 %v2302
        %v2493 = vunpack.c.l.b16 %v2303
        %v2494 = vunpack.c.l.b16 %v2304
        %v2495 = vunpack.c.l.b16 %v2305
        %v2496 = vunpack.c.l.b16 %v2306
        %v2497 = vunpack.c.l.b16 %v2307
        %v2498 = vunpack.c.l.b16 %v2308
        %v2499 = vunpack.c.l.b16 %v2309
        %v2500 = vpack.c.b16 %v2469, %v2468
        %v2501 = vpack.c.b16 %v2471, %v2470
        %v2502 = vpack.c.b16 %v2473, %v2472
        %v2503 = vpack.c.b16 %v2475, %v2474
        %v2504 = vpack.c.b16 %v2477, %v2476
        %v2505 = vpack.c.b16 %v2479, %v2478
        %v2506 = vpack.c.b16 %v2481, %v2480
        %v2507 = vpack.c.b16 %v2483, %v2482
        %v2508 = vpack.c.b16 %v2485, %v2484
        %v2509 = vpack.c.b16 %v2487, %v2486
        %v2510 = vpack.c.b16 %v2489, %v2488
        %v2511 = vpack.c.b16 %v2491, %v2490
        %v2512 = vpack.c.b16 %v2493, %v2492
        %v2513 = vpack.c.b16 %v2495, %v2494
        %v2514 = vpack.c.b16 %v2497, %v2496
        %v2515 = vpack.c.b16 %v2499, %v2498
        %2532 = vmatprep.subr.bf16.mxu0 0
        %2533 = vmatpush1.bf16.msra.mxu0 %v2507
        %2534 = vmatprep.subr.bf16.mxu0 0
        %2535 = vmatpush1.bf16.msra.mxu0 %v2506
        %2536 = vmatprep.subr.bf16.mxu0 0
        %2537 = vmatpush1.bf16.msra.mxu0 %v2505
        %2538 = vmatprep.subr.bf16.mxu0 0
        %2539 = vmatpush1.bf16.msra.mxu0 %v2504
        %2540 = vmatprep.subr.bf16.mxu0 0
        %2541 = vmatpush1.bf16.msra.mxu0 %v2503
        %2542 = vmatprep.subr.bf16.mxu0 0
        %2543 = vmatpush1.bf16.msra.mxu0 %v2502
        %2544 = vmatprep.subr.bf16.mxu0 0
        %2545 = vmatpush1.bf16.msra.mxu0 %v2501
        %2546 = vmatprep.subr.bf16.mxu0 0
        %2547 = vmatpush1.bf16.msra.mxu0 %v2500
        %2548 = vmatprep.subr.bf16.mxu0 0
        %2549 = vmatpush2.bf16.msra.mxu0 %v2515
        %2550 = vmatprep.subr.bf16.mxu0 0
        %2551 = vmatpush2.bf16.msra.mxu0 %v2514
        %2552 = vmatprep.subr.bf16.mxu0 0
        %2553 = vmatpush2.bf16.msra.mxu0 %v2513
        %2554 = vmatprep.subr.bf16.mxu0 0
        %2555 = vmatpush2.bf16.msra.mxu0 %v2512
        %2556 = vmatprep.subr.bf16.mxu0 0
        %2557 = vmatpush2.bf16.msra.mxu0 %v2511
        %2558 = vmatprep.subr.bf16.mxu0 0
        %2559 = vmatpush2.bf16.msra.mxu0 %v2510
        %2560 = vmatprep.subr.bf16.mxu0 0
        %2561 = vmatpush2.bf16.msra.mxu0 %v2509
        %2562 = vmatprep.subr.bf16.mxu0 0
        %2563 = vmatpush2.bf16.msra.mxu0 %v2508
        %2564 = vmatprep.mubr.bf16.mxu0 %v2433
        %2565 = vmatmul.mubr.bf16.gmra.mxu0 %v2432
        %v2566 = vpop.f32.mrf.mxu0
        %v2567 = vadd.f32 %v2424, %v2566
        %v2568 = vpop.f32.mrf.mxu0
        %v2569 = vpop.f32.mrf.mxu0
        %v2570 = vpop.f32.mrf.mxu0
        %2571 = vdwg.mxu0
        %v2572 = vlaneseq
        %v2573 = vshrl.u32 %v2572, 7
        %v2574 = vsub.s32 0, %v2573
        %v2575 = vrot.slane %v308, %v2574
        %v2576 = vadd.f32 %v2567, %v2575
        %v2577 = vmul.f32 %v2576, 0.5
        %v2578 = vmul.f32 %v2576, 0.70710677
        %v2579 = verf.f32.pop %v2578
        %v2580 = vadd.f32 %v2579, 1.0
        %v2581 = vmul.f32 %v2577, %v2580
        %v2582 = vpack.c.bf16 %v2581, %v2581
        %2583 = vst [vmem:[%s303] sm:$0xf] %v2582
        %s2584 = sand.u32 %s158, 1
        %s2585 = scalar_lea.sflag [#allocation6], %s2584
        %s2586 = sand.u32 %s158, 1
        %s2587 = smul.addr %s2586, 4
        %s2588 = scalar_lea.vmem [#allocation12], %s2587
        // Predicated region
        $region65: #{tpu_custom_call.1} parent=39 // pred_check
          %p2589 = pneg %p168
        $region66: #{tpu_custom_call.1} parent=39 // pred_check_branch
          %2591 = sbr.rel (%p2589) target = $region68
        $region67: #{tpu_custom_call.1} parent=39 // pred_region
          %s2593 = ssub.s32 64, 64
          %2594 = vsyncadd %s2585, %s2593
          %s2595 = sadd.s32 %s29, %s28
          %s2596 = smul.addr %s2595, 64
          %s2597 = scalar_lea.hbm %s5, %s2596
          %s2599 = sshll.u32 %s2588, 4
          %s2600 = int_to_ptr.vmem [resolvable:$true] %s2599
          %2602 = dma.vmem_to_hbm [thread:$0]  %s2600, 64, %s2597, %s2585
        $region68: #{tpu_custom_call.1} parent=39 // pred_fallthru
          _
      $region40: #{tpu_custom_call.1} parent=5 // pred_fallthru
        _
      %p2603 = scmp.le.s32.totalorder 2, %s19
      // Predicated region
      $region69: #{tpu_custom_call.1} parent=5 // pred_check
        %p2604 = pneg %p2603
      $region70: #{tpu_custom_call.1} parent=5 // pred_check_branch
        %2606 = sbr.rel (%p2604) target = $region72
      $region71: #{tpu_custom_call.1} parent=5 // pred_region
        %s2607 = ssub.s32 %s19, 2
        // Predicated region
        $region73: #{tpu_custom_call.1} parent=71 // pred_check
          %p2608 = pneg %p174
        $region74: #{tpu_custom_call.1} parent=71 // pred_check_branch
          %2610 = sbr.rel (%p2608) target = $region76
        $region75: #{tpu_custom_call.1} parent=71 // pred_region
          %s2611 = sand.u32 %s159, 1
          %s2612 = scalar_lea.sflag [#allocation6], %s2611
          %s2613 = sand.u32 %s159, 1
          %s2614 = smul.addr %s2613, 4
          %s2615 = scalar_lea.vmem [#allocation12], %s2614
          %2616 = dma.done %s2612, 64
        $region76: #{tpu_custom_call.1} parent=71 // pred_fallthru
          _
      $region72: #{tpu_custom_call.1} parent=5 // pred_fallthru
        _
    $region6: #{tpu_custom_call.1} parent=1 // loop_footer
      %s23 = sadd.s32 1, %s19
    $region7: #{tpu_custom_call.1} parent=1 // loop_footer_branch
      %18 = sbr.rel target = $region3
    $region8: #{tpu_custom_call.1} parent=1 // loop_exit
      _
    %2617 = vsyncpa [#allocation5], 1
    %s2618 = scalar_lea.sflag [#allocation5], 1
    %2619 = vsyncpa %s2618, 1
    %2620 = vsyncpa [#allocation8], 1
    %2621 = vsyncpa [#allocation11], 1
    %2622 = vsyncpa [#allocation6], 1
    %s2623 = scalar_lea.sflag [#allocation6], 1
    %2624 = vsyncpa %s2623, 1

</llo_original>
